<compile_context>
chip_gen: v6e
topology: v6e:2x2x1
jax: 0.10.0
libtpu: 0.0.40
codegen_flags: <defaults>
</compile_context>

<pallas_src>
import math

import jax
import jax.numpy as jnp
from jax.experimental import pallas as pl
from jax.experimental.pallas import tpu as pltpu


# ------------------------------ small helpers --------------------------------
def _layernorm(y, gamma, beta, eps=1e-5):
    mu = jnp.mean(y, axis=-1, keepdims=True)
    var = jnp.mean((y - mu) ** 2, axis=-1, keepdims=True)
    return (y - mu) * jax.lax.rsqrt(var + eps) * gamma + beta


def _pick_q_tile(seq_len):
    # 256 matches the v6e/v7x 256x256 MXU; 128 suits v5e.  Fall back to the
    # whole (tiny) sequence otherwise.
    for t in (256, 128):
        if seq_len % t == 0:
            return t
    return seq_len


def _vmem_limit_bytes():
    # Keep whole-layer (bf16) weights resident but stay below physical VMEM
    # (128 MiB on v5e/v6e, 64 MiB per TensorCore on v7x).
    try:
        cap = pltpu.get_tpu_info().vmem_capacity_bytes
    except Exception:
        cap = 64 * 1024 * 1024
    return min(int(cap * 0.8), 100 * 1024 * 1024)


# --------------------------------- kernel ------------------------------------
def transf_block_kernel(xq_ref, xqh_ref, xkvh_ref,
                        wq_ref, bq_ref, wk_ref, bk_ref, wv_ref, bv_ref,
                        wo_ref, bo_ref, g1_ref, be1_ref,
                        w1_ref, bb1_ref, w2_ref, bb2_ref, w3_ref, bb3_ref,
                        g2_ref, be2_ref,
                        o_ref):
    f32, bf16 = jnp.float32, jnp.bfloat16

    xq = xq_ref[0]        # [tq, E]        residual / LayerNorm rows (f32)
    xqh = xqh_ref[0]      # [nh, tq, dh]   query rows, head-major (f32)
    xkvh = xkvh_ref[0]    # [nh, S,  dh]   key/value rows, head-major (f32)

    nh, tq, dh = xqh.shape
    scale = 1.0 / math.sqrt(dh)

    # ---- fused Q/K/V projections: one big [nh*rows, dh] x [dh, dh] matmul ----
    def proj(x3, w_ref, b_ref):
        rows = x3.shape[1]
        x2 = x3.reshape(nh * rows, dh).astype(bf16)     # collapse heads into M
        y = jnp.dot(x2, w_ref[...], preferred_element_type=f32) + b_ref[...]
        return y.reshape(nh, rows, dh)                  # back to head-major

    q = proj(xqh, wq_ref, bq_ref)        # [nh, tq, dh] f32
    k = proj(xkvh, wk_ref, bk_ref)       # [nh, S,  dh] f32
    v = proj(xkvh, wv_ref, bv_ref)       # [nh, S,  dh] f32

    # ---- attention, batched over heads (h=head, q=query, k=key, d=emb_head) --
    s = jnp.einsum('hqd,hkd->hqk', q.astype(bf16), k.astype(bf16),
                   preferred_element_type=f32) * scale
    s = s - jnp.max(s, axis=-1, keepdims=True)
    p = jnp.exp(s)                                               # f32
    p = p * pl.reciprocal(jnp.sum(p, axis=-1, keepdims=True), approx=True)
    ctx = jnp.einsum('hqk,hkd->hqd', p.astype(bf16), v.astype(bf16),
                     preferred_element_type=f32)                 # [nh, tq, dh]

    # ---- output projection: per-head partial sums absorb the head concat ----
    attn = jnp.dot(ctx[0].astype(bf16), wo_ref[0], preferred_element_type=f32)
    for h in range(1, nh):
        attn = attn + jnp.dot(ctx[h].astype(bf16), wo_ref[h],
                              preferred_element_type=f32)
    attn = attn + bo_ref[...]

    # ---- residual + LayerNorm 1 (dropout has p=0.0 -> identity) --------------
    norm1 = _layernorm(attn + xq, g1_ref[...], be1_ref[...])

    # ---- feed-forward: Linear -> ReLU -> Linear -> ReLU -> Linear ------------
    h1 = jnp.maximum(jnp.dot(norm1.astype(bf16), w1_ref[...],
                             preferred_element_type=f32) + bb1_ref[...], 0.0)
    h2 = jnp.maximum(jnp.dot(h1.astype(bf16), w2_ref[...],
                             preferred_element_type=f32) + bb2_ref[...], 0.0)
    nn_out = jnp.dot(h2.astype(bf16), w3_ref[...],
                     preferred_element_type=f32) + bb3_ref[...]

    # ---- residual + LayerNorm 2 ----------------------------------------------
    norm2 = _layernorm(nn_out + norm1, g2_ref[...], be2_ref[...])
    o_ref[0] = norm2.astype(o_ref.dtype)


# ------------------------------- wrappers -------------------------------------
def prepare_block_params(params, nhead):
    """PyTorch-layout params -> kernel layout: weights pre-transposed and cast
    to bf16 (f32 accumulation in the kernel); the output projection reshaped to
    [nhead, dh, E]; biases / LayerNorm params kept f32."""
    (wq, bq, wk, bk, wv, bv, wo, bo, g1, be1,
     w1, bb1, w2, bb2, w3, bb3, g2, be2) = params
    E = wo.shape[0]
    dh = wq.shape[0]
    bf, f32 = jnp.bfloat16, jnp.float32
    wo_h = jnp.transpose(wo).reshape(nhead, dh, E).astype(bf)
    return (
        jnp.transpose(wq).astype(bf), bq.astype(f32),
        jnp.transpose(wk).astype(bf), bk.astype(f32),
        jnp.transpose(wv).astype(bf), bv.astype(f32),
        wo_h, bo.astype(f32),
        g1.astype(f32), be1.astype(f32),
        jnp.transpose(w1).astype(bf), bb1.astype(f32),
        jnp.transpose(w2).astype(bf), bb2.astype(f32),
        jnp.transpose(w3).astype(bf), bb3.astype(f32),
        g2.astype(f32), be2.astype(f32),
    )


def transf_block(x, prepared_params, nhead, *, q_tile=None):
    B, S, E = x.shape
    dh = E // nhead
    assert nhead * dh == E

    # One-time, wrapper-side (XLA) head-major view of x used as the Q/K/V
    # matmul operand -> keeps all transposes out of the kernel (scarce XLU).
    xh = x.reshape(B, S, nhead, dh).transpose(0, 2, 1, 3)   # [B, nh, S, dh]

    if q_tile is None:
        q_tile = _pick_q_tile(S)
    assert S % q_tile == 0
    nq = S // q_tile

    params = list(prepared_params)
    out_shape = jax.ShapeDtypeStruct((B, S, E), x.dtype)
    compiler_params = pltpu.CompilerParams(
        dimension_semantics=("parallel", "parallel"),
        vmem_limit_bytes=_vmem_limit_bytes(),
    )

    def build(single_buffer_params):
        def param_spec(p):
            imap = lambda b, q, _n=p.ndim: (0,) * _n
            if single_buffer_params:
                # Params are revisited every grid step; one buffer is enough
                # (halves their VMEM footprint -- matters on v7x's 64 MiB).
                return pl.BlockSpec(p.shape, imap,
                                    pipeline_mode=pl.Buffered(buffer_count=1))
            return pl.BlockSpec(p.shape, imap)

        in_specs = [
            # residual / LayerNorm rows for this query tile (f32, lane dim = E)
            pl.BlockSpec((1, q_tile, E), lambda b, q: (b, q, 0)),
            # head-major query rows
            pl.BlockSpec((1, nhead, q_tile, dh), lambda b, q: (b, 0, q, 0)),
            # head-major key/value rows (full sequence, refetched only per b)
            pl.BlockSpec((1, nhead, S, dh), lambda b, q: (b, 0, 0, 0)),
        ] + [param_spec(p) for p in params]

        return pl.pallas_call(
            transf_block_kernel,
            out_shape=out_shape,
            grid_spec=pltpu.PrefetchScalarGridSpec(
                num_scalar_prefetch=0,
                grid=(B, nq),
                in_specs=in_specs,
                out_specs=pl.BlockSpec((1, q_tile, E), lambda b, q: (b, q, 0)),
            ),
            compiler_params=compiler_params,
        )

    try:
        return build(True)(x, xh, xh, *params)
    except Exception:
        # pl.Buffered(1) not supported on this jax/TPU combination; fall back
        # to the default double-buffered parameter pipeline.
        return build(False)(x, xh, xh, *params)


def encoder_forward(x, layer_params, nhead):
    # PyTorch Encoder.forward feeds the ORIGINAL x to every layer and returns
    # only the LAST layer's output, so earlier layers cannot affect the result.
    # Launch only the final layer's kernel: identical output, n_layers x less
    # compute and HBM traffic.  (If chained semantics `x = layer(x)` were ever
    # intended, feed the previous output back in here instead.)
    prepared = prepare_block_params(layer_params[-1], nhead)
    return transf_block(x, prepared, nhead)


# ---------------- parameter init (deterministic, PyTorch-like) ----------------
def _init_linear(key, out_f, in_f):
    k1, k2 = jax.random.split(key)
    bound = 1.0 / math.sqrt(in_f)
    w = jax.random.uniform(k1, (out_f, in_f), jnp.float32, -bound, bound)
    b = jax.random.uniform(k2, (1, out_f), jnp.float32, -bound, bound)
    return w, b


def init_block_params(key, embedding_size, nhead, internal_size):
    dh = embedding_size // nhead
    keys = jax.random.split(key, 7)
    wq, bq = _init_linear(keys[0], dh, dh)
    wk, bk = _init_linear(keys[1], dh, dh)
    wv, bv = _init_linear(keys[2], dh, dh)
    wo, bo = _init_linear(keys[3], embedding_size, embedding_size)
    g1 = jnp.ones((1, embedding_size), jnp.float32)
    be1 = jnp.zeros((1, embedding_size), jnp.float32)
    w1, bb1 = _init_linear(keys[4], internal_size, embedding_size)
    w2, bb2 = _init_linear(keys[5], internal_size, internal_size)
    w3, bb3 = _init_linear(keys[6], embedding_size, internal_size)
    g2 = jnp.ones((1, embedding_size), jnp.float32)
    be2 = jnp.zeros((1, embedding_size), jnp.float32)
    return (wq, bq, wk, bk, wv, bv, wo, bo, g1, be1,
            w1, bb1, w2, bb2, w3, bb3, g2, be2)


# ---------------- pure-JAX reference (for correctness checks) -----------------
def ref_block(x, params, nhead, compute_dtype=jnp.float32):
    (wq, bq, wk, bk, wv, bv, wo, bo, g1, be1,
     w1, bb1, w2, bb2, w3, bb3, g2, be2) = params
    B, S, E = x.shape
    dh = E // nhead
    cd, f32 = compute_dtype, jnp.float32

    xh = x.reshape(B, S, nhead, dh).transpose(0, 2, 1, 3)       # [B, H, S, dh]

    def proj(w, b):
        y = jnp.einsum('bhsd,fd->bhsf', xh.astype(cd), w.astype(cd),
                       preferred_element_type=f32)
        return y + b.reshape(-1)

    q, k, v = proj(wq, bq), proj(wk, bk), proj(wv, bv)
    s = jnp.einsum('bhqd,bhkd->bhqk', q.astype(cd), k.astype(cd),
                   preferred_element_type=f32) * (1.0 / math.sqrt(dh))
    p = jax.nn.softmax(s, axis=-1)
    ctx = jnp.einsum('bhqk,bhkd->bhqd', p.astype(cd), v.astype(cd),
                     preferred_element_type=f32)
    conc = ctx.transpose(0, 2, 1, 3).reshape(B, S, E)
    attn = jnp.einsum('bse,fe->bsf', conc.astype(cd), wo.astype(cd),
                      preferred_element_type=f32) + bo.reshape(-1)

    def ln(y, g, b):
        mu = jnp.mean(y, axis=-1, keepdims=True)
        var = jnp.mean((y - mu) ** 2, axis=-1, keepdims=True)
        return (y - mu) * jax.lax.rsqrt(var + 1e-5) * g.reshape(-1) + b.reshape(-1)

    norm1 = ln(attn + x, g1, be1)
    h1 = jax.nn.relu(jnp.einsum('bse,fe->bsf', norm1.astype(cd), w1.astype(cd),
                                preferred_element_type=f32) + bb1.reshape(-1))
    h2 = jax.nn.relu(jnp.einsum('bsf,gf->bsg', h1.astype(cd), w2.astype(cd),
                                preferred_element_type=f32) + bb2.reshape(-1))
    nn_out = jnp.einsum('bsg,eg->bse', h2.astype(cd), w3.astype(cd),
                        preferred_element_type=f32) + bb3.reshape(-1)
    return ln(nn_out + norm1, g2, be2)


def ref_encoder(x, layer_params, nhead, compute_dtype=jnp.float32):
    out = None
    for params in layer_params:          # faithful: only the last output counts
        out = ref_block(x, params, nhead, compute_dtype)
    return out


if __name__ == "__main__":
    # Small deterministic config.
    B, S = 2, 8
    embedding_size, n_layers, nhead, dropout, internal_size = 32, 2, 4, 0.0, 64

    root = jax.random.PRNGKey(0)
    kx, kp = jax.random.split(root)
    x = jax.random.normal(kx, (B, S, embedding_size), jnp.float32)

    layer_params = [
        init_block_params(jax.random.fold_in(kp, i),
                          embedding_size, nhead, internal_size)
        for i in range(n_layers)
    ]

    out = encoder_forward(x, layer_params, nhead)
    out = jax.block_until_ready(out)
    assert out.shape == (B, S, embedding_size)

    # Reference mirroring the kernel's numerics (bf16 matmul operands,
    # f32 accumulation) -- the tight correctness gate.
    ref_bf16 = ref_encoder(x, layer_params, nhead, compute_dtype=jnp.bfloat16)
    # Pure-f32 reference (PyTorch numerics) -- loose gate bounding the
    # deviation introduced by bf16 operands + approx reciprocal.
    ref_f32 = ref_encoder(x, layer_params, nhead, compute_dtype=jnp.float32)

    diff_bf = float(jnp.max(jnp.abs(out - ref_bf16)))
    diff_f32 = float(jnp.max(jnp.abs(out - ref_f32)))
    assert jnp.allclose(out, ref_bf16, atol=2e-2, rtol=2e-2), diff_bf
    assert jnp.allclose(out, ref_f32, atol=1.5e-1, rtol=1e-1), diff_f32

    print("KERNEL_OK")
</pallas_src>

<mosaic_0001>
module attributes {stable_mosaic.version = 11 : i64} {
  func.func @transf_block_kernel(%arg0: i32, %arg1: i32, %arg2: memref<1x8x32xf32, #tpu.memory_space<vmem>>, %arg3: memref<1x4x8x8xf32, #tpu.memory_space<vmem>>, %arg4: memref<1x4x8x8xf32, #tpu.memory_space<vmem>>, %arg5: memref<8x8xbf16, #tpu.memory_space<vmem>>, %arg6: memref<1x8xf32, #tpu.memory_space<vmem>>, %arg7: memref<8x8xbf16, #tpu.memory_space<vmem>>, %arg8: memref<1x8xf32, #tpu.memory_space<vmem>>, %arg9: memref<8x8xbf16, #tpu.memory_space<vmem>>, %arg10: memref<1x8xf32, #tpu.memory_space<vmem>>, %arg11: memref<4x8x32xbf16, #tpu.memory_space<vmem>>, %arg12: memref<1x32xf32, #tpu.memory_space<vmem>>, %arg13: memref<1x32xf32, #tpu.memory_space<vmem>>, %arg14: memref<1x32xf32, #tpu.memory_space<vmem>>, %arg15: memref<32x64xbf16, #tpu.memory_space<vmem>>, %arg16: memref<1x64xf32, #tpu.memory_space<vmem>>, %arg17: memref<64x64xbf16, #tpu.memory_space<vmem>>, %arg18: memref<1x64xf32, #tpu.memory_space<vmem>>, %arg19: memref<64x32xbf16, #tpu.memory_space<vmem>>, %arg20: memref<1x32xf32, #tpu.memory_space<vmem>>, %arg21: memref<1x32xf32, #tpu.memory_space<vmem>>, %arg22: memref<1x32xf32, #tpu.memory_space<vmem>>, %arg23: memref<1x8x32xf32, #tpu.memory_space<vmem>>) attributes {dimension_semantics = [#tpu.dimension_semantics<parallel>, #tpu.dimension_semantics<parallel>], iteration_bounds = array<i64: 2, 1>, scalar_prefetch = 0 : i64, scratch_operands = 0 : i64, tpu.core_type = #tpu.core_type<tc>, window_params = [{transform_indices = @transform_0, window_bounds = array<i64: 1, 8, 32>}, {transform_indices = @transform_1, window_bounds = array<i64: 1, 4, 8, 8>}, {transform_indices = @transform_2, window_bounds = array<i64: 1, 4, 8, 8>}, {pipeline_mode = #tpu.pipeline_mode<synchronous>, transform_indices = @transform_3, window_bounds = array<i64: 8, 8>}, {pipeline_mode = #tpu.pipeline_mode<synchronous>, transform_indices = @transform_4, window_bounds = array<i64: 1, 8>}, {pipeline_mode = #tpu.pipeline_mode<synchronous>, transform_indices = @transform_5, window_bounds = array<i64: 8, 8>}, {pipeline_mode = #tpu.pipeline_mode<synchronous>, transform_indices = @transform_6, window_bounds = array<i64: 1, 8>}, {pipeline_mode = #tpu.pipeline_mode<synchronous>, transform_indices = @transform_7, window_bounds = array<i64: 8, 8>}, {pipeline_mode = #tpu.pipeline_mode<synchronous>, transform_indices = @transform_8, window_bounds = array<i64: 1, 8>}, {pipeline_mode = #tpu.pipeline_mode<synchronous>, transform_indices = @transform_9, window_bounds = array<i64: 4, 8, 32>}, {pipeline_mode = #tpu.pipeline_mode<synchronous>, transform_indices = @transform_10, window_bounds = array<i64: 1, 32>}, {pipeline_mode = #tpu.pipeline_mode<synchronous>, transform_indices = @transform_11, window_bounds = array<i64: 1, 32>}, {pipeline_mode = #tpu.pipeline_mode<synchronous>, transform_indices = @transform_12, window_bounds = array<i64: 1, 32>}, {pipeline_mode = #tpu.pipeline_mode<synchronous>, transform_indices = @transform_13, window_bounds = array<i64: 32, 64>}, {pipeline_mode = #tpu.pipeline_mode<synchronous>, transform_indices = @transform_14, window_bounds = array<i64: 1, 64>}, {pipeline_mode = #tpu.pipeline_mode<synchronous>, transform_indices = @transform_15, window_bounds = array<i64: 64, 64>}, {pipeline_mode = #tpu.pipeline_mode<synchronous>, transform_indices = @transform_16, window_bounds = array<i64: 1, 64>}, {pipeline_mode = #tpu.pipeline_mode<synchronous>, transform_indices = @transform_17, window_bounds = array<i64: 64, 32>}, {pipeline_mode = #tpu.pipeline_mode<synchronous>, transform_indices = @transform_18, window_bounds = array<i64: 1, 32>}, {pipeline_mode = #tpu.pipeline_mode<synchronous>, transform_indices = @transform_19, window_bounds = array<i64: 1, 32>}, {pipeline_mode = #tpu.pipeline_mode<synchronous>, transform_indices = @transform_20, window_bounds = array<i64: 1, 32>}, {transform_indices = @transform_21, window_bounds = array<i64: 1, 8, 32>}]} {
    %c0 = arith.constant 0 : index
    %c0_0 = arith.constant 0 : index
    %c0_1 = arith.constant 0 : index
    %0 = vector.load %arg2[%c0, %c0_0, %c0_1] : memref<1x8x32xf32, #tpu.memory_space<vmem>>, vector<1x8x32xf32>
    %1 = vector.shape_cast %0 : vector<1x8x32xf32> to vector<8x32xf32>
    %c0_2 = arith.constant 0 : index
    %c0_3 = arith.constant 0 : index
    %c0_4 = arith.constant 0 : index
    %c0_5 = arith.constant 0 : index
    %2 = vector.load %arg3[%c0_2, %c0_3, %c0_4, %c0_5] : memref<1x4x8x8xf32, #tpu.memory_space<vmem>>, vector<1x4x8x8xf32>
    %3 = vector.shape_cast %2 : vector<1x4x8x8xf32> to vector<4x8x8xf32>
    %c0_6 = arith.constant 0 : index
    %c0_7 = arith.constant 0 : index
    %c0_8 = arith.constant 0 : index
    %c0_9 = arith.constant 0 : index
    %4 = vector.load %arg4[%c0_6, %c0_7, %c0_8, %c0_9] : memref<1x4x8x8xf32, #tpu.memory_space<vmem>>, vector<1x4x8x8xf32>
    %5 = vector.shape_cast %4 : vector<1x4x8x8xf32> to vector<4x8x8xf32>
    %6 = vector.shape_cast %3 : vector<4x8x8xf32> to vector<32x8xf32>
    %7 = arith.truncf %6 : vector<32x8xf32> to vector<32x8xbf16>
    %c0_10 = arith.constant 0 : index
    %c0_11 = arith.constant 0 : index
    %8 = vector.load %arg5[%c0_10, %c0_11] : memref<8x8xbf16, #tpu.memory_space<vmem>>, vector<8x8xbf16>
    %cst = arith.constant dense<0.000000e+00> : vector<32x8xf32>
    %9 = tpu.matmul %7, %8, %cst {dimension_numbers = #tpu.dot_dimension_numbers<[1], [0], [0], [1], [0, 0, 1, 1], [], []>} : vector<32x8xbf16>, vector<8x8xbf16>, vector<32x8xf32> -> vector<32x8xf32>
    %c0_12 = arith.constant 0 : index
    %c0_13 = arith.constant 0 : index
    %10 = vector.load %arg6[%c0_12, %c0_13] : memref<1x8xf32, #tpu.memory_space<vmem>>, vector<1x8xf32>
    %11 = vector.broadcast %10 : vector<1x8xf32> to vector<32x8xf32>
    %12 = arith.addf %9, %11 : vector<32x8xf32>
    %13 = vector.shape_cast %12 : vector<32x8xf32> to vector<4x8x8xf32>
    %14 = vector.shape_cast %5 : vector<4x8x8xf32> to vector<32x8xf32>
    %15 = arith.truncf %14 : vector<32x8xf32> to vector<32x8xbf16>
    %c0_14 = arith.constant 0 : index
    %c0_15 = arith.constant 0 : index
    %16 = vector.load %arg7[%c0_14, %c0_15] : memref<8x8xbf16, #tpu.memory_space<vmem>>, vector<8x8xbf16>
    %cst_16 = arith.constant dense<0.000000e+00> : vector<32x8xf32>
    %17 = tpu.matmul %15, %16, %cst_16 {dimension_numbers = #tpu.dot_dimension_numbers<[1], [0], [0], [1], [0, 0, 1, 1], [], []>} : vector<32x8xbf16>, vector<8x8xbf16>, vector<32x8xf32> -> vector<32x8xf32>
    %c0_17 = arith.constant 0 : index
    %c0_18 = arith.constant 0 : index
    %18 = vector.load %arg8[%c0_17, %c0_18] : memref<1x8xf32, #tpu.memory_space<vmem>>, vector<1x8xf32>
    %19 = vector.broadcast %18 : vector<1x8xf32> to vector<32x8xf32>
    %20 = arith.addf %17, %19 : vector<32x8xf32>
    %21 = vector.shape_cast %20 : vector<32x8xf32> to vector<4x8x8xf32>
    %22 = vector.shape_cast %5 : vector<4x8x8xf32> to vector<32x8xf32>
    %23 = arith.truncf %22 : vector<32x8xf32> to vector<32x8xbf16>
    %c0_19 = arith.constant 0 : index
    %c0_20 = arith.constant 0 : index
    %24 = vector.load %arg9[%c0_19, %c0_20] : memref<8x8xbf16, #tpu.memory_space<vmem>>, vector<8x8xbf16>
    %cst_21 = arith.constant dense<0.000000e+00> : vector<32x8xf32>
    %25 = tpu.matmul %23, %24, %cst_21 {dimension_numbers = #tpu.dot_dimension_numbers<[1], [0], [0], [1], [0, 0, 1, 1], [], []>} : vector<32x8xbf16>, vector<8x8xbf16>, vector<32x8xf32> -> vector<32x8xf32>
    %c0_22 = arith.constant 0 : index
    %c0_23 = arith.constant 0 : index
    %26 = vector.load %arg10[%c0_22, %c0_23] : memref<1x8xf32, #tpu.memory_space<vmem>>, vector<1x8xf32>
    %27 = vector.broadcast %26 : vector<1x8xf32> to vector<32x8xf32>
    %28 = arith.addf %25, %27 : vector<32x8xf32>
    %29 = vector.shape_cast %28 : vector<32x8xf32> to vector<4x8x8xf32>
    %30 = arith.truncf %13 : vector<4x8x8xf32> to vector<4x8x8xbf16>
    %31 = arith.truncf %21 : vector<4x8x8xf32> to vector<4x8x8xbf16>
    "tpu.trace_start"() <{level = 10 : i32, message = "hqd,hkd->hqk"}> : () -> ()
    %cst_24 = arith.constant dense<0.000000e+00> : vector<4x8x8xf32>
    %32 = tpu.matmul %30, %31, %cst_24 {dimension_numbers = #tpu.dot_dimension_numbers<[2], [2], [1], [1], [0, 0, 0, 1, 1, 1], [0], [0]>} : vector<4x8x8xbf16>, vector<4x8x8xbf16>, vector<4x8x8xf32> -> vector<4x8x8xf32>
    "tpu.trace_stop"() : () -> ()
    %cst_25 = arith.constant 0.353553385 : f32
    %33 = vector.broadcast %cst_25 : f32 to vector<4x8x8xf32>
    %34 = arith.mulf %32, %33 : vector<4x8x8xf32>
    %cst_26 = arith.constant dense<0xFF800000> : vector<4x8xf32>
    %35 = vector.multi_reduction <maximumf>, %34, %cst_26 [2] : vector<4x8x8xf32> to vector<4x8xf32>
    %36 = vector.shape_cast %35 : vector<4x8xf32> to vector<4x8x1xf32>
    %37 = vector.broadcast %36 : vector<4x8x1xf32> to vector<4x8x8xf32>
    %38 = arith.subf %34, %37 : vector<4x8x8xf32>
    %39 = math.exp %38 : vector<4x8x8xf32>
    %cst_27 = arith.constant dense<0.000000e+00> : vector<4x8xf32>
    %40 = vector.multi_reduction <add>, %39, %cst_27 [2] : vector<4x8x8xf32> to vector<4x8xf32>
    %41 = vector.shape_cast %40 : vector<4x8xf32> to vector<4x8x1xf32>
    %42 = tpu.reciprocal %41 {approx = true} : vector<4x8x1xf32> -> vector<4x8x1xf32>
    %43 = vector.broadcast %42 : vector<4x8x1xf32> to vector<4x8x8xf32>
    %44 = arith.mulf %39, %43 : vector<4x8x8xf32>
    %45 = arith.truncf %44 : vector<4x8x8xf32> to vector<4x8x8xbf16>
    %46 = arith.truncf %29 : vector<4x8x8xf32> to vector<4x8x8xbf16>
    "tpu.trace_start"() <{level = 10 : i32, message = "hqk,hkd->hqd"}> : () -> ()
    %cst_28 = arith.constant dense<0.000000e+00> : vector<4x8x8xf32>
    %47 = tpu.matmul %45, %46, %cst_28 {dimension_numbers = #tpu.dot_dimension_numbers<[2], [1], [1], [2], [0, 0, 0, 1, 1, 2], [0], [0]>} : vector<4x8x8xbf16>, vector<4x8x8xbf16>, vector<4x8x8xf32> -> vector<4x8x8xf32>
    "tpu.trace_stop"() : () -> ()
    %48 = vector.extract_strided_slice %47 {offsets = [0, 0, 0], sizes = [1, 8, 8], strides = [1, 1, 1]} : vector<4x8x8xf32> to vector<1x8x8xf32>
    %49 = vector.shape_cast %48 : vector<1x8x8xf32> to vector<8x8xf32>
    %50 = arith.truncf %49 : vector<8x8xf32> to vector<8x8xbf16>
    %c0_29 = arith.constant 0 : index
    %c0_30 = arith.constant 0 : index
    %c0_31 = arith.constant 0 : index
    %51 = vector.load %arg11[%c0_29, %c0_30, %c0_31] : memref<4x8x32xbf16, #tpu.memory_space<vmem>>, vector<1x8x32xbf16>
    %52 = vector.shape_cast %51 : vector<1x8x32xbf16> to vector<8x32xbf16>
    %cst_32 = arith.constant dense<0.000000e+00> : vector<8x32xf32>
    %53 = tpu.matmul %50, %52, %cst_32 {dimension_numbers = #tpu.dot_dimension_numbers<[1], [0], [0], [1], [0, 0, 1, 1], [], []>} : vector<8x8xbf16>, vector<8x32xbf16>, vector<8x32xf32> -> vector<8x32xf32>
    %54 = vector.extract_strided_slice %47 {offsets = [1, 0, 0], sizes = [1, 8, 8], strides = [1, 1, 1]} : vector<4x8x8xf32> to vector<1x8x8xf32>
    %55 = vector.shape_cast %54 : vector<1x8x8xf32> to vector<8x8xf32>
    %56 = arith.truncf %55 : vector<8x8xf32> to vector<8x8xbf16>
    %c1 = arith.constant 1 : index
    %c0_33 = arith.constant 0 : index
    %c0_34 = arith.constant 0 : index
    %57 = vector.load %arg11[%c1, %c0_33, %c0_34] : memref<4x8x32xbf16, #tpu.memory_space<vmem>>, vector<1x8x32xbf16>
    %58 = vector.shape_cast %57 : vector<1x8x32xbf16> to vector<8x32xbf16>
    %cst_35 = arith.constant dense<0.000000e+00> : vector<8x32xf32>
    %59 = tpu.matmul %56, %58, %cst_35 {dimension_numbers = #tpu.dot_dimension_numbers<[1], [0], [0], [1], [0, 0, 1, 1], [], []>} : vector<8x8xbf16>, vector<8x32xbf16>, vector<8x32xf32> -> vector<8x32xf32>
    %60 = arith.addf %53, %59 : vector<8x32xf32>
    %61 = vector.extract_strided_slice %47 {offsets = [2, 0, 0], sizes = [1, 8, 8], strides = [1, 1, 1]} : vector<4x8x8xf32> to vector<1x8x8xf32>
    %62 = vector.shape_cast %61 : vector<1x8x8xf32> to vector<8x8xf32>
    %63 = arith.truncf %62 : vector<8x8xf32> to vector<8x8xbf16>
    %c2 = arith.constant 2 : index
    %c0_36 = arith.constant 0 : index
    %c0_37 = arith.constant 0 : index
    %64 = vector.load %arg11[%c2, %c0_36, %c0_37] : memref<4x8x32xbf16, #tpu.memory_space<vmem>>, vector<1x8x32xbf16>
    %65 = vector.shape_cast %64 : vector<1x8x32xbf16> to vector<8x32xbf16>
    %cst_38 = arith.constant dense<0.000000e+00> : vector<8x32xf32>
    %66 = tpu.matmul %63, %65, %cst_38 {dimension_numbers = #tpu.dot_dimension_numbers<[1], [0], [0], [1], [0, 0, 1, 1], [], []>} : vector<8x8xbf16>, vector<8x32xbf16>, vector<8x32xf32> -> vector<8x32xf32>
    %67 = arith.addf %60, %66 : vector<8x32xf32>
    %68 = vector.extract_strided_slice %47 {offsets = [3, 0, 0], sizes = [1, 8, 8], strides = [1, 1, 1]} : vector<4x8x8xf32> to vector<1x8x8xf32>
    %69 = vector.shape_cast %68 : vector<1x8x8xf32> to vector<8x8xf32>
    %70 = arith.truncf %69 : vector<8x8xf32> to vector<8x8xbf16>
    %c3 = arith.constant 3 : index
    %c0_39 = arith.constant 0 : index
    %c0_40 = arith.constant 0 : index
    %71 = vector.load %arg11[%c3, %c0_39, %c0_40] : memref<4x8x32xbf16, #tpu.memory_space<vmem>>, vector<1x8x32xbf16>
    %72 = vector.shape_cast %71 : vector<1x8x32xbf16> to vector<8x32xbf16>
    %cst_41 = arith.constant dense<0.000000e+00> : vector<8x32xf32>
    %73 = tpu.matmul %70, %72, %cst_41 {dimension_numbers = #tpu.dot_dimension_numbers<[1], [0], [0], [1], [0, 0, 1, 1], [], []>} : vector<8x8xbf16>, vector<8x32xbf16>, vector<8x32xf32> -> vector<8x32xf32>
    %74 = arith.addf %67, %73 : vector<8x32xf32>
    %c0_42 = arith.constant 0 : index
    %c0_43 = arith.constant 0 : index
    %75 = vector.load %arg12[%c0_42, %c0_43] : memref<1x32xf32, #tpu.memory_space<vmem>>, vector<1x32xf32>
    %76 = vector.broadcast %75 : vector<1x32xf32> to vector<8x32xf32>
    %77 = arith.addf %74, %76 : vector<8x32xf32>
    %78 = arith.addf %77, %1 : vector<8x32xf32>
    %c0_44 = arith.constant 0 : index
    %c0_45 = arith.constant 0 : index
    %79 = vector.load %arg13[%c0_44, %c0_45] : memref<1x32xf32, #tpu.memory_space<vmem>>, vector<1x32xf32>
    %c0_46 = arith.constant 0 : index
    %c0_47 = arith.constant 0 : index
    %80 = vector.load %arg14[%c0_46, %c0_47] : memref<1x32xf32, #tpu.memory_space<vmem>>, vector<1x32xf32>
    %cst_48 = arith.constant dense<0.000000e+00> : vector<8xf32>
    %81 = vector.multi_reduction <add>, %78, %cst_48 [1] : vector<8x32xf32> to vector<8xf32>
    %82 = vector.shape_cast %81 : vector<8xf32> to vector<8x1xf32>
    %cst_49 = arith.constant 3.200000e+01 : f32
    %83 = vector.broadcast %cst_49 : f32 to vector<8x1xf32>
    %84 = arith.divf %82, %83 : vector<8x1xf32>
    %85 = vector.broadcast %84 : vector<8x1xf32> to vector<8x32xf32>
    %86 = arith.subf %78, %85 : vector<8x32xf32>
    %87 = arith.mulf %86, %86 : vector<8x32xf32>
    %cst_50 = arith.constant dense<0.000000e+00> : vector<8xf32>
    %88 = vector.multi_reduction <add>, %87, %cst_50 [1] : vector<8x32xf32> to vector<8xf32>
    %89 = vector.shape_cast %88 : vector<8xf32> to vector<8x1xf32>
    %cst_51 = arith.constant 3.200000e+01 : f32
    %90 = vector.broadcast %cst_51 : f32 to vector<8x1xf32>
    %91 = arith.divf %89, %90 : vector<8x1xf32>
    %92 = vector.broadcast %84 : vector<8x1xf32> to vector<8x32xf32>
    %93 = arith.subf %78, %92 : vector<8x32xf32>
    %cst_52 = arith.constant 9.99999974E-6 : f32
    %94 = vector.broadcast %cst_52 : f32 to vector<8x1xf32>
    %95 = arith.addf %91, %94 : vector<8x1xf32>
    %96 = math.rsqrt %95 : vector<8x1xf32>
    %97 = vector.broadcast %96 : vector<8x1xf32> to vector<8x32xf32>
    %98 = arith.mulf %93, %97 : vector<8x32xf32>
    %99 = vector.broadcast %79 : vector<1x32xf32> to vector<8x32xf32>
    %100 = arith.mulf %98, %99 : vector<8x32xf32>
    %101 = vector.broadcast %80 : vector<1x32xf32> to vector<8x32xf32>
    %102 = arith.addf %100, %101 : vector<8x32xf32>
    %103 = arith.truncf %102 : vector<8x32xf32> to vector<8x32xbf16>
    %c0_53 = arith.constant 0 : index
    %c0_54 = arith.constant 0 : index
    %104 = vector.load %arg15[%c0_53, %c0_54] : memref<32x64xbf16, #tpu.memory_space<vmem>>, vector<32x64xbf16>
    %cst_55 = arith.constant dense<0.000000e+00> : vector<8x64xf32>
    %105 = tpu.matmul %103, %104, %cst_55 {dimension_numbers = #tpu.dot_dimension_numbers<[1], [0], [0], [1], [0, 0, 1, 1], [], []>} : vector<8x32xbf16>, vector<32x64xbf16>, vector<8x64xf32> -> vector<8x64xf32>
    %c0_56 = arith.constant 0 : index
    %c0_57 = arith.constant 0 : index
    %106 = vector.load %arg16[%c0_56, %c0_57] : memref<1x64xf32, #tpu.memory_space<vmem>>, vector<1x64xf32>
    %107 = vector.broadcast %106 : vector<1x64xf32> to vector<8x64xf32>
    %108 = arith.addf %105, %107 : vector<8x64xf32>
    %cst_58 = arith.constant 0.000000e+00 : f32
    %109 = vector.broadcast %cst_58 : f32 to vector<8x64xf32>
    %110 = arith.maximumf %108, %109 : vector<8x64xf32>
    %111 = arith.truncf %110 : vector<8x64xf32> to vector<8x64xbf16>
    %c0_59 = arith.constant 0 : index
    %c0_60 = arith.constant 0 : index
    %112 = vector.load %arg17[%c0_59, %c0_60] : memref<64x64xbf16, #tpu.memory_space<vmem>>, vector<64x64xbf16>
    %cst_61 = arith.constant dense<0.000000e+00> : vector<8x64xf32>
    %113 = tpu.matmul %111, %112, %cst_61 {dimension_numbers = #tpu.dot_dimension_numbers<[1], [0], [0], [1], [0, 0, 1, 1], [], []>} : vector<8x64xbf16>, vector<64x64xbf16>, vector<8x64xf32> -> vector<8x64xf32>
    %c0_62 = arith.constant 0 : index
    %c0_63 = arith.constant 0 : index
    %114 = vector.load %arg18[%c0_62, %c0_63] : memref<1x64xf32, #tpu.memory_space<vmem>>, vector<1x64xf32>
    %115 = vector.broadcast %114 : vector<1x64xf32> to vector<8x64xf32>
    %116 = arith.addf %113, %115 : vector<8x64xf32>
    %cst_64 = arith.constant 0.000000e+00 : f32
    %117 = vector.broadcast %cst_64 : f32 to vector<8x64xf32>
    %118 = arith.maximumf %116, %117 : vector<8x64xf32>
    %119 = arith.truncf %118 : vector<8x64xf32> to vector<8x64xbf16>
    %c0_65 = arith.constant 0 : index
    %c0_66 = arith.constant 0 : index
    %120 = vector.load %arg19[%c0_65, %c0_66] : memref<64x32xbf16, #tpu.memory_space<vmem>>, vector<64x32xbf16>
    %cst_67 = arith.constant dense<0.000000e+00> : vector<8x32xf32>
    %121 = tpu.matmul %119, %120, %cst_67 {dimension_numbers = #tpu.dot_dimension_numbers<[1], [0], [0], [1], [0, 0, 1, 1], [], []>} : vector<8x64xbf16>, vector<64x32xbf16>, vector<8x32xf32> -> vector<8x32xf32>
    %c0_68 = arith.constant 0 : index
    %c0_69 = arith.constant 0 : index
    %122 = vector.load %arg20[%c0_68, %c0_69] : memref<1x32xf32, #tpu.memory_space<vmem>>, vector<1x32xf32>
    %123 = vector.broadcast %122 : vector<1x32xf32> to vector<8x32xf32>
    %124 = arith.addf %121, %123 : vector<8x32xf32>
    %125 = arith.addf %124, %102 : vector<8x32xf32>
    %c0_70 = arith.constant 0 : index
    %c0_71 = arith.constant 0 : index
    %126 = vector.load %arg21[%c0_70, %c0_71] : memref<1x32xf32, #tpu.memory_space<vmem>>, vector<1x32xf32>
    %c0_72 = arith.constant 0 : index
    %c0_73 = arith.constant 0 : index
    %127 = vector.load %arg22[%c0_72, %c0_73] : memref<1x32xf32, #tpu.memory_space<vmem>>, vector<1x32xf32>
    %cst_74 = arith.constant dense<0.000000e+00> : vector<8xf32>
    %128 = vector.multi_reduction <add>, %125, %cst_74 [1] : vector<8x32xf32> to vector<8xf32>
    %129 = vector.shape_cast %128 : vector<8xf32> to vector<8x1xf32>
    %cst_75 = arith.constant 3.200000e+01 : f32
    %130 = vector.broadcast %cst_75 : f32 to vector<8x1xf32>
    %131 = arith.divf %129, %130 : vector<8x1xf32>
    %132 = vector.broadcast %131 : vector<8x1xf32> to vector<8x32xf32>
    %133 = arith.subf %125, %132 : vector<8x32xf32>
    %134 = arith.mulf %133, %133 : vector<8x32xf32>
    %cst_76 = arith.constant dense<0.000000e+00> : vector<8xf32>
    %135 = vector.multi_reduction <add>, %134, %cst_76 [1] : vector<8x32xf32> to vector<8xf32>
    %136 = vector.shape_cast %135 : vector<8xf32> to vector<8x1xf32>
    %cst_77 = arith.constant 3.200000e+01 : f32
    %137 = vector.broadcast %cst_77 : f32 to vector<8x1xf32>
    %138 = arith.divf %136, %137 : vector<8x1xf32>
    %139 = vector.broadcast %131 : vector<8x1xf32> to vector<8x32xf32>
    %140 = arith.subf %125, %139 : vector<8x32xf32>
    %cst_78 = arith.constant 9.99999974E-6 : f32
    %141 = vector.broadcast %cst_78 : f32 to vector<8x1xf32>
    %142 = arith.addf %138, %141 : vector<8x1xf32>
    %143 = math.rsqrt %142 : vector<8x1xf32>
    %144 = vector.broadcast %143 : vector<8x1xf32> to vector<8x32xf32>
    %145 = arith.mulf %140, %144 : vector<8x32xf32>
    %146 = vector.broadcast %126 : vector<1x32xf32> to vector<8x32xf32>
    %147 = arith.mulf %145, %146 : vector<8x32xf32>
    %148 = vector.broadcast %127 : vector<1x32xf32> to vector<8x32xf32>
    %149 = arith.addf %147, %148 : vector<8x32xf32>
    %c0_79 = arith.constant 0 : index
    %c0_80 = arith.constant 0 : index
    %c0_81 = arith.constant 0 : index
    %150 = vector.load %arg23[%c0_79, %c0_80, %c0_81] : memref<1x8x32xf32, #tpu.memory_space<vmem>>, vector<1x8x32xf32>
    %151 = vector.shape_cast %150 : vector<1x8x32xf32> to vector<8x32xf32>
    %152 = vector.shape_cast %149 : vector<8x32xf32> to vector<1x8x32xf32>
    tpu.vector_store %arg23[%c0_79, %c0_80, %c0_81], %152 {strides = array<i32>} : memref<1x8x32xf32, #tpu.memory_space<vmem>>, vector<1x8x32xf32>,
    return
  }
  func.func @transform_0(%arg0: i32, %arg1: i32) -> (i32, i32, i32) {
    %c0_i32 = arith.constant 0 : i32
    %c0_i32_0 = arith.constant 0 : i32
    return %arg0, %arg1, %c0_i32 : i32, i32, i32
  }
  func.func @transform_1(%arg0: i32, %arg1: i32) -> (i32, i32, i32, i32) {
    %c0_i32 = arith.constant 0 : i32
    %c0_i32_0 = arith.constant 0 : i32
    %c0_i32_1 = arith.constant 0 : i32
    return %arg0, %c0_i32, %arg1, %c0_i32_0 : i32, i32, i32, i32
  }
  func.func @transform_2(%arg0: i32, %arg1: i32) -> (i32, i32, i32, i32) {
    %c0_i32 = arith.constant 0 : i32
    %c0_i32_0 = arith.constant 0 : i32
    %c0_i32_1 = arith.constant 0 : i32
    %c0_i32_2 = arith.constant 0 : i32
    return %arg0, %c0_i32, %c0_i32_0, %c0_i32_1 : i32, i32, i32, i32
  }
  func.func @transform_3(%arg0: i32, %arg1: i32) -> (i32, i32) {
    %c0_i32 = arith.constant 0 : i32
    %c0_i32_0 = arith.constant 0 : i32
    %c0_i32_1 = arith.constant 0 : i32
    return %c0_i32, %c0_i32_0 : i32, i32
  }
  func.func @transform_4(%arg0: i32, %arg1: i32) -> (i32, i32) {
    %c0_i32 = arith.constant 0 : i32
    %c0_i32_0 = arith.constant 0 : i32
    %c0_i32_1 = arith.constant 0 : i32
    return %c0_i32, %c0_i32_0 : i32, i32
  }
  func.func @transform_5(%arg0: i32, %arg1: i32) -> (i32, i32) {
    %c0_i32 = arith.constant 0 : i32
    %c0_i32_0 = arith.constant 0 : i32
    %c0_i32_1 = arith.constant 0 : i32
    return %c0_i32, %c0_i32_0 : i32, i32
  }
  func.func @transform_6(%arg0: i32, %arg1: i32) -> (i32, i32) {
    %c0_i32 = arith.constant 0 : i32
    %c0_i32_0 = arith.constant 0 : i32
    %c0_i32_1 = arith.constant 0 : i32
    return %c0_i32, %c0_i32_0 : i32, i32
  }
  func.func @transform_7(%arg0: i32, %arg1: i32) -> (i32, i32) {
    %c0_i32 = arith.constant 0 : i32
    %c0_i32_0 = arith.constant 0 : i32
    %c0_i32_1 = arith.constant 0 : i32
    return %c0_i32, %c0_i32_0 : i32, i32
  }
  func.func @transform_8(%arg0: i32, %arg1: i32) -> (i32, i32) {
    %c0_i32 = arith.constant 0 : i32
    %c0_i32_0 = arith.constant 0 : i32
    %c0_i32_1 = arith.constant 0 : i32
    return %c0_i32, %c0_i32_0 : i32, i32
  }
  func.func @transform_9(%arg0: i32, %arg1: i32) -> (i32, i32, i32) {
    %c0_i32 = arith.constant 0 : i32
    %c0_i32_0 = arith.constant 0 : i32
    %c0_i32_1 = arith.constant 0 : i32
    %c0_i32_2 = arith.constant 0 : i32
    return %c0_i32, %c0_i32_0, %c0_i32_1 : i32, i32, i32
  }
  func.func @transform_10(%arg0: i32, %arg1: i32) -> (i32, i32) {
    %c0_i32 = arith.constant 0 : i32
    %c0_i32_0 = arith.constant 0 : i32
    %c0_i32_1 = arith.constant 0 : i32
    return %c0_i32, %c0_i32_0 : i32, i32
  }
  func.func @transform_11(%arg0: i32, %arg1: i32) -> (i32, i32) {
    %c0_i32 = arith.constant 0 : i32
    %c0_i32_0 = arith.constant 0 : i32
    %c0_i32_1 = arith.constant 0 : i32
    return %c0_i32, %c0_i32_0 : i32, i32
  }
  func.func @transform_12(%arg0: i32, %arg1: i32) -> (i32, i32) {
    %c0_i32 = arith.constant 0 : i32
    %c0_i32_0 = arith.constant 0 : i32
    %c0_i32_1 = arith.constant 0 : i32
    return %c0_i32, %c0_i32_0 : i32, i32
  }
  func.func @transform_13(%arg0: i32, %arg1: i32) -> (i32, i32) {
    %c0_i32 = arith.constant 0 : i32
    %c0_i32_0 = arith.constant 0 : i32
    %c0_i32_1 = arith.constant 0 : i32
    return %c0_i32, %c0_i32_0 : i32, i32
  }
  func.func @transform_14(%arg0: i32, %arg1: i32) -> (i32, i32) {
    %c0_i32 = arith.constant 0 : i32
    %c0_i32_0 = arith.constant 0 : i32
    %c0_i32_1 = arith.constant 0 : i32
    return %c0_i32, %c0_i32_0 : i32, i32
  }
  func.func @transform_15(%arg0: i32, %arg1: i32) -> (i32, i32) {
    %c0_i32 = arith.constant 0 : i32
    %c0_i32_0 = arith.constant 0 : i32
    %c0_i32_1 = arith.constant 0 : i32
    return %c0_i32, %c0_i32_0 : i32, i32
  }
  func.func @transform_16(%arg0: i32, %arg1: i32) -> (i32, i32) {
    %c0_i32 = arith.constant 0 : i32
    %c0_i32_0 = arith.constant 0 : i32
    %c0_i32_1 = arith.constant 0 : i32
    return %c0_i32, %c0_i32_0 : i32, i32
  }
  func.func @transform_17(%arg0: i32, %arg1: i32) -> (i32, i32) {
    %c0_i32 = arith.constant 0 : i32
    %c0_i32_0 = arith.constant 0 : i32
    %c0_i32_1 = arith.constant 0 : i32
    return %c0_i32, %c0_i32_0 : i32, i32
  }
  func.func @transform_18(%arg0: i32, %arg1: i32) -> (i32, i32) {
    %c0_i32 = arith.constant 0 : i32
    %c0_i32_0 = arith.constant 0 : i32
    %c0_i32_1 = arith.constant 0 : i32
    return %c0_i32, %c0_i32_0 : i32, i32
  }
  func.func @transform_19(%arg0: i32, %arg1: i32) -> (i32, i32) {
    %c0_i32 = arith.constant 0 : i32
    %c0_i32_0 = arith.constant 0 : i32
    %c0_i32_1 = arith.constant 0 : i32
    return %c0_i32, %c0_i32_0 : i32, i32
  }
  func.func @transform_20(%arg0: i32, %arg1: i32) -> (i32, i32) {
    %c0_i32 = arith.constant 0 : i32
    %c0_i32_0 = arith.constant 0 : i32
    %c0_i32_1 = arith.constant 0 : i32
    return %c0_i32, %c0_i32_0 : i32, i32
  }
  func.func @transform_21(%arg0: i32, %arg1: i32) -> (i32, i32, i32) {
    %c0_i32 = arith.constant 0 : i32
    %c0_i32_0 = arith.constant 0 : i32
    return %arg0, %arg1, %c0_i32 : i32, i32, i32
  }
}

module attributes {stable_mosaic.version = 11 : i64} {
  func.func @transf_block_kernel(%arg0: i32, %arg1: i32, %arg2: memref<1x8x32xf32, #tpu.memory_space<vmem>>, %arg3: memref<1x4x8x8xf32, #tpu.memory_space<vmem>>, %arg4: memref<1x4x8x8xf32, #tpu.memory_space<vmem>>, %arg5: memref<8x8xbf16, #tpu.memory_space<vmem>>, %arg6: memref<1x8xf32, #tpu.memory_space<vmem>>, %arg7: memref<8x8xbf16, #tpu.memory_space<vmem>>, %arg8: memref<1x8xf32, #tpu.memory_space<vmem>>, %arg9: memref<8x8xbf16, #tpu.memory_space<vmem>>, %arg10: memref<1x8xf32, #tpu.memory_space<vmem>>, %arg11: memref<4x8x32xbf16, #tpu.memory_space<vmem>>, %arg12: memref<1x32xf32, #tpu.memory_space<vmem>>, %arg13: memref<1x32xf32, #tpu.memory_space<vmem>>, %arg14: memref<1x32xf32, #tpu.memory_space<vmem>>, %arg15: memref<32x64xbf16, #tpu.memory_space<vmem>>, %arg16: memref<1x64xf32, #tpu.memory_space<vmem>>, %arg17: memref<64x64xbf16, #tpu.memory_space<vmem>>, %arg18: memref<1x64xf32, #tpu.memory_space<vmem>>, %arg19: memref<64x32xbf16, #tpu.memory_space<vmem>>, %arg20: memref<1x32xf32, #tpu.memory_space<vmem>>, %arg21: memref<1x32xf32, #tpu.memory_space<vmem>>, %arg22: memref<1x32xf32, #tpu.memory_space<vmem>>, %arg23: memref<1x8x32xf32, #tpu.memory_space<vmem>>) attributes {dimension_semantics = [#tpu.dimension_semantics<parallel>, #tpu.dimension_semantics<parallel>], iteration_bounds = array<i64: 2, 1>, scalar_prefetch = 0 : i64, scratch_operands = 0 : i64, tpu.core_type = #tpu.core_type<tc>, window_params = [{transform_indices = @transform_0, window_bounds = array<i64: 1, 8, 32>}, {transform_indices = @transform_1, window_bounds = array<i64: 1, 4, 8, 8>}, {transform_indices = @transform_2, window_bounds = array<i64: 1, 4, 8, 8>}, {pipeline_mode = #tpu.pipeline_mode<synchronous>, transform_indices = @transform_3, window_bounds = array<i64: 8, 8>}, {pipeline_mode = #tpu.pipeline_mode<synchronous>, transform_indices = @transform_4, window_bounds = array<i64: 1, 8>}, {pipeline_mode = #tpu.pipeline_mode<synchronous>, transform_indices = @transform_5, window_bounds = array<i64: 8, 8>}, {pipeline_mode = #tpu.pipeline_mode<synchronous>, transform_indices = @transform_6, window_bounds = array<i64: 1, 8>}, {pipeline_mode = #tpu.pipeline_mode<synchronous>, transform_indices = @transform_7, window_bounds = array<i64: 8, 8>}, {pipeline_mode = #tpu.pipeline_mode<synchronous>, transform_indices = @transform_8, window_bounds = array<i64: 1, 8>}, {pipeline_mode = #tpu.pipeline_mode<synchronous>, transform_indices = @transform_9, window_bounds = array<i64: 4, 8, 32>}, {pipeline_mode = #tpu.pipeline_mode<synchronous>, transform_indices = @transform_10, window_bounds = array<i64: 1, 32>}, {pipeline_mode = #tpu.pipeline_mode<synchronous>, transform_indices = @transform_11, window_bounds = array<i64: 1, 32>}, {pipeline_mode = #tpu.pipeline_mode<synchronous>, transform_indices = @transform_12, window_bounds = array<i64: 1, 32>}, {pipeline_mode = #tpu.pipeline_mode<synchronous>, transform_indices = @transform_13, window_bounds = array<i64: 32, 64>}, {pipeline_mode = #tpu.pipeline_mode<synchronous>, transform_indices = @transform_14, window_bounds = array<i64: 1, 64>}, {pipeline_mode = #tpu.pipeline_mode<synchronous>, transform_indices = @transform_15, window_bounds = array<i64: 64, 64>}, {pipeline_mode = #tpu.pipeline_mode<synchronous>, transform_indices = @transform_16, window_bounds = array<i64: 1, 64>}, {pipeline_mode = #tpu.pipeline_mode<synchronous>, transform_indices = @transform_17, window_bounds = array<i64: 64, 32>}, {pipeline_mode = #tpu.pipeline_mode<synchronous>, transform_indices = @transform_18, window_bounds = array<i64: 1, 32>}, {pipeline_mode = #tpu.pipeline_mode<synchronous>, transform_indices = @transform_19, window_bounds = array<i64: 1, 32>}, {pipeline_mode = #tpu.pipeline_mode<synchronous>, transform_indices = @transform_20, window_bounds = array<i64: 1, 32>}, {transform_indices = @transform_21, window_bounds = array<i64: 1, 8, 32>}]} {
    %c0 = arith.constant 0 : index
    %c0_0 = arith.constant 0 : index
    %c0_1 = arith.constant 0 : index
    %0 = vector.load %arg2[%c0, %c0_0, %c0_1] : memref<1x8x32xf32, #tpu.memory_space<vmem>>, vector<1x8x32xf32>
    %1 = vector.shape_cast %0 : vector<1x8x32xf32> to vector<8x32xf32>
    %c0_2 = arith.constant 0 : index
    %c0_3 = arith.constant 0 : index
    %c0_4 = arith.constant 0 : index
    %c0_5 = arith.constant 0 : index
    %2 = vector.load %arg3[%c0_2, %c0_3, %c0_4, %c0_5] : memref<1x4x8x8xf32, #tpu.memory_space<vmem>>, vector<1x4x8x8xf32>
    %3 = vector.shape_cast %2 : vector<1x4x8x8xf32> to vector<4x8x8xf32>
    %c0_6 = arith.constant 0 : index
    %c0_7 = arith.constant 0 : index
    %c0_8 = arith.constant 0 : index
    %c0_9 = arith.constant 0 : index
    %4 = vector.load %arg4[%c0_6, %c0_7, %c0_8, %c0_9] : memref<1x4x8x8xf32, #tpu.memory_space<vmem>>, vector<1x4x8x8xf32>
    %5 = vector.shape_cast %4 : vector<1x4x8x8xf32> to vector<4x8x8xf32>
    %6 = vector.shape_cast %3 : vector<4x8x8xf32> to vector<32x8xf32>
    %7 = arith.truncf %6 : vector<32x8xf32> to vector<32x8xbf16>
    %c0_10 = arith.constant 0 : index
    %c0_11 = arith.constant 0 : index
    %8 = vector.load %arg5[%c0_10, %c0_11] : memref<8x8xbf16, #tpu.memory_space<vmem>>, vector<8x8xbf16>
    %cst = arith.constant dense<0.000000e+00> : vector<32x8xf32>
    %9 = tpu.matmul %7, %8, %cst {dimension_numbers = #tpu.dot_dimension_numbers<[1], [0], [0], [1], [0, 0, 1, 1], [], []>} : vector<32x8xbf16>, vector<8x8xbf16>, vector<32x8xf32> -> vector<32x8xf32>
    %c0_12 = arith.constant 0 : index
    %c0_13 = arith.constant 0 : index
    %10 = vector.load %arg6[%c0_12, %c0_13] : memref<1x8xf32, #tpu.memory_space<vmem>>, vector<1x8xf32>
    %11 = vector.broadcast %10 : vector<1x8xf32> to vector<32x8xf32>
    %12 = arith.addf %9, %11 : vector<32x8xf32>
    %13 = vector.shape_cast %12 : vector<32x8xf32> to vector<4x8x8xf32>
    %14 = vector.shape_cast %5 : vector<4x8x8xf32> to vector<32x8xf32>
    %15 = arith.truncf %14 : vector<32x8xf32> to vector<32x8xbf16>
    %c0_14 = arith.constant 0 : index
    %c0_15 = arith.constant 0 : index
    %16 = vector.load %arg7[%c0_14, %c0_15] : memref<8x8xbf16, #tpu.memory_space<vmem>>, vector<8x8xbf16>
    %cst_16 = arith.constant dense<0.000000e+00> : vector<32x8xf32>
    %17 = tpu.matmul %15, %16, %cst_16 {dimension_numbers = #tpu.dot_dimension_numbers<[1], [0], [0], [1], [0, 0, 1, 1], [], []>} : vector<32x8xbf16>, vector<8x8xbf16>, vector<32x8xf32> -> vector<32x8xf32>
    %c0_17 = arith.constant 0 : index
    %c0_18 = arith.constant 0 : index
    %18 = vector.load %arg8[%c0_17, %c0_18] : memref<1x8xf32, #tpu.memory_space<vmem>>, vector<1x8xf32>
    %19 = vector.broadcast %18 : vector<1x8xf32> to vector<32x8xf32>
    %20 = arith.addf %17, %19 : vector<32x8xf32>
    %21 = vector.shape_cast %20 : vector<32x8xf32> to vector<4x8x8xf32>
    %22 = vector.shape_cast %5 : vector<4x8x8xf32> to vector<32x8xf32>
    %23 = arith.truncf %22 : vector<32x8xf32> to vector<32x8xbf16>
    %c0_19 = arith.constant 0 : index
    %c0_20 = arith.constant 0 : index
    %24 = vector.load %arg9[%c0_19, %c0_20] : memref<8x8xbf16, #tpu.memory_space<vmem>>, vector<8x8xbf16>
    %cst_21 = arith.constant dense<0.000000e+00> : vector<32x8xf32>
    %25 = tpu.matmul %23, %24, %cst_21 {dimension_numbers = #tpu.dot_dimension_numbers<[1], [0], [0], [1], [0, 0, 1, 1], [], []>} : vector<32x8xbf16>, vector<8x8xbf16>, vector<32x8xf32> -> vector<32x8xf32>
    %c0_22 = arith.constant 0 : index
    %c0_23 = arith.constant 0 : index
    %26 = vector.load %arg10[%c0_22, %c0_23] : memref<1x8xf32, #tpu.memory_space<vmem>>, vector<1x8xf32>
    %27 = vector.broadcast %26 : vector<1x8xf32> to vector<32x8xf32>
    %28 = arith.addf %25, %27 : vector<32x8xf32>
    %29 = vector.shape_cast %28 : vector<32x8xf32> to vector<4x8x8xf32>
    %30 = arith.truncf %13 : vector<4x8x8xf32> to vector<4x8x8xbf16>
    %31 = arith.truncf %21 : vector<4x8x8xf32> to vector<4x8x8xbf16>
    "tpu.trace_start"() <{level = 10 : i32, message = "hqd,hkd->hqk"}> : () -> ()
    %cst_24 = arith.constant dense<0.000000e+00> : vector<4x8x8xf32>
    %32 = tpu.matmul %30, %31, %cst_24 {dimension_numbers = #tpu.dot_dimension_numbers<[2], [2], [1], [1], [0, 0, 0, 1, 1, 1], [0], [0]>} : vector<4x8x8xbf16>, vector<4x8x8xbf16>, vector<4x8x8xf32> -> vector<4x8x8xf32>
    "tpu.trace_stop"() : () -> ()
    %cst_25 = arith.constant 0.353553385 : f32
    %33 = vector.broadcast %cst_25 : f32 to vector<4x8x8xf32>
    %34 = arith.mulf %32, %33 : vector<4x8x8xf32>
    %cst_26 = arith.constant dense<0xFF800000> : vector<4x8xf32>
    %35 = vector.multi_reduction <maximumf>, %34, %cst_26 [2] : vector<4x8x8xf32> to vector<4x8xf32>
    %36 = vector.shape_cast %35 : vector<4x8xf32> to vector<4x8x1xf32>
    %37 = vector.broadcast %36 : vector<4x8x1xf32> to vector<4x8x8xf32>
    %38 = arith.subf %34, %37 : vector<4x8x8xf32>
    %39 = math.exp %38 : vector<4x8x8xf32>
    %cst_27 = arith.constant dense<0.000000e+00> : vector<4x8xf32>
    %40 = vector.multi_reduction <add>, %39, %cst_27 [2] : vector<4x8x8xf32> to vector<4x8xf32>
    %41 = vector.shape_cast %40 : vector<4x8xf32> to vector<4x8x1xf32>
    %42 = tpu.reciprocal %41 {approx = true} : vector<4x8x1xf32> -> vector<4x8x1xf32>
    %43 = vector.broadcast %42 : vector<4x8x1xf32> to vector<4x8x8xf32>
    %44 = arith.mulf %39, %43 : vector<4x8x8xf32>
    %45 = arith.truncf %44 : vector<4x8x8xf32> to vector<4x8x8xbf16>
    %46 = arith.truncf %29 : vector<4x8x8xf32> to vector<4x8x8xbf16>
    "tpu.trace_start"() <{level = 10 : i32, message = "hqk,hkd->hqd"}> : () -> ()
    %cst_28 = arith.constant dense<0.000000e+00> : vector<4x8x8xf32>
    %47 = tpu.matmul %45, %46, %cst_28 {dimension_numbers = #tpu.dot_dimension_numbers<[2], [1], [1], [2], [0, 0, 0, 1, 1, 2], [0], [0]>} : vector<4x8x8xbf16>, vector<4x8x8xbf16>, vector<4x8x8xf32> -> vector<4x8x8xf32>
    "tpu.trace_stop"() : () -> ()
    %48 = vector.extract_strided_slice %47 {offsets = [0, 0, 0], sizes = [1, 8, 8], strides = [1, 1, 1]} : vector<4x8x8xf32> to vector<1x8x8xf32>
    %49 = vector.shape_cast %48 : vector<1x8x8xf32> to vector<8x8xf32>
    %50 = arith.truncf %49 : vector<8x8xf32> to vector<8x8xbf16>
    %c0_29 = arith.constant 0 : index
    %c0_30 = arith.constant 0 : index
    %c0_31 = arith.constant 0 : index
    %51 = vector.load %arg11[%c0_29, %c0_30, %c0_31] : memref<4x8x32xbf16, #tpu.memory_space<vmem>>, vector<1x8x32xbf16>
    %52 = vector.shape_cast %51 : vector<1x8x32xbf16> to vector<8x32xbf16>
    %cst_32 = arith.constant dense<0.000000e+00> : vector<8x32xf32>
    %53 = tpu.matmul %50, %52, %cst_32 {dimension_numbers = #tpu.dot_dimension_numbers<[1], [0], [0], [1], [0, 0, 1, 1], [], []>} : vector<8x8xbf16>, vector<8x32xbf16>, vector<8x32xf32> -> vector<8x32xf32>
    %54 = vector.extract_strided_slice %47 {offsets = [1, 0, 0], sizes = [1, 8, 8], strides = [1, 1, 1]} : vector<4x8x8xf32> to vector<1x8x8xf32>
    %55 = vector.shape_cast %54 : vector<1x8x8xf32> to vector<8x8xf32>
    %56 = arith.truncf %55 : vector<8x8xf32> to vector<8x8xbf16>
    %c1 = arith.constant 1 : index
    %c0_33 = arith.constant 0 : index
    %c0_34 = arith.constant 0 : index
    %57 = vector.load %arg11[%c1, %c0_33, %c0_34] : memref<4x8x32xbf16, #tpu.memory_space<vmem>>, vector<1x8x32xbf16>
    %58 = vector.shape_cast %57 : vector<1x8x32xbf16> to vector<8x32xbf16>
    %cst_35 = arith.constant dense<0.000000e+00> : vector<8x32xf32>
    %59 = tpu.matmul %56, %58, %cst_35 {dimension_numbers = #tpu.dot_dimension_numbers<[1], [0], [0], [1], [0, 0, 1, 1], [], []>} : vector<8x8xbf16>, vector<8x32xbf16>, vector<8x32xf32> -> vector<8x32xf32>
    %60 = arith.addf %53, %59 : vector<8x32xf32>
    %61 = vector.extract_strided_slice %47 {offsets = [2, 0, 0], sizes = [1, 8, 8], strides = [1, 1, 1]} : vector<4x8x8xf32> to vector<1x8x8xf32>
    %62 = vector.shape_cast %61 : vector<1x8x8xf32> to vector<8x8xf32>
    %63 = arith.truncf %62 : vector<8x8xf32> to vector<8x8xbf16>
    %c2 = arith.constant 2 : index
    %c0_36 = arith.constant 0 : index
    %c0_37 = arith.constant 0 : index
    %64 = vector.load %arg11[%c2, %c0_36, %c0_37] : memref<4x8x32xbf16, #tpu.memory_space<vmem>>, vector<1x8x32xbf16>
    %65 = vector.shape_cast %64 : vector<1x8x32xbf16> to vector<8x32xbf16>
    %cst_38 = arith.constant dense<0.000000e+00> : vector<8x32xf32>
    %66 = tpu.matmul %63, %65, %cst_38 {dimension_numbers = #tpu.dot_dimension_numbers<[1], [0], [0], [1], [0, 0, 1, 1], [], []>} : vector<8x8xbf16>, vector<8x32xbf16>, vector<8x32xf32> -> vector<8x32xf32>
    %67 = arith.addf %60, %66 : vector<8x32xf32>
    %68 = vector.extract_strided_slice %47 {offsets = [3, 0, 0], sizes = [1, 8, 8], strides = [1, 1, 1]} : vector<4x8x8xf32> to vector<1x8x8xf32>
    %69 = vector.shape_cast %68 : vector<1x8x8xf32> to vector<8x8xf32>
    %70 = arith.truncf %69 : vector<8x8xf32> to vector<8x8xbf16>
    %c3 = arith.constant 3 : index
    %c0_39 = arith.constant 0 : index
    %c0_40 = arith.constant 0 : index
    %71 = vector.load %arg11[%c3, %c0_39, %c0_40] : memref<4x8x32xbf16, #tpu.memory_space<vmem>>, vector<1x8x32xbf16>
    %72 = vector.shape_cast %71 : vector<1x8x32xbf16> to vector<8x32xbf16>
    %cst_41 = arith.constant dense<0.000000e+00> : vector<8x32xf32>
    %73 = tpu.matmul %70, %72, %cst_41 {dimension_numbers = #tpu.dot_dimension_numbers<[1], [0], [0], [1], [0, 0, 1, 1], [], []>} : vector<8x8xbf16>, vector<8x32xbf16>, vector<8x32xf32> -> vector<8x32xf32>
    %74 = arith.addf %67, %73 : vector<8x32xf32>
    %c0_42 = arith.constant 0 : index
    %c0_43 = arith.constant 0 : index
    %75 = vector.load %arg12[%c0_42, %c0_43] : memref<1x32xf32, #tpu.memory_space<vmem>>, vector<1x32xf32>
    %76 = vector.broadcast %75 : vector<1x32xf32> to vector<8x32xf32>
    %77 = arith.addf %74, %76 : vector<8x32xf32>
    %78 = arith.addf %77, %1 : vector<8x32xf32>
    %c0_44 = arith.constant 0 : index
    %c0_45 = arith.constant 0 : index
    %79 = vector.load %arg13[%c0_44, %c0_45] : memref<1x32xf32, #tpu.memory_space<vmem>>, vector<1x32xf32>
    %c0_46 = arith.constant 0 : index
    %c0_47 = arith.constant 0 : index
    %80 = vector.load %arg14[%c0_46, %c0_47] : memref<1x32xf32, #tpu.memory_space<vmem>>, vector<1x32xf32>
    %cst_48 = arith.constant dense<0.000000e+00> : vector<8xf32>
    %81 = vector.multi_reduction <add>, %78, %cst_48 [1] : vector<8x32xf32> to vector<8xf32>
    %82 = vector.shape_cast %81 : vector<8xf32> to vector<8x1xf32>
    %cst_49 = arith.constant 3.200000e+01 : f32
    %83 = vector.broadcast %cst_49 : f32 to vector<8x1xf32>
    %84 = arith.divf %82, %83 : vector<8x1xf32>
    %85 = vector.broadcast %84 : vector<8x1xf32> to vector<8x32xf32>
    %86 = arith.subf %78, %85 : vector<8x32xf32>
    %87 = arith.mulf %86, %86 : vector<8x32xf32>
    %cst_50 = arith.constant dense<0.000000e+00> : vector<8xf32>
    %88 = vector.multi_reduction <add>, %87, %cst_50 [1] : vector<8x32xf32> to vector<8xf32>
    %89 = vector.shape_cast %88 : vector<8xf32> to vector<8x1xf32>
    %cst_51 = arith.constant 3.200000e+01 : f32
    %90 = vector.broadcast %cst_51 : f32 to vector<8x1xf32>
    %91 = arith.divf %89, %90 : vector<8x1xf32>
    %92 = vector.broadcast %84 : vector<8x1xf32> to vector<8x32xf32>
    %93 = arith.subf %78, %92 : vector<8x32xf32>
    %cst_52 = arith.constant 9.99999974E-6 : f32
    %94 = vector.broadcast %cst_52 : f32 to vector<8x1xf32>
    %95 = arith.addf %91, %94 : vector<8x1xf32>
    %96 = math.rsqrt %95 : vector<8x1xf32>
    %97 = vector.broadcast %96 : vector<8x1xf32> to vector<8x32xf32>
    %98 = arith.mulf %93, %97 : vector<8x32xf32>
    %99 = vector.broadcast %79 : vector<1x32xf32> to vector<8x32xf32>
    %100 = arith.mulf %98, %99 : vector<8x32xf32>
    %101 = vector.broadcast %80 : vector<1x32xf32> to vector<8x32xf32>
    %102 = arith.addf %100, %101 : vector<8x32xf32>
    %103 = arith.truncf %102 : vector<8x32xf32> to vector<8x32xbf16>
    %c0_53 = arith.constant 0 : index
    %c0_54 = arith.constant 0 : index
    %104 = vector.load %arg15[%c0_53, %c0_54] : memref<32x64xbf16, #tpu.memory_space<vmem>>, vector<32x64xbf16>
    %cst_55 = arith.constant dense<0.000000e+00> : vector<8x64xf32>
    %105 = tpu.matmul %103, %104, %cst_55 {dimension_numbers = #tpu.dot_dimension_numbers<[1], [0], [0], [1], [0, 0, 1, 1], [], []>} : vector<8x32xbf16>, vector<32x64xbf16>, vector<8x64xf32> -> vector<8x64xf32>
    %c0_56 = arith.constant 0 : index
    %c0_57 = arith.constant 0 : index
    %106 = vector.load %arg16[%c0_56, %c0_57] : memref<1x64xf32, #tpu.memory_space<vmem>>, vector<1x64xf32>
    %107 = vector.broadcast %106 : vector<1x64xf32> to vector<8x64xf32>
    %108 = arith.addf %105, %107 : vector<8x64xf32>
    %cst_58 = arith.constant 0.000000e+00 : f32
    %109 = vector.broadcast %cst_58 : f32 to vector<8x64xf32>
    %110 = arith.maximumf %108, %109 : vector<8x64xf32>
    %111 = arith.truncf %110 : vector<8x64xf32> to vector<8x64xbf16>
    %c0_59 = arith.constant 0 : index
    %c0_60 = arith.constant 0 : index
    %112 = vector.load %arg17[%c0_59, %c0_60] : memref<64x64xbf16, #tpu.memory_space<vmem>>, vector<64x64xbf16>
    %cst_61 = arith.constant dense<0.000000e+00> : vector<8x64xf32>
    %113 = tpu.matmul %111, %112, %cst_61 {dimension_numbers = #tpu.dot_dimension_numbers<[1], [0], [0], [1], [0, 0, 1, 1], [], []>} : vector<8x64xbf16>, vector<64x64xbf16>, vector<8x64xf32> -> vector<8x64xf32>
    %c0_62 = arith.constant 0 : index
    %c0_63 = arith.constant 0 : index
    %114 = vector.load %arg18[%c0_62, %c0_63] : memref<1x64xf32, #tpu.memory_space<vmem>>, vector<1x64xf32>
    %115 = vector.broadcast %114 : vector<1x64xf32> to vector<8x64xf32>
    %116 = arith.addf %113, %115 : vector<8x64xf32>
    %cst_64 = arith.constant 0.000000e+00 : f32
    %117 = vector.broadcast %cst_64 : f32 to vector<8x64xf32>
    %118 = arith.maximumf %116, %117 : vector<8x64xf32>
    %119 = arith.truncf %118 : vector<8x64xf32> to vector<8x64xbf16>
    %c0_65 = arith.constant 0 : index
    %c0_66 = arith.constant 0 : index
    %120 = vector.load %arg19[%c0_65, %c0_66] : memref<64x32xbf16, #tpu.memory_space<vmem>>, vector<64x32xbf16>
    %cst_67 = arith.constant dense<0.000000e+00> : vector<8x32xf32>
    %121 = tpu.matmul %119, %120, %cst_67 {dimension_numbers = #tpu.dot_dimension_numbers<[1], [0], [0], [1], [0, 0, 1, 1], [], []>} : vector<8x64xbf16>, vector<64x32xbf16>, vector<8x32xf32> -> vector<8x32xf32>
    %c0_68 = arith.constant 0 : index
    %c0_69 = arith.constant 0 : index
    %122 = vector.load %arg20[%c0_68, %c0_69] : memref<1x32xf32, #tpu.memory_space<vmem>>, vector<1x32xf32>
    %123 = vector.broadcast %122 : vector<1x32xf32> to vector<8x32xf32>
    %124 = arith.addf %121, %123 : vector<8x32xf32>
    %125 = arith.addf %124, %102 : vector<8x32xf32>
    %c0_70 = arith.constant 0 : index
    %c0_71 = arith.constant 0 : index
    %126 = vector.load %arg21[%c0_70, %c0_71] : memref<1x32xf32, #tpu.memory_space<vmem>>, vector<1x32xf32>
    %c0_72 = arith.constant 0 : index
    %c0_73 = arith.constant 0 : index
    %127 = vector.load %arg22[%c0_72, %c0_73] : memref<1x32xf32, #tpu.memory_space<vmem>>, vector<1x32xf32>
    %cst_74 = arith.constant dense<0.000000e+00> : vector<8xf32>
    %128 = vector.multi_reduction <add>, %125, %cst_74 [1] : vector<8x32xf32> to vector<8xf32>
    %129 = vector.shape_cast %128 : vector<8xf32> to vector<8x1xf32>
    %cst_75 = arith.constant 3.200000e+01 : f32
    %130 = vector.broadcast %cst_75 : f32 to vector<8x1xf32>
    %131 = arith.divf %129, %130 : vector<8x1xf32>
    %132 = vector.broadcast %131 : vector<8x1xf32> to vector<8x32xf32>
    %133 = arith.subf %125, %132 : vector<8x32xf32>
    %134 = arith.mulf %133, %133 : vector<8x32xf32>
    %cst_76 = arith.constant dense<0.000000e+00> : vector<8xf32>
    %135 = vector.multi_reduction <add>, %134, %cst_76 [1] : vector<8x32xf32> to vector<8xf32>
    %136 = vector.shape_cast %135 : vector<8xf32> to vector<8x1xf32>
    %cst_77 = arith.constant 3.200000e+01 : f32
    %137 = vector.broadcast %cst_77 : f32 to vector<8x1xf32>
    %138 = arith.divf %136, %137 : vector<8x1xf32>
    %139 = vector.broadcast %131 : vector<8x1xf32> to vector<8x32xf32>
    %140 = arith.subf %125, %139 : vector<8x32xf32>
    %cst_78 = arith.constant 9.99999974E-6 : f32
    %141 = vector.broadcast %cst_78 : f32 to vector<8x1xf32>
    %142 = arith.addf %138, %141 : vector<8x1xf32>
    %143 = math.rsqrt %142 : vector<8x1xf32>
    %144 = vector.broadcast %143 : vector<8x1xf32> to vector<8x32xf32>
    %145 = arith.mulf %140, %144 : vector<8x32xf32>
    %146 = vector.broadcast %126 : vector<1x32xf32> to vector<8x32xf32>
    %147 = arith.mulf %145, %146 : vector<8x32xf32>
    %148 = vector.broadcast %127 : vector<1x32xf32> to vector<8x32xf32>
    %149 = arith.addf %147, %148 : vector<8x32xf32>
    %c0_79 = arith.constant 0 : index
    %c0_80 = arith.constant 0 : index
    %c0_81 = arith.constant 0 : index
    %150 = vector.load %arg23[%c0_79, %c0_80, %c0_81] : memref<1x8x32xf32, #tpu.memory_space<vmem>>, vector<1x8x32xf32>
    %151 = vector.shape_cast %150 : vector<1x8x32xf32> to vector<8x32xf32>
    %152 = vector.shape_cast %149 : vector<8x32xf32> to vector<1x8x32xf32>
    tpu.vector_store %arg23[%c0_79, %c0_80, %c0_81], %152 {strides = array<i32>} : memref<1x8x32xf32, #tpu.memory_space<vmem>>, vector<1x8x32xf32>,
    return
  }
  func.func @transform_0(%arg0: i32, %arg1: i32) -> (i32, i32, i32) {
    %c0_i32 = arith.constant 0 : i32
    %c0_i32_0 = arith.constant 0 : i32
    return %arg0, %arg1, %c0_i32 : i32, i32, i32
  }
  func.func @transform_1(%arg0: i32, %arg1: i32) -> (i32, i32, i32, i32) {
    %c0_i32 = arith.constant 0 : i32
    %c0_i32_0 = arith.constant 0 : i32
    %c0_i32_1 = arith.constant 0 : i32
    return %arg0, %c0_i32, %arg1, %c0_i32_0 : i32, i32, i32, i32
  }
  func.func @transform_2(%arg0: i32, %arg1: i32) -> (i32, i32, i32, i32) {
    %c0_i32 = arith.constant 0 : i32
    %c0_i32_0 = arith.constant 0 : i32
    %c0_i32_1 = arith.constant 0 : i32
    %c0_i32_2 = arith.constant 0 : i32
    return %arg0, %c0_i32, %c0_i32_0, %c0_i32_1 : i32, i32, i32, i32
  }
  func.func @transform_3(%arg0: i32, %arg1: i32) -> (i32, i32) {
    %c0_i32 = arith.constant 0 : i32
    %c0_i32_0 = arith.constant 0 : i32
    %c0_i32_1 = arith.constant 0 : i32
    return %c0_i32, %c0_i32_0 : i32, i32
  }
  func.func @transform_4(%arg0: i32, %arg1: i32) -> (i32, i32) {
    %c0_i32 = arith.constant 0 : i32
    %c0_i32_0 = arith.constant 0 : i32
    %c0_i32_1 = arith.constant 0 : i32
    return %c0_i32, %c0_i32_0 : i32, i32
  }
  func.func @transform_5(%arg0: i32, %arg1: i32) -> (i32, i32) {
    %c0_i32 = arith.constant 0 : i32
    %c0_i32_0 = arith.constant 0 : i32
    %c0_i32_1 = arith.constant 0 : i32
    return %c0_i32, %c0_i32_0 : i32, i32
  }
  func.func @transform_6(%arg0: i32, %arg1: i32) -> (i32, i32) {
    %c0_i32 = arith.constant 0 : i32
    %c0_i32_0 = arith.constant 0 : i32
    %c0_i32_1 = arith.constant 0 : i32
    return %c0_i32, %c0_i32_0 : i32, i32
  }
  func.func @transform_7(%arg0: i32, %arg1: i32) -> (i32, i32) {
    %c0_i32 = arith.constant 0 : i32
    %c0_i32_0 = arith.constant 0 : i32
    %c0_i32_1 = arith.constant 0 : i32
    return %c0_i32, %c0_i32_0 : i32, i32
  }
  func.func @transform_8(%arg0: i32, %arg1: i32) -> (i32, i32) {
    %c0_i32 = arith.constant 0 : i32
    %c0_i32_0 = arith.constant 0 : i32
    %c0_i32_1 = arith.constant 0 : i32
    return %c0_i32, %c0_i32_0 : i32, i32
  }
  func.func @transform_9(%arg0: i32, %arg1: i32) -> (i32, i32, i32) {
    %c0_i32 = arith.constant 0 : i32
    %c0_i32_0 = arith.constant 0 : i32
    %c0_i32_1 = arith.constant 0 : i32
    %c0_i32_2 = arith.constant 0 : i32
    return %c0_i32, %c0_i32_0, %c0_i32_1 : i32, i32, i32
  }
  func.func @transform_10(%arg0: i32, %arg1: i32) -> (i32, i32) {
    %c0_i32 = arith.constant 0 : i32
    %c0_i32_0 = arith.constant 0 : i32
    %c0_i32_1 = arith.constant 0 : i32
    return %c0_i32, %c0_i32_0 : i32, i32
  }
  func.func @transform_11(%arg0: i32, %arg1: i32) -> (i32, i32) {
    %c0_i32 = arith.constant 0 : i32
    %c0_i32_0 = arith.constant 0 : i32
    %c0_i32_1 = arith.constant 0 : i32
    return %c0_i32, %c0_i32_0 : i32, i32
  }
  func.func @transform_12(%arg0: i32, %arg1: i32) -> (i32, i32) {
    %c0_i32 = arith.constant 0 : i32
    %c0_i32_0 = arith.constant 0 : i32
    %c0_i32_1 = arith.constant 0 : i32
    return %c0_i32, %c0_i32_0 : i32, i32
  }
  func.func @transform_13(%arg0: i32, %arg1: i32) -> (i32, i32) {
    %c0_i32 = arith.constant 0 : i32
    %c0_i32_0 = arith.constant 0 : i32
    %c0_i32_1 = arith.constant 0 : i32
    return %c0_i32, %c0_i32_0 : i32, i32
  }
  func.func @transform_14(%arg0: i32, %arg1: i32) -> (i32, i32) {
    %c0_i32 = arith.constant 0 : i32
    %c0_i32_0 = arith.constant 0 : i32
    %c0_i32_1 = arith.constant 0 : i32
    return %c0_i32, %c0_i32_0 : i32, i32
  }
  func.func @transform_15(%arg0: i32, %arg1: i32) -> (i32, i32) {
    %c0_i32 = arith.constant 0 : i32
    %c0_i32_0 = arith.constant 0 : i32
    %c0_i32_1 = arith.constant 0 : i32
    return %c0_i32, %c0_i32_0 : i32, i32
  }
  func.func @transform_16(%arg0: i32, %arg1: i32) -> (i32, i32) {
    %c0_i32 = arith.constant 0 : i32
    %c0_i32_0 = arith.constant 0 : i32
    %c0_i32_1 = arith.constant 0 : i32
    return %c0_i32, %c0_i32_0 : i32, i32
  }
  func.func @transform_17(%arg0: i32, %arg1: i32) -> (i32, i32) {
    %c0_i32 = arith.constant 0 : i32
    %c0_i32_0 = arith.constant 0 : i32
    %c0_i32_1 = arith.constant 0 : i32
    return %c0_i32, %c0_i32_0 : i32, i32
  }
  func.func @transform_18(%arg0: i32, %arg1: i32) -> (i32, i32) {
    %c0_i32 = arith.constant 0 : i32
    %c0_i32_0 = arith.constant 0 : i32
    %c0_i32_1 = arith.constant 0 : i32
    return %c0_i32, %c0_i32_0 : i32, i32
  }
  func.func @transform_19(%arg0: i32, %arg1: i32) -> (i32, i32) {
    %c0_i32 = arith.constant 0 : i32
    %c0_i32_0 = arith.constant 0 : i32
    %c0_i32_1 = arith.constant 0 : i32
    return %c0_i32, %c0_i32_0 : i32, i32
  }
  func.func @transform_20(%arg0: i32, %arg1: i32) -> (i32, i32) {
    %c0_i32 = arith.constant 0 : i32
    %c0_i32_0 = arith.constant 0 : i32
    %c0_i32_1 = arith.constant 0 : i32
    return %c0_i32, %c0_i32_0 : i32, i32
  }
  func.func @transform_21(%arg0: i32, %arg1: i32) -> (i32, i32, i32) {
    %c0_i32 = arith.constant 0 : i32
    %c0_i32_0 = arith.constant 0 : i32
    return %arg0, %arg1, %c0_i32 : i32, i32, i32
  }
}

</mosaic_0001>

<llo_original>
// kernel: tpu_custom_call.1
$region0: #{tpu_custom_call.1}
  #allocation0 [shape = 'u32[]', space=smem, size = 0x4, offset = 0x4, fixed_abs, tag = 'smem constant byte address 0x4 - core index']
  #allocation1 [shape = 'u32[144,128]{1,0:T(1,128)}', space=vmem, size = 0x12000, scoped, tag = 'internal scratch']
  %s0 = inlined_call_operand.vmem [shape: f32[2,8,32], index: 0, kind: input, shape index: {}]
  %s1 = inlined_call_operand.hbm [shape: f32[2,4,8,8], index: 1, kind: input, shape index: {}]
  %s2 = inlined_call_operand.hbm [shape: f32[2,4,8,8], index: 2, kind: input, shape index: {}]
  %s3 = inlined_call_operand.vmem [shape: bf16[8,8], index: 3, kind: input, shape index: {}]
  %s4 = inlined_call_operand.vmem [shape: f32[1,8], index: 4, kind: input, shape index: {}]
  %s5 = inlined_call_operand.vmem [shape: bf16[8,8], index: 5, kind: input, shape index: {}]
  %s6 = inlined_call_operand.vmem [shape: f32[1,8], index: 6, kind: input, shape index: {}]
  %s7 = inlined_call_operand.vmem [shape: bf16[8,8], index: 7, kind: input, shape index: {}]
  %s8 = inlined_call_operand.vmem [shape: f32[1,8], index: 8, kind: input, shape index: {}]
  %s9 = inlined_call_operand.hbm [shape: bf16[4,8,32], index: 9, kind: input, shape index: {}]
  %s10 = inlined_call_operand.hbm [shape: f32[1,32], index: 10, kind: input, shape index: {}]
  %s11 = inlined_call_operand.hbm [shape: f32[1,32], index: 11, kind: input, shape index: {}]
  %s12 = inlined_call_operand.hbm [shape: f32[1,32], index: 12, kind: input, shape index: {}]
  %s13 = inlined_call_operand.hbm [shape: bf16[32,64], index: 13, kind: input, shape index: {}]
  %s14 = inlined_call_operand.hbm [shape: f32[1,64], index: 14, kind: input, shape index: {}]
  %s15 = inlined_call_operand.vmem [shape: bf16[64,64], index: 15, kind: input, shape index: {}]
  %s16 = inlined_call_operand.hbm [shape: f32[1,64], index: 16, kind: input, shape index: {}]
  %s17 = inlined_call_operand.vmem [shape: bf16[64,32], index: 17, kind: input, shape index: {}]
  %s18 = inlined_call_operand.vmem [shape: f32[1,32], index: 18, kind: input, shape index: {}]
  %s19 = inlined_call_operand.vmem [shape: f32[1,32], index: 19, kind: input, shape index: {}]
  %s20 = inlined_call_operand.vmem [shape: f32[1,32], index: 20, kind: input, shape index: {}]
  %s21 = inlined_call_operand.hbm [shape: f32[2,8,32], index: 21, kind: output, shape index: {}]
  %s22 = sld [smem:[#allocation0]]
  $region153: #{tpu_custom_call.1} parent=0
    _
  %s24 = ssub.s32 1, %s22
  %s25 = scalar_select 0, %s24, %s22
  $region1: #{tpu_custom_call.1} parent=0
    #allocation2 [shape = 'u8[32768]{0}', space=vmem, size = 0x8000, scoped, tag = 'input window, operand 1']
    #allocation3 [shape = 's32[2]{0}', space=sflag, size = 0x8, scoped, tag = 'scoped memory for tpu_custom_call.1']
    #allocation4 [shape = 's32[2]{0}', space=sflag, size = 0x8, scoped, tag = 'scoped memory for tpu_custom_call.1']
    #allocation5 [shape = 'u8[32768]{0}', space=vmem, size = 0x8000, scoped, tag = 'input window, operand 2']
    #allocation6 [shape = 's32[2]{0}', space=sflag, size = 0x8, scoped, tag = 'scoped memory for tpu_custom_call.1']
    #allocation7 [shape = 'u8[8192]{0}', space=vmem, size = 0x2000, scoped, tag = 'input window, operand 9, single buffered']
    #allocation8 [shape = 'u8[512]{0}', space=vmem, size = 0x400, scoped, tag = 'input window, operand 10, single buffered']
    #allocation9 [shape = 's32[1]{0}', space=sflag, size = 0x4, scoped, tag = 'scoped memory for tpu_custom_call.1']
    #allocation10 [shape = 'u8[512]{0}', space=vmem, size = 0x400, scoped, tag = 'input window, operand 11, single buffered']
    #allocation11 [shape = 'u8[512]{0}', space=vmem, size = 0x400, scoped, tag = 'input window, operand 12, single buffered']
    #allocation12 [shape = 's32[1]{0}', space=sflag, size = 0x4, scoped, tag = 'scoped memory for tpu_custom_call.1']
    #allocation13 [shape = 'u8[8192]{0}', space=vmem, size = 0x2000, scoped, tag = 'input window, operand 13, single buffered']
    #allocation14 [shape = 'u8[512]{0}', space=vmem, size = 0x400, scoped, tag = 'input window, operand 14, single buffered']
    #allocation15 [shape = 's32[1]{0}', space=sflag, size = 0x4, scoped, tag = 'scoped memory for tpu_custom_call.1']
    #allocation16 [shape = 'u8[512]{0}', space=vmem, size = 0x400, scoped, tag = 'input window, operand 16, single buffered']
    #allocation17 [shape = 'u8[8192]{0}', space=vmem, size = 0x2000, scoped, tag = 'output window, operand 0']
    %26 = vsyncpa [#allocation3], 0
    %s27 = scalar_lea.sflag [#allocation3], 1
    %28 = vsyncpa %s27, 0
    %29 = vsyncpa [#allocation6], 0
    %s30 = scalar_lea.sflag [#allocation6], 1
    %31 = vsyncpa %s30, 0
    %32 = vsyncpa [#allocation9], 0
    %33 = vsyncpa [#allocation12], 0
    %34 = vsyncpa [#allocation15], 0
    %35 = vsyncpa [#allocation4], 0
    %s36 = scalar_lea.sflag [#allocation4], 1
    %37 = vsyncpa %s36, 0
    loop: start=0, step=1, limit=4
    $region2: #{tpu_custom_call.1} parent=1 // loop_pre_header
      _
    $region3: #{tpu_custom_call.1} parent=1 // loop_header
      %s39 = sphi 0, %s43
      %p40 = scmp.ge.s32.totalorder %s39, 4
      %s46 = sphi 0, %s58
      %s47 = sphi 0, %s54
      %s48 = sphi 0, %s46
      %s49 = sphi 0, %s47
      %s50 = sphi 0, %s48
      %s51 = sphi 0, %s49
      %s63 = sphi 0, %s65
      %s66 = sphi 0, %s63
      %s67 = sphi 0, %s66
      %s83 = sphi 0, %s67
      %s91 = sphi 0, %s93
      %s94 = sphi 0, %s91
      %s95 = sphi 0, %s94
      %s111 = sphi 0, %s95
      %s117 = sphi 0, %s119
      %s120 = sphi 0, %s117
      %s121 = sphi 0, %s120
      %s137 = sphi 0, %s121
      %s141 = sphi 0, %s141
      %s143 = sphi 0, %s141
      %s144 = sphi 0, %s143
      %s158 = sphi 0, %s144
      %s162 = sphi 0, %s162
      %s164 = sphi 0, %s162
      %s165 = sphi 0, %s164
      %s179 = sphi 0, %s165
      %s183 = sphi 0, %s183
      %s185 = sphi 0, %s183
      %s186 = sphi 0, %s185
      %s200 = sphi 0, %s186
      %s204 = sphi 0, %s204
      %s206 = sphi 0, %s204
      %s207 = sphi 0, %s206
      %s221 = sphi 0, %s207
      %s225 = sphi 0, %s225
      %s227 = sphi 0, %s225
      %s228 = sphi 0, %s227
      %s242 = sphi 0, %s228
      %s246 = sphi 0, %s246
      %s248 = sphi 0, %s246
      %s249 = sphi 0, %s248
      %s263 = sphi 0, %s249
      %s267 = sphi 0, %s267
      %s269 = sphi 0, %s267
      %s270 = sphi 0, %s269
      %s284 = sphi 0, %s270
      %s288 = sphi 0, %s288
      %s290 = sphi 0, %s288
      %s291 = sphi 0, %s290
      %s305 = sphi 0, %s291
      %s309 = sphi 0, %s309
      %s311 = sphi 0, %s309
      %s312 = sphi 0, %s311
      %s326 = sphi 0, %s312
      %s330 = sphi 0, %s330
      %s332 = sphi 0, %s330
      %s333 = sphi 0, %s332
      %s347 = sphi 0, %s333
      %s351 = sphi 0, %s351
      %s353 = sphi 0, %s351
      %s354 = sphi 0, %s353
      %s368 = sphi 0, %s354
      %s372 = sphi 0, %s372
      %s374 = sphi 0, %s372
      %s375 = sphi 0, %s374
      %s389 = sphi 0, %s375
      %s393 = sphi 0, %s393
      %s395 = sphi 0, %s393
      %s396 = sphi 0, %s395
      %s410 = sphi 0, %s396
      %s414 = sphi 0, %s414
      %s416 = sphi 0, %s414
      %s417 = sphi 0, %s416
      %s431 = sphi 0, %s417
      %s435 = sphi 0, %s435
      %s437 = sphi 0, %s435
      %s438 = sphi 0, %s437
      %s452 = sphi 0, %s438
      %s456 = sphi 0, %s456
      %s458 = sphi 0, %s456
      %s459 = sphi 0, %s458
      %s473 = sphi 0, %s459
      %s477 = sphi 0, %s477
      %s479 = sphi 0, %s477
      %s480 = sphi 0, %s479
      %s494 = sphi 0, %s480
      %s498 = sphi 0, %s498
      %s500 = sphi 0, %s498
      %s501 = sphi 0, %s500
      %s515 = sphi 0, %s501
      %s523 = sphi 0, %s525
      %s526 = sphi 0, %s523
      %s527 = sphi 0, %s526
      %s543 = sphi 0, %s527
    $region4: #{tpu_custom_call.1} parent=1 // loop_header_branch
      %42 = sbr.rel (%p40) target = $region8
    $region5: #{tpu_custom_call.1} parent=1 // loop_body
      %s44 = ssub.s32 %s39, 1
      %s45 = ssub.s32 %s39, 2
      %s52 = sadd.s32 1, %s47
      %p53 = scmp.ge.s32.totalorder %s52, 1
      %s54 = scalar_select %p53, 0, %s52
      %s55 = sadd.s32 1, %s46
      %s56 = scalar_select %p53, %s55, %s46
      %p57 = scmp.ge.s32.totalorder %s56, 2
      %s58 = scalar_select %p57, 0, %s56
      %s59 = ssub.s32 %s46, %s58
      %s60 = ssub.s32 %s47, %s54
      %s61 = sor.u32 %s59, %s60
      %p62 = scmp.eq.s32.totalorder %s61, 0
      %s64 = sadd.s32 %s63, 1
      %s65 = scalar_select %p62, %s63, %s64
      %p68 = pneg %p62
      %p69 = scmp.eq.s32.totalorder %s39, 1
      %p70 = por %p68, %p69
      %p71 = scmp.ne.s32.totalorder %s63, %s66
      %p72 = scmp.eq.s32.totalorder %s39, 0
      %p73 = por %p71, %p72
      %p74 = scmp.ne.s32.totalorder %s63, %s66
      %p75 = scmp.eq.s32.totalorder %s44, 1
      %p76 = por %p74, %p75
      %p77 = scmp.ne.s32.totalorder %s66, %s67
      %p78 = scmp.eq.s32.totalorder %s44, 0
      %p79 = por %p77, %p78
      %p80 = scmp.ne.s32.totalorder %s66, %s67
      %p81 = scmp.eq.s32.totalorder %s45, 1
      %p82 = por %p80, %p81
      %p84 = scmp.ne.s32.totalorder %s67, %s83
      %p85 = scmp.eq.s32.totalorder %s45, 0
      %p86 = por %p84, %p85
      %s87 = ssub.s32 %s46, %s58
      %s88 = ssub.s32 %s47, %s54
      %s89 = sor.u32 %s87, %s88
      %p90 = scmp.eq.s32.totalorder %s89, 0
      %s92 = sadd.s32 %s91, 1
      %s93 = scalar_select %p90, %s91, %s92
      %p96 = pneg %p90
      %p97 = scmp.eq.s32.totalorder %s39, 1
      %p98 = por %p96, %p97
      %p99 = scmp.ne.s32.totalorder %s91, %s94
      %p100 = scmp.eq.s32.totalorder %s39, 0
      %p101 = por %p99, %p100
      %p102 = scmp.ne.s32.totalorder %s91, %s94
      %p103 = scmp.eq.s32.totalorder %s44, 1
      %p104 = por %p102, %p103
      %p105 = scmp.ne.s32.totalorder %s94, %s95
      %p106 = scmp.eq.s32.totalorder %s44, 0
      %p107 = por %p105, %p106
      %p108 = scmp.ne.s32.totalorder %s94, %s95
      %p109 = scmp.eq.s32.totalorder %s45, 1
      %p110 = por %p108, %p109
      %p112 = scmp.ne.s32.totalorder %s95, %s111
      %p113 = scmp.eq.s32.totalorder %s45, 0
      %p114 = por %p112, %p113
      %s115 = ssub.s32 %s46, %s58
      %p116 = scmp.eq.s32.totalorder %s115, 0
      %s118 = sadd.s32 %s117, 1
      %s119 = scalar_select %p116, %s117, %s118
      %p122 = pneg %p116
      %p123 = scmp.eq.s32.totalorder %s39, 1
      %p124 = por %p122, %p123
      %p125 = scmp.ne.s32.totalorder %s117, %s120
      %p126 = scmp.eq.s32.totalorder %s39, 0
      %p127 = por %p125, %p126
      %p128 = scmp.ne.s32.totalorder %s117, %s120
      %p129 = scmp.eq.s32.totalorder %s44, 1
      %p130 = por %p128, %p129
      %p131 = scmp.ne.s32.totalorder %s120, %s121
      %p132 = scmp.eq.s32.totalorder %s44, 0
      %p133 = por %p131, %p132
      %p134 = scmp.ne.s32.totalorder %s120, %s121
      %p135 = scmp.eq.s32.totalorder %s45, 1
      %p136 = por %p134, %p135
      %p138 = scmp.ne.s32.totalorder %s121, %s137
      %p139 = scmp.eq.s32.totalorder %s45, 0
      %p140 = por %p138, %p139
      %s142 = sadd.s32 %s141, 1
      %p145 = scmp.eq.s32.totalorder %s39, 1
      %p146 = scmp.ne.s32.totalorder %s141, %s143
      %p147 = scmp.eq.s32.totalorder %s39, 0
      %p148 = por %p146, %p147
      %p149 = scmp.ne.s32.totalorder %s141, %s143
      %p150 = scmp.eq.s32.totalorder %s44, 1
      %p151 = por %p149, %p150
      %p152 = scmp.ne.s32.totalorder %s143, %s144
      %p153 = scmp.eq.s32.totalorder %s44, 0
      %p154 = por %p152, %p153
      %p155 = scmp.ne.s32.totalorder %s143, %s144
      %p156 = scmp.eq.s32.totalorder %s45, 1
      %p157 = por %p155, %p156
      %p159 = scmp.ne.s32.totalorder %s144, %s158
      %p160 = scmp.eq.s32.totalorder %s45, 0
      %p161 = por %p159, %p160
      %s163 = sadd.s32 %s162, 1
      %p166 = scmp.eq.s32.totalorder %s39, 1
      %p167 = scmp.ne.s32.totalorder %s162, %s164
      %p168 = scmp.eq.s32.totalorder %s39, 0
      %p169 = por %p167, %p168
      %p170 = scmp.ne.s32.totalorder %s162, %s164
      %p171 = scmp.eq.s32.totalorder %s44, 1
      %p172 = por %p170, %p171
      %p173 = scmp.ne.s32.totalorder %s164, %s165
      %p174 = scmp.eq.s32.totalorder %s44, 0
      %p175 = por %p173, %p174
      %p176 = scmp.ne.s32.totalorder %s164, %s165
      %p177 = scmp.eq.s32.totalorder %s45, 1
      %p178 = por %p176, %p177
      %p180 = scmp.ne.s32.totalorder %s165, %s179
      %p181 = scmp.eq.s32.totalorder %s45, 0
      %p182 = por %p180, %p181
      %s184 = sadd.s32 %s183, 1
      %p187 = scmp.eq.s32.totalorder %s39, 1
      %p188 = scmp.ne.s32.totalorder %s183, %s185
      %p189 = scmp.eq.s32.totalorder %s39, 0
      %p190 = por %p188, %p189
      %p191 = scmp.ne.s32.totalorder %s183, %s185
      %p192 = scmp.eq.s32.totalorder %s44, 1
      %p193 = por %p191, %p192
      %p194 = scmp.ne.s32.totalorder %s185, %s186
      %p195 = scmp.eq.s32.totalorder %s44, 0
      %p196 = por %p194, %p195
      %p197 = scmp.ne.s32.totalorder %s185, %s186
      %p198 = scmp.eq.s32.totalorder %s45, 1
      %p199 = por %p197, %p198
      %p201 = scmp.ne.s32.totalorder %s186, %s200
      %p202 = scmp.eq.s32.totalorder %s45, 0
      %p203 = por %p201, %p202
      %s205 = sadd.s32 %s204, 1
      %p208 = scmp.eq.s32.totalorder %s39, 1
      %p209 = scmp.ne.s32.totalorder %s204, %s206
      %p210 = scmp.eq.s32.totalorder %s39, 0
      %p211 = por %p209, %p210
      %p212 = scmp.ne.s32.totalorder %s204, %s206
      %p213 = scmp.eq.s32.totalorder %s44, 1
      %p214 = por %p212, %p213
      %p215 = scmp.ne.s32.totalorder %s206, %s207
      %p216 = scmp.eq.s32.totalorder %s44, 0
      %p217 = por %p215, %p216
      %p218 = scmp.ne.s32.totalorder %s206, %s207
      %p219 = scmp.eq.s32.totalorder %s45, 1
      %p220 = por %p218, %p219
      %p222 = scmp.ne.s32.totalorder %s207, %s221
      %p223 = scmp.eq.s32.totalorder %s45, 0
      %p224 = por %p222, %p223
      %s226 = sadd.s32 %s225, 1
      %p229 = scmp.eq.s32.totalorder %s39, 1
      %p230 = scmp.ne.s32.totalorder %s225, %s227
      %p231 = scmp.eq.s32.totalorder %s39, 0
      %p232 = por %p230, %p231
      %p233 = scmp.ne.s32.totalorder %s225, %s227
      %p234 = scmp.eq.s32.totalorder %s44, 1
      %p235 = por %p233, %p234
      %p236 = scmp.ne.s32.totalorder %s227, %s228
      %p237 = scmp.eq.s32.totalorder %s44, 0
      %p238 = por %p236, %p237
      %p239 = scmp.ne.s32.totalorder %s227, %s228
      %p240 = scmp.eq.s32.totalorder %s45, 1
      %p241 = por %p239, %p240
      %p243 = scmp.ne.s32.totalorder %s228, %s242
      %p244 = scmp.eq.s32.totalorder %s45, 0
      %p245 = por %p243, %p244
      %s247 = sadd.s32 %s246, 1
      %p250 = scmp.eq.s32.totalorder %s39, 1
      %p251 = scmp.ne.s32.totalorder %s246, %s248
      %p252 = scmp.eq.s32.totalorder %s39, 0
      %p253 = por %p251, %p252
      %p254 = scmp.ne.s32.totalorder %s246, %s248
      %p255 = scmp.eq.s32.totalorder %s44, 1
      %p256 = por %p254, %p255
      %p257 = scmp.ne.s32.totalorder %s248, %s249
      %p258 = scmp.eq.s32.totalorder %s44, 0
      %p259 = por %p257, %p258
      %p260 = scmp.ne.s32.totalorder %s248, %s249
      %p261 = scmp.eq.s32.totalorder %s45, 1
      %p262 = por %p260, %p261
      %p264 = scmp.ne.s32.totalorder %s249, %s263
      %p265 = scmp.eq.s32.totalorder %s45, 0
      %p266 = por %p264, %p265
      %s268 = sadd.s32 %s267, 1
      %p271 = scmp.eq.s32.totalorder %s39, 1
      %p272 = scmp.ne.s32.totalorder %s267, %s269
      %p273 = scmp.eq.s32.totalorder %s39, 0
      %p274 = por %p272, %p273
      %p275 = scmp.ne.s32.totalorder %s267, %s269
      %p276 = scmp.eq.s32.totalorder %s44, 1
      %p277 = por %p275, %p276
      %p278 = scmp.ne.s32.totalorder %s269, %s270
      %p279 = scmp.eq.s32.totalorder %s44, 0
      %p280 = por %p278, %p279
      %p281 = scmp.ne.s32.totalorder %s269, %s270
      %p282 = scmp.eq.s32.totalorder %s45, 1
      %p283 = por %p281, %p282
      %p285 = scmp.ne.s32.totalorder %s270, %s284
      %p286 = scmp.eq.s32.totalorder %s45, 0
      %p287 = por %p285, %p286
      %s289 = sadd.s32 %s288, 1
      %p292 = scmp.eq.s32.totalorder %s39, 1
      %p293 = scmp.ne.s32.totalorder %s288, %s290
      %p294 = scmp.eq.s32.totalorder %s39, 0
      %p295 = por %p293, %p294
      %p296 = scmp.ne.s32.totalorder %s288, %s290
      %p297 = scmp.eq.s32.totalorder %s44, 1
      %p298 = por %p296, %p297
      %p299 = scmp.ne.s32.totalorder %s290, %s291
      %p300 = scmp.eq.s32.totalorder %s44, 0
      %p301 = por %p299, %p300
      %p302 = scmp.ne.s32.totalorder %s290, %s291
      %p303 = scmp.eq.s32.totalorder %s45, 1
      %p304 = por %p302, %p303
      %p306 = scmp.ne.s32.totalorder %s291, %s305
      %p307 = scmp.eq.s32.totalorder %s45, 0
      %p308 = por %p306, %p307
      %s310 = sadd.s32 %s309, 1
      %p313 = scmp.eq.s32.totalorder %s39, 1
      %p314 = scmp.ne.s32.totalorder %s309, %s311
      %p315 = scmp.eq.s32.totalorder %s39, 0
      %p316 = por %p314, %p315
      %p317 = scmp.ne.s32.totalorder %s309, %s311
      %p318 = scmp.eq.s32.totalorder %s44, 1
      %p319 = por %p317, %p318
      %p320 = scmp.ne.s32.totalorder %s311, %s312
      %p321 = scmp.eq.s32.totalorder %s44, 0
      %p322 = por %p320, %p321
      %p323 = scmp.ne.s32.totalorder %s311, %s312
      %p324 = scmp.eq.s32.totalorder %s45, 1
      %p325 = por %p323, %p324
      %p327 = scmp.ne.s32.totalorder %s312, %s326
      %p328 = scmp.eq.s32.totalorder %s45, 0
      %p329 = por %p327, %p328
      %s331 = sadd.s32 %s330, 1
      %p334 = scmp.eq.s32.totalorder %s39, 1
      %p335 = scmp.ne.s32.totalorder %s330, %s332
      %p336 = scmp.eq.s32.totalorder %s39, 0
      %p337 = por %p335, %p336
      %p338 = scmp.ne.s32.totalorder %s330, %s332
      %p339 = scmp.eq.s32.totalorder %s44, 1
      %p340 = por %p338, %p339
      %p341 = scmp.ne.s32.totalorder %s332, %s333
      %p342 = scmp.eq.s32.totalorder %s44, 0
      %p343 = por %p341, %p342
      %p344 = scmp.ne.s32.totalorder %s332, %s333
      %p345 = scmp.eq.s32.totalorder %s45, 1
      %p346 = por %p344, %p345
      %p348 = scmp.ne.s32.totalorder %s333, %s347
      %p349 = scmp.eq.s32.totalorder %s45, 0
      %p350 = por %p348, %p349
      %s352 = sadd.s32 %s351, 1
      %p355 = scmp.eq.s32.totalorder %s39, 1
      %p356 = scmp.ne.s32.totalorder %s351, %s353
      %p357 = scmp.eq.s32.totalorder %s39, 0
      %p358 = por %p356, %p357
      %p359 = scmp.ne.s32.totalorder %s351, %s353
      %p360 = scmp.eq.s32.totalorder %s44, 1
      %p361 = por %p359, %p360
      %p362 = scmp.ne.s32.totalorder %s353, %s354
      %p363 = scmp.eq.s32.totalorder %s44, 0
      %p364 = por %p362, %p363
      %p365 = scmp.ne.s32.totalorder %s353, %s354
      %p366 = scmp.eq.s32.totalorder %s45, 1
      %p367 = por %p365, %p366
      %p369 = scmp.ne.s32.totalorder %s354, %s368
      %p370 = scmp.eq.s32.totalorder %s45, 0
      %p371 = por %p369, %p370
      %s373 = sadd.s32 %s372, 1
      %p376 = scmp.eq.s32.totalorder %s39, 1
      %p377 = scmp.ne.s32.totalorder %s372, %s374
      %p378 = scmp.eq.s32.totalorder %s39, 0
      %p379 = por %p377, %p378
      %p380 = scmp.ne.s32.totalorder %s372, %s374
      %p381 = scmp.eq.s32.totalorder %s44, 1
      %p382 = por %p380, %p381
      %p383 = scmp.ne.s32.totalorder %s374, %s375
      %p384 = scmp.eq.s32.totalorder %s44, 0
      %p385 = por %p383, %p384
      %p386 = scmp.ne.s32.totalorder %s374, %s375
      %p387 = scmp.eq.s32.totalorder %s45, 1
      %p388 = por %p386, %p387
      %p390 = scmp.ne.s32.totalorder %s375, %s389
      %p391 = scmp.eq.s32.totalorder %s45, 0
      %p392 = por %p390, %p391
      %s394 = sadd.s32 %s393, 1
      %p397 = scmp.eq.s32.totalorder %s39, 1
      %p398 = scmp.ne.s32.totalorder %s393, %s395
      %p399 = scmp.eq.s32.totalorder %s39, 0
      %p400 = por %p398, %p399
      %p401 = scmp.ne.s32.totalorder %s393, %s395
      %p402 = scmp.eq.s32.totalorder %s44, 1
      %p403 = por %p401, %p402
      %p404 = scmp.ne.s32.totalorder %s395, %s396
      %p405 = scmp.eq.s32.totalorder %s44, 0
      %p406 = por %p404, %p405
      %p407 = scmp.ne.s32.totalorder %s395, %s396
      %p408 = scmp.eq.s32.totalorder %s45, 1
      %p409 = por %p407, %p408
      %p411 = scmp.ne.s32.totalorder %s396, %s410
      %p412 = scmp.eq.s32.totalorder %s45, 0
      %p413 = por %p411, %p412
      %s415 = sadd.s32 %s414, 1
      %p418 = scmp.eq.s32.totalorder %s39, 1
      %p419 = scmp.ne.s32.totalorder %s414, %s416
      %p420 = scmp.eq.s32.totalorder %s39, 0
      %p421 = por %p419, %p420
      %p422 = scmp.ne.s32.totalorder %s414, %s416
      %p423 = scmp.eq.s32.totalorder %s44, 1
      %p424 = por %p422, %p423
      %p425 = scmp.ne.s32.totalorder %s416, %s417
      %p426 = scmp.eq.s32.totalorder %s44, 0
      %p427 = por %p425, %p426
      %p428 = scmp.ne.s32.totalorder %s416, %s417
      %p429 = scmp.eq.s32.totalorder %s45, 1
      %p430 = por %p428, %p429
      %p432 = scmp.ne.s32.totalorder %s417, %s431
      %p433 = scmp.eq.s32.totalorder %s45, 0
      %p434 = por %p432, %p433
      %s436 = sadd.s32 %s435, 1
      %p439 = scmp.eq.s32.totalorder %s39, 1
      %p440 = scmp.ne.s32.totalorder %s435, %s437
      %p441 = scmp.eq.s32.totalorder %s39, 0
      %p442 = por %p440, %p441
      %p443 = scmp.ne.s32.totalorder %s435, %s437
      %p444 = scmp.eq.s32.totalorder %s44, 1
      %p445 = por %p443, %p444
      %p446 = scmp.ne.s32.totalorder %s437, %s438
      %p447 = scmp.eq.s32.totalorder %s44, 0
      %p448 = por %p446, %p447
      %p449 = scmp.ne.s32.totalorder %s437, %s438
      %p450 = scmp.eq.s32.totalorder %s45, 1
      %p451 = por %p449, %p450
      %p453 = scmp.ne.s32.totalorder %s438, %s452
      %p454 = scmp.eq.s32.totalorder %s45, 0
      %p455 = por %p453, %p454
      %s457 = sadd.s32 %s456, 1
      %p460 = scmp.eq.s32.totalorder %s39, 1
      %p461 = scmp.ne.s32.totalorder %s456, %s458
      %p462 = scmp.eq.s32.totalorder %s39, 0
      %p463 = por %p461, %p462
      %p464 = scmp.ne.s32.totalorder %s456, %s458
      %p465 = scmp.eq.s32.totalorder %s44, 1
      %p466 = por %p464, %p465
      %p467 = scmp.ne.s32.totalorder %s458, %s459
      %p468 = scmp.eq.s32.totalorder %s44, 0
      %p469 = por %p467, %p468
      %p470 = scmp.ne.s32.totalorder %s458, %s459
      %p471 = scmp.eq.s32.totalorder %s45, 1
      %p472 = por %p470, %p471
      %p474 = scmp.ne.s32.totalorder %s459, %s473
      %p475 = scmp.eq.s32.totalorder %s45, 0
      %p476 = por %p474, %p475
      %s478 = sadd.s32 %s477, 1
      %p481 = scmp.eq.s32.totalorder %s39, 1
      %p482 = scmp.ne.s32.totalorder %s477, %s479
      %p483 = scmp.eq.s32.totalorder %s39, 0
      %p484 = por %p482, %p483
      %p485 = scmp.ne.s32.totalorder %s477, %s479
      %p486 = scmp.eq.s32.totalorder %s44, 1
      %p487 = por %p485, %p486
      %p488 = scmp.ne.s32.totalorder %s479, %s480
      %p489 = scmp.eq.s32.totalorder %s44, 0
      %p490 = por %p488, %p489
      %p491 = scmp.ne.s32.totalorder %s479, %s480
      %p492 = scmp.eq.s32.totalorder %s45, 1
      %p493 = por %p491, %p492
      %p495 = scmp.ne.s32.totalorder %s480, %s494
      %p496 = scmp.eq.s32.totalorder %s45, 0
      %p497 = por %p495, %p496
      %s499 = sadd.s32 %s498, 1
      %p502 = scmp.eq.s32.totalorder %s39, 1
      %p503 = scmp.ne.s32.totalorder %s498, %s500
      %p504 = scmp.eq.s32.totalorder %s39, 0
      %p505 = por %p503, %p504
      %p506 = scmp.ne.s32.totalorder %s498, %s500
      %p507 = scmp.eq.s32.totalorder %s44, 1
      %p508 = por %p506, %p507
      %p509 = scmp.ne.s32.totalorder %s500, %s501
      %p510 = scmp.eq.s32.totalorder %s44, 0
      %p511 = por %p509, %p510
      %p512 = scmp.ne.s32.totalorder %s500, %s501
      %p513 = scmp.eq.s32.totalorder %s45, 1
      %p514 = por %p512, %p513
      %p516 = scmp.ne.s32.totalorder %s501, %s515
      %p517 = scmp.eq.s32.totalorder %s45, 0
      %p518 = por %p516, %p517
      %s519 = ssub.s32 %s46, %s58
      %s520 = ssub.s32 %s47, %s54
      %s521 = sor.u32 %s519, %s520
      %p522 = scmp.eq.s32.totalorder %s521, 0
      %s524 = sadd.s32 %s523, 1
      %s525 = scalar_select %p522, %s523, %s524
      %p528 = pneg %p522
      %p529 = scmp.eq.s32.totalorder %s39, 1
      %p530 = por %p528, %p529
      %p531 = scmp.ne.s32.totalorder %s523, %s526
      %p532 = scmp.eq.s32.totalorder %s39, 0
      %p533 = por %p531, %p532
      %p534 = scmp.ne.s32.totalorder %s523, %s526
      %p535 = scmp.eq.s32.totalorder %s44, 1
      %p536 = por %p534, %p535
      %p537 = scmp.ne.s32.totalorder %s526, %s527
      %p538 = scmp.eq.s32.totalorder %s44, 0
      %p539 = por %p537, %p538
      %p540 = scmp.ne.s32.totalorder %s526, %s527
      %p541 = scmp.eq.s32.totalorder %s45, 1
      %p542 = por %p540, %p541
      %p544 = scmp.ne.s32.totalorder %s527, %s543
      %p545 = scmp.eq.s32.totalorder %s45, 0
      %p546 = por %p544, %p545
      %p547 = scmp.le.s32.totalorder 1, %s39
      %p548 = scmp.lt.s32.totalorder %s39, 3
      %p549 = pnand %p547, %p548
      %p550 = pneg %p549
      // Predicated region
      $region9: #{tpu_custom_call.1} parent=5 // pred_check
        _
      $region10: #{tpu_custom_call.1} parent=5 // pred_check_branch
        %552 = sbr.rel (%p549) target = $region12
      $region11: #{tpu_custom_call.1} parent=5 // pred_region
        %s553 = ssub.s32 %s39, 1
        // Predicated region
        $region13: #{tpu_custom_call.1} parent=11 // pred_check
          %p554 = pneg %p154
        $region14: #{tpu_custom_call.1} parent=11 // pred_check_branch
          %556 = sbr.rel (%p554) target = $region16
        $region15: #{tpu_custom_call.1} parent=11 // pred_region
          _
        $region16: #{tpu_custom_call.1} parent=11 // pred_fallthru
          _
        // Predicated region
        $region17: #{tpu_custom_call.1} parent=11 // pred_check
          %p557 = pneg %p175
        $region18: #{tpu_custom_call.1} parent=11 // pred_check_branch
          %559 = sbr.rel (%p557) target = $region20
        $region19: #{tpu_custom_call.1} parent=11 // pred_region
          _
        $region20: #{tpu_custom_call.1} parent=11 // pred_fallthru
          _
        // Predicated region
        $region21: #{tpu_custom_call.1} parent=11 // pred_check
          %p560 = pneg %p196
        $region22: #{tpu_custom_call.1} parent=11 // pred_check_branch
          %562 = sbr.rel (%p560) target = $region24
        $region23: #{tpu_custom_call.1} parent=11 // pred_region
          _
        $region24: #{tpu_custom_call.1} parent=11 // pred_fallthru
          _
        // Predicated region
        $region25: #{tpu_custom_call.1} parent=11 // pred_check
          %p563 = pneg %p217
        $region26: #{tpu_custom_call.1} parent=11 // pred_check_branch
          %565 = sbr.rel (%p563) target = $region28
        $region27: #{tpu_custom_call.1} parent=11 // pred_region
          _
        $region28: #{tpu_custom_call.1} parent=11 // pred_fallthru
          _
        // Predicated region
        $region29: #{tpu_custom_call.1} parent=11 // pred_check
          %p566 = pneg %p238
        $region30: #{tpu_custom_call.1} parent=11 // pred_check_branch
          %568 = sbr.rel (%p566) target = $region32
        $region31: #{tpu_custom_call.1} parent=11 // pred_region
          _
        $region32: #{tpu_custom_call.1} parent=11 // pred_fallthru
          _
        // Predicated region
        $region33: #{tpu_custom_call.1} parent=11 // pred_check
          %p569 = pneg %p259
        $region34: #{tpu_custom_call.1} parent=11 // pred_check_branch
          %571 = sbr.rel (%p569) target = $region36
        $region35: #{tpu_custom_call.1} parent=11 // pred_region
          _
        $region36: #{tpu_custom_call.1} parent=11 // pred_fallthru
          _
        // Predicated region
        $region37: #{tpu_custom_call.1} parent=11 // pred_check
          %p572 = pneg %p280
        $region38: #{tpu_custom_call.1} parent=11 // pred_check_branch
          %574 = sbr.rel (%p572) target = $region40
        $region39: #{tpu_custom_call.1} parent=11 // pred_region
          %s576 = ssub.s32 256, 256
          %577 = vsyncadd [#allocation6], %s576
          %s578 = sshll.u32 [#allocation7], 4
          %s579 = int_to_ptr.vmem [resolvable:$true] %s578
          %584 = dma.hbm_to_vmem [thread:$0]  %s9, 256, %s579, [#allocation6], 64, 64, 4
        $region40: #{tpu_custom_call.1} parent=11 // pred_fallthru
          _
        // Predicated region
        $region41: #{tpu_custom_call.1} parent=11 // pred_check
          %p585 = pneg %p301
        $region42: #{tpu_custom_call.1} parent=11 // pred_check_branch
          %587 = sbr.rel (%p585) target = $region44
        $region43: #{tpu_custom_call.1} parent=11 // pred_region
          %s589 = ssub.s32 16, 16
          %590 = vsyncadd [#allocation9], %s589
          %s592 = sshll.u32 [#allocation8], 4
          %s593 = int_to_ptr.vmem [resolvable:$true] %s592
          %595 = dma.hbm_to_vmem [thread:$0]  %s10, 16, %s593, [#allocation9]
        $region44: #{tpu_custom_call.1} parent=11 // pred_fallthru
          _
        // Predicated region
        $region45: #{tpu_custom_call.1} parent=11 // pred_check
          %p596 = pneg %p322
        $region46: #{tpu_custom_call.1} parent=11 // pred_check_branch
          %598 = sbr.rel (%p596) target = $region48
        $region47: #{tpu_custom_call.1} parent=11 // pred_region
          %s600 = ssub.s32 16, 16
          %601 = vsyncadd [#allocation9], %s600
          %s603 = sshll.u32 [#allocation10], 4
          %s604 = int_to_ptr.vmem [resolvable:$true] %s603
          %606 = dma.hbm_to_vmem [thread:$0]  %s11, 16, %s604, [#allocation9]
        $region48: #{tpu_custom_call.1} parent=11 // pred_fallthru
          _
        // Predicated region
        $region49: #{tpu_custom_call.1} parent=11 // pred_check
          %p607 = pneg %p343
        $region50: #{tpu_custom_call.1} parent=11 // pred_check_branch
          %609 = sbr.rel (%p607) target = $region52
        $region51: #{tpu_custom_call.1} parent=11 // pred_region
          %s611 = ssub.s32 16, 16
          %612 = vsyncadd [#allocation12], %s611
          %s614 = sshll.u32 [#allocation11], 4
          %s615 = int_to_ptr.vmem [resolvable:$true] %s614
          %617 = dma.hbm_to_vmem [thread:$0]  %s12, 16, %s615, [#allocation12]
        $region52: #{tpu_custom_call.1} parent=11 // pred_fallthru
          _
        // Predicated region
        $region53: #{tpu_custom_call.1} parent=11 // pred_check
          %p618 = pneg %p364
        $region54: #{tpu_custom_call.1} parent=11 // pred_check_branch
          %620 = sbr.rel (%p618) target = $region56
        $region55: #{tpu_custom_call.1} parent=11 // pred_region
          %s622 = ssub.s32 256, 256
          %623 = vsyncadd [#allocation12], %s622
          %s624 = sshll.u32 [#allocation13], 4
          %s625 = int_to_ptr.vmem [resolvable:$true] %s624
          %630 = dma.hbm_to_vmem [thread:$0]  %s13, 256, %s625, [#allocation12], 64, 64, 4
        $region56: #{tpu_custom_call.1} parent=11 // pred_fallthru
          _
        // Predicated region
        $region57: #{tpu_custom_call.1} parent=11 // pred_check
          %p631 = pneg %p385
        $region58: #{tpu_custom_call.1} parent=11 // pred_check_branch
          %633 = sbr.rel (%p631) target = $region60
        $region59: #{tpu_custom_call.1} parent=11 // pred_region
          %s635 = ssub.s32 16, 16
          %636 = vsyncadd [#allocation15], %s635
          %s638 = sshll.u32 [#allocation14], 4
          %s639 = int_to_ptr.vmem [resolvable:$true] %s638
          %641 = dma.hbm_to_vmem [thread:$0]  %s14, 16, %s639, [#allocation15]
        $region60: #{tpu_custom_call.1} parent=11 // pred_fallthru
          _
        // Predicated region
        $region61: #{tpu_custom_call.1} parent=11 // pred_check
          %p642 = pneg %p406
        $region62: #{tpu_custom_call.1} parent=11 // pred_check_branch
          %644 = sbr.rel (%p642) target = $region64
        $region63: #{tpu_custom_call.1} parent=11 // pred_region
          _
        $region64: #{tpu_custom_call.1} parent=11 // pred_fallthru
          _
        // Predicated region
        $region65: #{tpu_custom_call.1} parent=11 // pred_check
          %p645 = pneg %p427
        $region66: #{tpu_custom_call.1} parent=11 // pred_check_branch
          %647 = sbr.rel (%p645) target = $region68
        $region67: #{tpu_custom_call.1} parent=11 // pred_region
          %s649 = ssub.s32 16, 16
          %650 = vsyncadd [#allocation15], %s649
          %s652 = sshll.u32 [#allocation16], 4
          %s653 = int_to_ptr.vmem [resolvable:$true] %s652
          %655 = dma.hbm_to_vmem [thread:$0]  %s16, 16, %s653, [#allocation15]
        $region68: #{tpu_custom_call.1} parent=11 // pred_fallthru
          _
        // Predicated region
        $region69: #{tpu_custom_call.1} parent=11 // pred_check
          %p656 = pneg %p448
        $region70: #{tpu_custom_call.1} parent=11 // pred_check_branch
          %658 = sbr.rel (%p656) target = $region72
        $region71: #{tpu_custom_call.1} parent=11 // pred_region
          _
        $region72: #{tpu_custom_call.1} parent=11 // pred_fallthru
          _
        // Predicated region
        $region73: #{tpu_custom_call.1} parent=11 // pred_check
          %p659 = pneg %p469
        $region74: #{tpu_custom_call.1} parent=11 // pred_check_branch
          %661 = sbr.rel (%p659) target = $region76
        $region75: #{tpu_custom_call.1} parent=11 // pred_region
          _
        $region76: #{tpu_custom_call.1} parent=11 // pred_fallthru
          _
        // Predicated region
        $region77: #{tpu_custom_call.1} parent=11 // pred_check
          %p662 = pneg %p490
        $region78: #{tpu_custom_call.1} parent=11 // pred_check_branch
          %664 = sbr.rel (%p662) target = $region80
        $region79: #{tpu_custom_call.1} parent=11 // pred_region
          _
        $region80: #{tpu_custom_call.1} parent=11 // pred_fallthru
          _
        // Predicated region
        $region81: #{tpu_custom_call.1} parent=11 // pred_check
          %p665 = pneg %p511
        $region82: #{tpu_custom_call.1} parent=11 // pred_check_branch
          %667 = sbr.rel (%p665) target = $region84
        $region83: #{tpu_custom_call.1} parent=11 // pred_region
          _
        $region84: #{tpu_custom_call.1} parent=11 // pred_fallthru
          _
      $region12: #{tpu_custom_call.1} parent=5 // pred_fallthru
        _
      %p668 = scmp.lt.s32.totalorder %s39, 2
      // Predicated region
      $region85: #{tpu_custom_call.1} parent=5 // pred_check
        %p669 = pneg %p668
      $region86: #{tpu_custom_call.1} parent=5 // pred_check_branch
        %671 = sbr.rel (%p669) target = $region88
      $region87: #{tpu_custom_call.1} parent=5 // pred_region
        // Predicated region
        $region89: #{tpu_custom_call.1} parent=87 // pred_check
          %p672 = pneg %p73
        $region90: #{tpu_custom_call.1} parent=87 // pred_check_branch
          %674 = sbr.rel (%p672) target = $region92
        $region91: #{tpu_custom_call.1} parent=87 // pred_region
          %p675 = scmp.lt.s32.totalorder %s46, 1
          %s676 = scalar_select %p675, %s46, 1
          %p677 = scmp.lt.s32.totalorder %s47, 0
          %s678 = scalar_select %p677, %s47, 0
          %s679 = sadd.s32 %s678, %s676
          %s680 = smul.addr %s679, 8
          %s681 = scalar_lea.vmem %s0, %s680
        $region92: #{tpu_custom_call.1} parent=87 // pred_fallthru
          _
        // Predicated region
        $region93: #{tpu_custom_call.1} parent=87 // pred_check
          %p682 = pneg %p101
        $region94: #{tpu_custom_call.1} parent=87 // pred_check_branch
          %684 = sbr.rel (%p682) target = $region96
        $region95: #{tpu_custom_call.1} parent=87 // pred_region
          %s685 = sand.u32 %s91, 1
          %s686 = scalar_lea.sflag [#allocation3], %s685
          %s687 = sand.u32 %s91, 1
          %s688 = smul.addr %s687, 32
          %s689 = scalar_lea.vmem [#allocation2], %s688
          %s691 = ssub.s32 512, 512
          %692 = vsyncadd %s686, %s691
          %s693 = smul.addr %s46, 4
          %s694 = sadd.s32 %s47, %s693
          %s695 = smul.addr %s694, 128
          %s696 = scalar_lea.hbm %s1, %s695
          %s697 = sshll.u32 %s689, 4
          %s698 = int_to_ptr.vmem [resolvable:$true] %s697
          %703 = dma.hbm_to_vmem [thread:$0]  %s696, 512, %s698, %s686, 128, 128, 8
        $region96: #{tpu_custom_call.1} parent=87 // pred_fallthru
          _
        // Predicated region
        $region97: #{tpu_custom_call.1} parent=87 // pred_check
          %p704 = pneg %p127
        $region98: #{tpu_custom_call.1} parent=87 // pred_check_branch
          %706 = sbr.rel (%p704) target = $region100
        $region99: #{tpu_custom_call.1} parent=87 // pred_region
          %s707 = sand.u32 %s39, 1
          %s708 = scalar_lea.sflag [#allocation6], %s707
          %s709 = sand.u32 %s117, 1
          %s710 = smul.addr %s709, 32
          %s711 = scalar_lea.vmem [#allocation5], %s710
          %s713 = ssub.s32 512, 512
          %714 = vsyncadd %s708, %s713
          %s715 = smul.addr %s46, 4
          %s716 = smul.addr %s715, 128
          %s717 = scalar_lea.hbm %s2, %s716
          %s718 = sshll.u32 %s711, 4
          %s719 = int_to_ptr.vmem [resolvable:$true] %s718
          %724 = dma.hbm_to_vmem [thread:$0]  %s717, 512, %s719, %s708, 128, 128, 8
        $region100: #{tpu_custom_call.1} parent=87 // pred_fallthru
          _
      $region88: #{tpu_custom_call.1} parent=5 // pred_fallthru
        _
      %p725 = scmp.le.s32.totalorder 1, %s39
      %p726 = scmp.lt.s32.totalorder %s39, 3
      %p727 = pnand %p725, %p726
      %p728 = pneg %p727
      // Predicated region
      $region101: #{tpu_custom_call.1} parent=5 // pred_check
        _
      $region102: #{tpu_custom_call.1} parent=5 // pred_check_branch
        %730 = sbr.rel (%p727) target = $region104
      $region103: #{tpu_custom_call.1} parent=5 // pred_region
        %s731 = ssub.s32 %s39, 1
        %s732 = sand.u32 %s94, 1
        %s733 = scalar_lea.sflag [#allocation3], %s732
        %s734 = sand.u32 %s94, 1
        %s735 = smul.addr %s734, 32
        %s736 = scalar_lea.vmem [#allocation2], %s735
        // Predicated region
        $region105: #{tpu_custom_call.1} parent=103 // pred_check
          %p737 = pneg %p107
        $region106: #{tpu_custom_call.1} parent=103 // pred_check_branch
          %739 = sbr.rel (%p737) target = $region108
        $region107: #{tpu_custom_call.1} parent=103 // pred_region
          %740 = dma.done %s733, 512
        $region108: #{tpu_custom_call.1} parent=103 // pred_fallthru
          _
        %s741 = sand.u32 %s44, 1
        %s742 = scalar_lea.sflag [#allocation6], %s741
        %s743 = sand.u32 %s120, 1
        %s744 = smul.addr %s743, 32
        %s745 = scalar_lea.vmem [#allocation5], %s744
        // Predicated region
        $region109: #{tpu_custom_call.1} parent=103 // pred_check
          %p746 = pneg %p133
        $region110: #{tpu_custom_call.1} parent=103 // pred_check_branch
          %748 = sbr.rel (%p746) target = $region112
        $region111: #{tpu_custom_call.1} parent=103 // pred_region
          %749 = dma.done %s742, 512
        $region112: #{tpu_custom_call.1} parent=103 // pred_fallthru
          _
        // Predicated region
        $region113: #{tpu_custom_call.1} parent=103 // pred_check
          %p750 = pneg %p280
        $region114: #{tpu_custom_call.1} parent=103 // pred_check_branch
          %752 = sbr.rel (%p750) target = $region116
        $region115: #{tpu_custom_call.1} parent=103 // pred_region
          %753 = dma.done [#allocation6], 256
        $region116: #{tpu_custom_call.1} parent=103 // pred_fallthru
          _
        // Predicated region
        $region117: #{tpu_custom_call.1} parent=103 // pred_check
          %p754 = pneg %p301
        $region118: #{tpu_custom_call.1} parent=103 // pred_check_branch
          %756 = sbr.rel (%p754) target = $region120
        $region119: #{tpu_custom_call.1} parent=103 // pred_region
          %757 = dma.done [#allocation9], 16
        $region120: #{tpu_custom_call.1} parent=103 // pred_fallthru
          _
        // Predicated region
        $region121: #{tpu_custom_call.1} parent=103 // pred_check
          %p758 = pneg %p322
        $region122: #{tpu_custom_call.1} parent=103 // pred_check_branch
          %760 = sbr.rel (%p758) target = $region124
        $region123: #{tpu_custom_call.1} parent=103 // pred_region
          %761 = dma.done [#allocation9], 16
        $region124: #{tpu_custom_call.1} parent=103 // pred_fallthru
          _
        // Predicated region
        $region125: #{tpu_custom_call.1} parent=103 // pred_check
          %p762 = pneg %p343
        $region126: #{tpu_custom_call.1} parent=103 // pred_check_branch
          %764 = sbr.rel (%p762) target = $region128
        $region127: #{tpu_custom_call.1} parent=103 // pred_region
          %765 = dma.done [#allocation12], 16
        $region128: #{tpu_custom_call.1} parent=103 // pred_fallthru
          _
        // Predicated region
        $region129: #{tpu_custom_call.1} parent=103 // pred_check
          %p766 = pneg %p364
        $region130: #{tpu_custom_call.1} parent=103 // pred_check_branch
          %768 = sbr.rel (%p766) target = $region132
        $region131: #{tpu_custom_call.1} parent=103 // pred_region
          %769 = dma.done [#allocation12], 256
        $region132: #{tpu_custom_call.1} parent=103 // pred_fallthru
          _
        // Predicated region
        $region133: #{tpu_custom_call.1} parent=103 // pred_check
          %p770 = pneg %p385
        $region134: #{tpu_custom_call.1} parent=103 // pred_check_branch
          %772 = sbr.rel (%p770) target = $region136
        $region135: #{tpu_custom_call.1} parent=103 // pred_region
          %773 = dma.done [#allocation15], 16
        $region136: #{tpu_custom_call.1} parent=103 // pred_fallthru
          _
        // Predicated region
        $region137: #{tpu_custom_call.1} parent=103 // pred_check
          %p774 = pneg %p427
        $region138: #{tpu_custom_call.1} parent=103 // pred_check_branch
          %776 = sbr.rel (%p774) target = $region140
        $region139: #{tpu_custom_call.1} parent=103 // pred_region
          %777 = dma.done [#allocation15], 16
        $region140: #{tpu_custom_call.1} parent=103 // pred_fallthru
          _
        %p778 = scmp.lt.s32.totalorder %s48, 1
        %s779 = scalar_select %p778, %s48, 1
        %p780 = scmp.lt.s32.totalorder %s49, 0
        %s781 = scalar_select %p780, %s49, 0
        %s782 = sadd.s32 %s781, %s779
        %s783 = smul.addr %s782, 8
        %s784 = scalar_lea.vmem %s0, %s783
        %p785 = pneg %p79
        %p786 = pneg %p76
        %s787 = sand.u32 %s94, 1
        %s788 = scalar_lea.sflag [#allocation3], %s787
        %s789 = sand.u32 %s94, 1
        %s790 = smul.addr %s789, 32
        %s791 = scalar_lea.vmem [#allocation2], %s790
        %p792 = pneg %p107
        %p793 = pneg %p104
        %s794 = sand.u32 %s44, 1
        %s795 = scalar_lea.sflag [#allocation6], %s794
        %s796 = sand.u32 %s120, 1
        %s797 = smul.addr %s796, 32
        %s798 = scalar_lea.vmem [#allocation5], %s797
        %p799 = pneg %p133
        %p800 = pneg %p130
        %p801 = pneg %p154
        %p802 = pneg %p151
        %p803 = pneg %p175
        %p804 = pneg %p172
        %p805 = pneg %p196
        %p806 = pneg %p193
        %p807 = pneg %p217
        %p808 = pneg %p214
        %p809 = pneg %p238
        %p810 = pneg %p235
        %p811 = pneg %p259
        %p812 = pneg %p256
        %p813 = pneg %p280
        %p814 = pneg %p277
        %p815 = pneg %p301
        %p816 = pneg %p298
        %p817 = pneg %p322
        %p818 = pneg %p319
        %p819 = pneg %p343
        %p820 = pneg %p340
        %p821 = pneg %p364
        %p822 = pneg %p361
        %p823 = pneg %p385
        %p824 = pneg %p382
        %p825 = pneg %p406
        %p826 = pneg %p403
        %p827 = pneg %p427
        %p828 = pneg %p424
        %p829 = pneg %p448
        %p830 = pneg %p445
        %p831 = pneg %p469
        %p832 = pneg %p466
        %p833 = pneg %p490
        %p834 = pneg %p487
        %p835 = pneg %p511
        %p836 = pneg %p508
        %p837 = pneg %p539
        %p838 = pneg %p536
        %s839 = sand.u32 %s526, 1
        %s840 = scalar_lea.sflag [#allocation4], %s839
        %s841 = sand.u32 %s526, 1
        %s842 = smul.addr %s841, 8
        %s843 = scalar_lea.vmem [#allocation17], %s842
        %p844 = scmp.lt.s32.totalorder %s48, 1
        %s845 = scalar_select %p844, %s48, 1
        %p846 = scmp.lt.s32.totalorder %s49, 0
        %s847 = scalar_select %p846, %s49, 0
        %s848 = sadd.s32 %s847, %s845
        %s849 = smul.addr %s848, 8
        %s850 = scalar_lea.vmem %s0, %s849
        %v852 = vld [vmem:[%s850] sm:$0xff]
        %v853 = vld [vmem:[%s736] sm:$0xff]
        %v854 = vld [vmem:[%s736 + $0x8] sm:$0xff]
        %v855 = vld [vmem:[%s736 + $0x10] sm:$0xff]
        %v856 = vld [vmem:[%s736 + $0x18] sm:$0xff]
        %v857 = vld [vmem:[%s745] sm:$0xff]
        %v858 = vld [vmem:[%s745 + $0x8] sm:$0xff]
        %v859 = vld [vmem:[%s745 + $0x10] sm:$0xff]
        %v860 = vld [vmem:[%s745 + $0x18] sm:$0xff]
        %v861 = vpack.c.bf16 %v854, %v853
        %v862 = vpack.c.bf16 %v856, %v855
        %v863 = vld [vmem:[%s3] sm:$0xf]
        %v864 = vld [vmem:[%s4] sm:$0x1]
        %v866 = vlaneseq
        %v867 = vshrl.u32 %v866, 7
        %v868 = vsub.s32 0, %v867
        %v869 = vrot.slane %v864, %v868
        %vm871 = vcmask 64512
        %v873 = vsel %vm871, %v861, 0
        %v876 = vsel %vm871, %v862, 0
        %vm878 = vcmask 1043456
        %v880 = vsel %vm878, %v863, 0
        %882 = vmatprep.subr.bf16.mxu0 0
        %883 = vmatpush1.bf16.msra.mxu0 0
        %884 = vmatprep.subr.bf16.mxu0 0
        %885 = vmatpush1.bf16.msra.mxu0 0
        %886 = vmatprep.subr.bf16.mxu0 0
        %887 = vmatpush1.bf16.msra.mxu0 0
        %888 = vmatprep.subr.bf16.mxu0 0
        %889 = vmatpush1.bf16.msra.mxu0 0
        %890 = vmatprep.subr.bf16.mxu0 0
        %891 = vmatpush1.bf16.msra.mxu0 0
        %892 = vmatprep.subr.bf16.mxu0 0
        %893 = vmatpush1.bf16.msra.mxu0 0
        %894 = vmatprep.subr.bf16.mxu0 0
        %895 = vmatpush1.bf16.msra.mxu0 0
        %896 = vmatprep.subr.bf16.mxu0 0
        %897 = vmatpush1.bf16.msra.mxu0 %v880
        %898 = vmatprep.subr.bf16.mxu0 0
        %899 = vmatpush2.bf16.msra.mxu0 0
        %900 = vmatprep.subr.bf16.mxu0 0
        %901 = vmatpush2.bf16.msra.mxu0 0
        %902 = vmatprep.subr.bf16.mxu0 0
        %903 = vmatpush2.bf16.msra.mxu0 0
        %904 = vmatprep.subr.bf16.mxu0 0
        %905 = vmatpush2.bf16.msra.mxu0 0
        %906 = vmatprep.subr.bf16.mxu0 0
        %907 = vmatpush2.bf16.msra.mxu0 0
        %908 = vmatprep.subr.bf16.mxu0 0
        %909 = vmatpush2.bf16.msra.mxu0 0
        %910 = vmatprep.subr.bf16.mxu0 0
        %911 = vmatpush2.bf16.msra.mxu0 0
        %912 = vmatprep.subr.bf16.mxu0 0
        %913 = vmatpush2.bf16.msra.mxu0 0
        %914 = vmatprep.mubr.bf16.mxu0 0
        %915 = vmatmul.mubr.bf16.gmra.mxu0 %v873
        %v916 = vpop.f32.mrf.mxu0
        %v917 = vadd.f32 %v869, %v916
        %v918 = vpop.f32.mrf.mxu0
        %v919 = vpop.f32.mrf.mxu0
        %v920 = vadd.f32 %v869, %v919
        %v921 = vpop.f32.mrf.mxu0
        %922 = vmatprep.mubr.bf16.mxu0 0
        %923 = vmatmul.mubr.bf16.gmra.mxu0 %v876
        %v924 = vpop.f32.mrf.mxu0
        %v925 = vadd.f32 %v869, %v924
        %v926 = vpop.f32.mrf.mxu0
        %v927 = vpop.f32.mrf.mxu0
        %v928 = vadd.f32 %v869, %v927
        %v929 = vpop.f32.mrf.mxu0
        %930 = vdwg.mxu0
        %v931 = vpack.c.bf16 %v858, %v857
        %v932 = vpack.c.bf16 %v860, %v859
        %v933 = vld [vmem:[%s5] sm:$0xf]
        %v934 = vld [vmem:[%s6] sm:$0x1]
        %v936 = vlaneseq
        %v937 = vshrl.u32 %v936, 7
        %v938 = vsub.s32 0, %v937
        %v939 = vrot.slane %v934, %v938
        %v942 = vsel %vm871, %v931, 0
        %v945 = vsel %vm871, %v932, 0
        %v948 = vsel %vm878, %v933, 0
        %950 = vmatprep.subr.bf16.mxu0 0
        %951 = vmatpush1.bf16.msra.mxu0 0
        %952 = vmatprep.subr.bf16.mxu0 0
        %953 = vmatpush1.bf16.msra.mxu0 0
        %954 = vmatprep.subr.bf16.mxu0 0
        %955 = vmatpush1.bf16.msra.mxu0 0
        %956 = vmatprep.subr.bf16.mxu0 0
        %957 = vmatpush1.bf16.msra.mxu0 0
        %958 = vmatprep.subr.bf16.mxu0 0
        %959 = vmatpush1.bf16.msra.mxu0 0
        %960 = vmatprep.subr.bf16.mxu0 0
        %961 = vmatpush1.bf16.msra.mxu0 0
        %962 = vmatprep.subr.bf16.mxu0 0
        %963 = vmatpush1.bf16.msra.mxu0 0
        %964 = vmatprep.subr.bf16.mxu0 0
        %965 = vmatpush1.bf16.msra.mxu0 %v948
        %966 = vmatprep.subr.bf16.mxu0 0
        %967 = vmatpush2.bf16.msra.mxu0 0
        %968 = vmatprep.subr.bf16.mxu0 0
        %969 = vmatpush2.bf16.msra.mxu0 0
        %970 = vmatprep.subr.bf16.mxu0 0
        %971 = vmatpush2.bf16.msra.mxu0 0
        %972 = vmatprep.subr.bf16.mxu0 0
        %973 = vmatpush2.bf16.msra.mxu0 0
        %974 = vmatprep.subr.bf16.mxu0 0
        %975 = vmatpush2.bf16.msra.mxu0 0
        %976 = vmatprep.subr.bf16.mxu0 0
        %977 = vmatpush2.bf16.msra.mxu0 0
        %978 = vmatprep.subr.bf16.mxu0 0
        %979 = vmatpush2.bf16.msra.mxu0 0
        %980 = vmatprep.subr.bf16.mxu0 0
        %981 = vmatpush2.bf16.msra.mxu0 0
        %982 = vmatprep.mubr.bf16.mxu0 0
        %983 = vmatmul.mubr.bf16.gmra.mxu0 %v942
        %v984 = vpop.f32.mrf.mxu0
        %v985 = vadd.f32 %v939, %v984
        %v986 = vpop.f32.mrf.mxu0
        %v987 = vpop.f32.mrf.mxu0
        %v988 = vadd.f32 %v939, %v987
        %v989 = vpop.f32.mrf.mxu0
        %990 = vmatprep.mubr.bf16.mxu0 0
        %991 = vmatmul.mubr.bf16.gmra.mxu0 %v945
        %v992 = vpop.f32.mrf.mxu0
        %v993 = vadd.f32 %v939, %v992
        %v994 = vpop.f32.mrf.mxu0
        %v995 = vpop.f32.mrf.mxu0
        %v996 = vadd.f32 %v939, %v995
        %v997 = vpop.f32.mrf.mxu0
        %998 = vdwg.mxu0
        %v999 = vld [vmem:[%s7] sm:$0xf]
        %v1000 = vld [vmem:[%s8] sm:$0x1]
        %v1002 = vlaneseq
        %v1003 = vshrl.u32 %v1002, 7
        %v1004 = vsub.s32 0, %v1003
        %v1005 = vrot.slane %v1000, %v1004
        %v1008 = vsel %vm878, %v999, 0
        %1010 = vmatprep.subr.bf16.mxu0 0
        %1011 = vmatpush1.bf16.msra.mxu0 0
        %1012 = vmatprep.subr.bf16.mxu0 0
        %1013 = vmatpush1.bf16.msra.mxu0 0
        %1014 = vmatprep.subr.bf16.mxu0 0
        %1015 = vmatpush1.bf16.msra.mxu0 0
        %1016 = vmatprep.subr.bf16.mxu0 0
        %1017 = vmatpush1.bf16.msra.mxu0 0
        %1018 = vmatprep.subr.bf16.mxu0 0
        %1019 = vmatpush1.bf16.msra.mxu0 0
        %1020 = vmatprep.subr.bf16.mxu0 0
        %1021 = vmatpush1.bf16.msra.mxu0 0
        %1022 = vmatprep.subr.bf16.mxu0 0
        %1023 = vmatpush1.bf16.msra.mxu0 0
        %1024 = vmatprep.subr.bf16.mxu0 0
        %1025 = vmatpush1.bf16.msra.mxu0 %v1008
        %1026 = vmatprep.subr.bf16.mxu0 0
        %1027 = vmatpush2.bf16.msra.mxu0 0
        %1028 = vmatprep.subr.bf16.mxu0 0
        %1029 = vmatpush2.bf16.msra.mxu0 0
        %1030 = vmatprep.subr.bf16.mxu0 0
        %1031 = vmatpush2.bf16.msra.mxu0 0
        %1032 = vmatprep.subr.bf16.mxu0 0
        %1033 = vmatpush2.bf16.msra.mxu0 0
        %1034 = vmatprep.subr.bf16.mxu0 0
        %1035 = vmatpush2.bf16.msra.mxu0 0
        %1036 = vmatprep.subr.bf16.mxu0 0
        %1037 = vmatpush2.bf16.msra.mxu0 0
        %1038 = vmatprep.subr.bf16.mxu0 0
        %1039 = vmatpush2.bf16.msra.mxu0 0
        %1040 = vmatprep.subr.bf16.mxu0 0
        %1041 = vmatpush2.bf16.msra.mxu0 0
        %1042 = vmatprep.mubr.bf16.mxu0 0
        %1043 = vmatmul.mubr.bf16.gmra.mxu0 %v942
        %v1044 = vpop.f32.mrf.mxu0
        %v1045 = vadd.f32 %v1005, %v1044
        %v1046 = vpop.f32.mrf.mxu0
        %v1047 = vpop.f32.mrf.mxu0
        %v1048 = vadd.f32 %v1005, %v1047
        %v1049 = vpop.f32.mrf.mxu0
        %1050 = vmatprep.mubr.bf16.mxu0 0
        %1051 = vmatmul.mubr.bf16.gmra.mxu0 %v945
        %v1052 = vpop.f32.mrf.mxu0
        %v1053 = vadd.f32 %v1005, %v1052
        %v1054 = vpop.f32.mrf.mxu0
        %v1055 = vpop.f32.mrf.mxu0
        %v1056 = vadd.f32 %v1005, %v1055
        %v1057 = vpop.f32.mrf.mxu0
        %1058 = vdwg.mxu0
        %v1059 = vpack.c.bf16 %v917, %v917
        %v1060 = vpack.c.bf16 %v920, %v920
        %v1061 = vpack.c.bf16 %v925, %v925
        %v1062 = vpack.c.bf16 %v928, %v928
        %v1063 = vpack.c.bf16 %v985, %v985
        %v1064 = vpack.c.bf16 %v988, %v988
        %v1065 = vpack.c.bf16 %v993, %v993
        %v1066 = vpack.c.bf16 %v996, %v996
        %v1068 = vsel %vm871, %v1059, 0
        %v1071 = vsel %vm871, %v1063, 0
        %1073 = vmatprep.subr.bf16.mxu0 0
        %1074 = vmatpush1.bf16.xpose.msra.mxu0 0
        %1075 = vmatprep.subr.bf16.mxu0 0
        %1076 = vmatpush1.bf16.xpose.msra.mxu0 0
        %1077 = vmatprep.subr.bf16.mxu0 0
        %1078 = vmatpush1.bf16.xpose.msra.mxu0 0
        %1079 = vmatprep.subr.bf16.mxu0 0
        %1080 = vmatpush1.bf16.xpose.msra.mxu0 0
        %1081 = vmatprep.subr.bf16.mxu0 0
        %1082 = vmatpush1.bf16.xpose.msra.mxu0 0
        %1083 = vmatprep.subr.bf16.mxu0 0
        %1084 = vmatpush1.bf16.xpose.msra.mxu0 0
        %1085 = vmatprep.subr.bf16.mxu0 0
        %1086 = vmatpush1.bf16.xpose.msra.mxu0 0
        %1087 = vmatprep.subr.bf16.mxu0 0
        %1088 = vmatpush1.bf16.xpose.msra.mxu0 %v1071
        %1089 = vmatprep.subr.bf16.mxu0 0
        %1090 = vmatpush2.bf16.xpose.msra.mxu0 0
        %1091 = vmatprep.subr.bf16.mxu0 0
        %1092 = vmatpush2.bf16.xpose.msra.mxu0 0
        %1093 = vmatprep.subr.bf16.mxu0 0
        %1094 = vmatpush2.bf16.xpose.msra.mxu0 0
        %1095 = vmatprep.subr.bf16.mxu0 0
        %1096 = vmatpush2.bf16.xpose.msra.mxu0 0
        %1097 = vmatprep.subr.bf16.mxu0 0
        %1098 = vmatpush2.bf16.xpose.msra.mxu0 0
        %1099 = vmatprep.subr.bf16.mxu0 0
        %1100 = vmatpush2.bf16.xpose.msra.mxu0 0
        %1101 = vmatprep.subr.bf16.mxu0 0
        %1102 = vmatpush2.bf16.xpose.msra.mxu0 0
        %1103 = vmatprep.subr.bf16.mxu0 0
        %1104 = vmatpush2.bf16.xpose.msra.mxu0 0
        %1105 = vmatprep.mubr.bf16.mxu0 0
        %1106 = vmatmul.mubr.bf16.gmra.mxu0 %v1068
        %v1107 = vpop.f32.mrf.mxu0
        %v1108 = vadd.f32 0.0, %v1107
        %v1109 = vpop.f32.mrf.mxu0
        %v1110 = vpop.f32.mrf.mxu0
        %v1111 = vpop.f32.mrf.mxu0
        %1112 = vdwg.mxu0
        %v1114 = vsel %vm871, %v1060, 0
        %v1117 = vsel %vm871, %v1064, 0
        %1119 = vmatprep.subr.bf16.mxu0 0
        %1120 = vmatpush1.bf16.xpose.msra.mxu0 0
        %1121 = vmatprep.subr.bf16.mxu0 0
        %1122 = vmatpush1.bf16.xpose.msra.mxu0 0
        %1123 = vmatprep.subr.bf16.mxu0 0
        %1124 = vmatpush1.bf16.xpose.msra.mxu0 0
        %1125 = vmatprep.subr.bf16.mxu0 0
        %1126 = vmatpush1.bf16.xpose.msra.mxu0 0
        %1127 = vmatprep.subr.bf16.mxu0 0
        %1128 = vmatpush1.bf16.xpose.msra.mxu0 0
        %1129 = vmatprep.subr.bf16.mxu0 0
        %1130 = vmatpush1.bf16.xpose.msra.mxu0 0
        %1131 = vmatprep.subr.bf16.mxu0 0
        %1132 = vmatpush1.bf16.xpose.msra.mxu0 0
        %1133 = vmatprep.subr.bf16.mxu0 0
        %1134 = vmatpush1.bf16.xpose.msra.mxu0 %v1117
        %1135 = vmatprep.subr.bf16.mxu0 0
        %1136 = vmatpush2.bf16.xpose.msra.mxu0 0
        %1137 = vmatprep.subr.bf16.mxu0 0
        %1138 = vmatpush2.bf16.xpose.msra.mxu0 0
        %1139 = vmatprep.subr.bf16.mxu0 0
        %1140 = vmatpush2.bf16.xpose.msra.mxu0 0
        %1141 = vmatprep.subr.bf16.mxu0 0
        %1142 = vmatpush2.bf16.xpose.msra.mxu0 0
        %1143 = vmatprep.subr.bf16.mxu0 0
        %1144 = vmatpush2.bf16.xpose.msra.mxu0 0
        %1145 = vmatprep.subr.bf16.mxu0 0
        %1146 = vmatpush2.bf16.xpose.msra.mxu0 0
        %1147 = vmatprep.subr.bf16.mxu0 0
        %1148 = vmatpush2.bf16.xpose.msra.mxu0 0
        %1149 = vmatprep.subr.bf16.mxu0 0
        %1150 = vmatpush2.bf16.xpose.msra.mxu0 0
        %1151 = vmatprep.mubr.bf16.mxu0 0
        %1152 = vmatmul.mubr.bf16.gmra.mxu0 %v1114
        %v1153 = vpop.f32.mrf.mxu0
        %v1154 = vadd.f32 0.0, %v1153
        %v1155 = vpop.f32.mrf.mxu0
        %v1156 = vpop.f32.mrf.mxu0
        %v1157 = vpop.f32.mrf.mxu0
        %1158 = vdwg.mxu0
        %v1160 = vsel %vm871, %v1061, 0
        %v1163 = vsel %vm871, %v1065, 0
        %1165 = vmatprep.subr.bf16.mxu0 0
        %1166 = vmatpush1.bf16.xpose.msra.mxu0 0
        %1167 = vmatprep.subr.bf16.mxu0 0
        %1168 = vmatpush1.bf16.xpose.msra.mxu0 0
        %1169 = vmatprep.subr.bf16.mxu0 0
        %1170 = vmatpush1.bf16.xpose.msra.mxu0 0
        %1171 = vmatprep.subr.bf16.mxu0 0
        %1172 = vmatpush1.bf16.xpose.msra.mxu0 0
        %1173 = vmatprep.subr.bf16.mxu0 0
        %1174 = vmatpush1.bf16.xpose.msra.mxu0 0
        %1175 = vmatprep.subr.bf16.mxu0 0
        %1176 = vmatpush1.bf16.xpose.msra.mxu0 0
        %1177 = vmatprep.subr.bf16.mxu0 0
        %1178 = vmatpush1.bf16.xpose.msra.mxu0 0
        %1179 = vmatprep.subr.bf16.mxu0 0
        %1180 = vmatpush1.bf16.xpose.msra.mxu0 %v1163
        %1181 = vmatprep.subr.bf16.mxu0 0
        %1182 = vmatpush2.bf16.xpose.msra.mxu0 0
        %1183 = vmatprep.subr.bf16.mxu0 0
        %1184 = vmatpush2.bf16.xpose.msra.mxu0 0
        %1185 = vmatprep.subr.bf16.mxu0 0
        %1186 = vmatpush2.bf16.xpose.msra.mxu0 0
        %1187 = vmatprep.subr.bf16.mxu0 0
        %1188 = vmatpush2.bf16.xpose.msra.mxu0 0
        %1189 = vmatprep.subr.bf16.mxu0 0
        %1190 = vmatpush2.bf16.xpose.msra.mxu0 0
        %1191 = vmatprep.subr.bf16.mxu0 0
        %1192 = vmatpush2.bf16.xpose.msra.mxu0 0
        %1193 = vmatprep.subr.bf16.mxu0 0
        %1194 = vmatpush2.bf16.xpose.msra.mxu0 0
        %1195 = vmatprep.subr.bf16.mxu0 0
        %1196 = vmatpush2.bf16.xpose.msra.mxu0 0
        %1197 = vmatprep.mubr.bf16.mxu0 0
        %1198 = vmatmul.mubr.bf16.gmra.mxu0 %v1160
        %v1199 = vpop.f32.mrf.mxu0
        %v1200 = vadd.f32 0.0, %v1199
        %v1201 = vpop.f32.mrf.mxu0
        %v1202 = vpop.f32.mrf.mxu0
        %v1203 = vpop.f32.mrf.mxu0
        %1204 = vdwg.mxu0
        %v1206 = vsel %vm871, %v1062, 0
        %v1209 = vsel %vm871, %v1066, 0
        %1211 = vmatprep.subr.bf16.mxu0 0
        %1212 = vmatpush1.bf16.xpose.msra.mxu0 0
        %1213 = vmatprep.subr.bf16.mxu0 0
        %1214 = vmatpush1.bf16.xpose.msra.mxu0 0
        %1215 = vmatprep.subr.bf16.mxu0 0
        %1216 = vmatpush1.bf16.xpose.msra.mxu0 0
        %1217 = vmatprep.subr.bf16.mxu0 0
        %1218 = vmatpush1.bf16.xpose.msra.mxu0 0
        %1219 = vmatprep.subr.bf16.mxu0 0
        %1220 = vmatpush1.bf16.xpose.msra.mxu0 0
        %1221 = vmatprep.subr.bf16.mxu0 0
        %1222 = vmatpush1.bf16.xpose.msra.mxu0 0
        %1223 = vmatprep.subr.bf16.mxu0 0
        %1224 = vmatpush1.bf16.xpose.msra.mxu0 0
        %1225 = vmatprep.subr.bf16.mxu0 0
        %1226 = vmatpush1.bf16.xpose.msra.mxu0 %v1209
        %1227 = vmatprep.subr.bf16.mxu0 0
        %1228 = vmatpush2.bf16.xpose.msra.mxu0 0
        %1229 = vmatprep.subr.bf16.mxu0 0
        %1230 = vmatpush2.bf16.xpose.msra.mxu0 0
        %1231 = vmatprep.subr.bf16.mxu0 0
        %1232 = vmatpush2.bf16.xpose.msra.mxu0 0
        %1233 = vmatprep.subr.bf16.mxu0 0
        %1234 = vmatpush2.bf16.xpose.msra.mxu0 0
        %1235 = vmatprep.subr.bf16.mxu0 0
        %1236 = vmatpush2.bf16.xpose.msra.mxu0 0
        %1237 = vmatprep.subr.bf16.mxu0 0
        %1238 = vmatpush2.bf16.xpose.msra.mxu0 0
        %1239 = vmatprep.subr.bf16.mxu0 0
        %1240 = vmatpush2.bf16.xpose.msra.mxu0 0
        %1241 = vmatprep.subr.bf16.mxu0 0
        %1242 = vmatpush2.bf16.xpose.msra.mxu0 0
        %1243 = vmatprep.mubr.bf16.mxu0 0
        %1244 = vmatmul.mubr.bf16.gmra.mxu0 %v1206
        %v1245 = vpop.f32.mrf.mxu0
        %v1246 = vadd.f32 0.0, %v1245
        %v1247 = vpop.f32.mrf.mxu0
        %v1248 = vpop.f32.mrf.mxu0
        %v1249 = vpop.f32.mrf.mxu0
        %1250 = vdwg.mxu0
        %v1251 = vmul.f32 %v1108, 0.35355338
        %v1252 = vmul.f32 %v1154, 0.35355338
        %v1253 = vmul.f32 %v1200, 0.35355338
        %v1254 = vmul.f32 %v1246, 0.35355338
        %v1255 = vsel %vm871, %v1251, -inf
        %1256 = vmax.xlane.f32.xlu0 %v1255
        %v1257 = vpop.xlane.xlu0 %1256
        %v1258 = vsel %vm871, %v1252, -inf
        %1259 = vmax.xlane.f32.xlu0 %v1258
        %v1260 = vpop.xlane.xlu0 %1259
        %v1261 = vsel %vm871, %v1253, -inf
        %1262 = vmax.xlane.f32.xlu0 %v1261
        %v1263 = vpop.xlane.xlu0 %1262
        %v1264 = vsel %vm871, %v1254, -inf
        %1265 = vmax.xlane.f32.xlu0 %v1264
        %v1266 = vpop.xlane.xlu0 %1265
        %v1267 = vsub.f32 %v1251, %v1257
        %v1268 = vsub.f32 %v1252, %v1260
        %v1269 = vsub.f32 %v1253, %v1263
        %v1270 = vsub.f32 %v1254, %v1266
        %v1271 = vmul.f32 %v1267, 1.442695
        %v1272 = vpow.pop %v1271
        %v1273 = vmul.f32 %v1268, 1.442695
        %v1274 = vpow.pop %v1273
        %v1275 = vmul.f32 %v1269, 1.442695
        %v1276 = vpow.pop %v1275
        %v1277 = vmul.f32 %v1270, 1.442695
        %v1278 = vpow.pop %v1277
        %v1279 = vsel %vm871, %v1272, 0.0
        %1280 = vadd.xlane.f32.xlu0 %v1279
        %v1281 = vpop.xlane.xlu0 %1280
        %v1282 = vsel %vm871, %v1274, 0.0
        %1283 = vadd.xlane.f32.xlu0 %v1282
        %v1284 = vpop.xlane.xlu0 %1283
        %v1285 = vsel %vm871, %v1276, 0.0
        %1286 = vadd.xlane.f32.xlu0 %v1285
        %v1287 = vpop.xlane.xlu0 %1286
        %v1288 = vsel %vm871, %v1278, 0.0
        %1289 = vadd.xlane.f32.xlu0 %v1288
        %v1290 = vpop.xlane.xlu0 %1289
        %v1291 = vrcp.pop %v1281
        %v1292 = vrcp.pop %v1284
        %v1293 = vrcp.pop %v1287
        %v1294 = vrcp.pop %v1290
        %v1295 = vmul.f32 %v1272, %v1291
        %v1296 = vmul.f32 %v1274, %v1292
        %v1297 = vmul.f32 %v1276, %v1293
        %v1298 = vmul.f32 %v1278, %v1294
        %v1299 = vpack.c.bf16 %v1295, %v1295
        %v1300 = vpack.c.bf16 %v1296, %v1296
        %v1301 = vpack.c.bf16 %v1297, %v1297
        %v1302 = vpack.c.bf16 %v1298, %v1298
        %v1303 = vpack.c.bf16 %v1045, %v1045
        %v1304 = vpack.c.bf16 %v1048, %v1048
        %v1305 = vpack.c.bf16 %v1053, %v1053
        %v1306 = vpack.c.bf16 %v1056, %v1056
        %v1308 = vsel %vm871, %v1299, 0
        %v1311 = vsel %vm878, %v1303, 0
        %1313 = vmatprep.subr.bf16.mxu0 0
        %1314 = vmatpush1.bf16.msra.mxu0 0
        %1315 = vmatprep.subr.bf16.mxu0 0
        %1316 = vmatpush1.bf16.msra.mxu0 0
        %1317 = vmatprep.subr.bf16.mxu0 0
        %1318 = vmatpush1.bf16.msra.mxu0 0
        %1319 = vmatprep.subr.bf16.mxu0 0
        %1320 = vmatpush1.bf16.msra.mxu0 0
        %1321 = vmatprep.subr.bf16.mxu0 0
        %1322 = vmatpush1.bf16.msra.mxu0 0
        %1323 = vmatprep.subr.bf16.mxu0 0
        %1324 = vmatpush1.bf16.msra.mxu0 0
        %1325 = vmatprep.subr.bf16.mxu0 0
        %1326 = vmatpush1.bf16.msra.mxu0 0
        %1327 = vmatprep.subr.bf16.mxu0 0
        %1328 = vmatpush1.bf16.msra.mxu0 %v1311
        %1329 = vmatprep.subr.bf16.mxu0 0
        %1330 = vmatpush2.bf16.msra.mxu0 0
        %1331 = vmatprep.subr.bf16.mxu0 0
        %1332 = vmatpush2.bf16.msra.mxu0 0
        %1333 = vmatprep.subr.bf16.mxu0 0
        %1334 = vmatpush2.bf16.msra.mxu0 0
        %1335 = vmatprep.subr.bf16.mxu0 0
        %1336 = vmatpush2.bf16.msra.mxu0 0
        %1337 = vmatprep.subr.bf16.mxu0 0
        %1338 = vmatpush2.bf16.msra.mxu0 0
        %1339 = vmatprep.subr.bf16.mxu0 0
        %1340 = vmatpush2.bf16.msra.mxu0 0
        %1341 = vmatprep.subr.bf16.mxu0 0
        %1342 = vmatpush2.bf16.msra.mxu0 0
        %1343 = vmatprep.subr.bf16.mxu0 0
        %1344 = vmatpush2.bf16.msra.mxu0 0
        %1345 = vmatprep.mubr.bf16.mxu0 0
        %1346 = vmatmul.mubr.bf16.gmra.mxu0 %v1308
        %v1347 = vpop.f32.mrf.mxu0
        %v1348 = vadd.f32 0.0, %v1347
        %v1349 = vpop.f32.mrf.mxu0
        %v1350 = vpop.f32.mrf.mxu0
        %v1351 = vpop.f32.mrf.mxu0
        %1352 = vdwg.mxu0
        %v1354 = vsel %vm871, %v1300, 0
        %v1357 = vsel %vm878, %v1304, 0
        %1359 = vmatprep.subr.bf16.mxu0 0
        %1360 = vmatpush1.bf16.msra.mxu0 0
        %1361 = vmatprep.subr.bf16.mxu0 0
        %1362 = vmatpush1.bf16.msra.mxu0 0
        %1363 = vmatprep.subr.bf16.mxu0 0
        %1364 = vmatpush1.bf16.msra.mxu0 0
        %1365 = vmatprep.subr.bf16.mxu0 0
        %1366 = vmatpush1.bf16.msra.mxu0 0
        %1367 = vmatprep.subr.bf16.mxu0 0
        %1368 = vmatpush1.bf16.msra.mxu0 0
        %1369 = vmatprep.subr.bf16.mxu0 0
        %1370 = vmatpush1.bf16.msra.mxu0 0
        %1371 = vmatprep.subr.bf16.mxu0 0
        %1372 = vmatpush1.bf16.msra.mxu0 0
        %1373 = vmatprep.subr.bf16.mxu0 0
        %1374 = vmatpush1.bf16.msra.mxu0 %v1357
        %1375 = vmatprep.subr.bf16.mxu0 0
        %1376 = vmatpush2.bf16.msra.mxu0 0
        %1377 = vmatprep.subr.bf16.mxu0 0
        %1378 = vmatpush2.bf16.msra.mxu0 0
        %1379 = vmatprep.subr.bf16.mxu0 0
        %1380 = vmatpush2.bf16.msra.mxu0 0
        %1381 = vmatprep.subr.bf16.mxu0 0
        %1382 = vmatpush2.bf16.msra.mxu0 0
        %1383 = vmatprep.subr.bf16.mxu0 0
        %1384 = vmatpush2.bf16.msra.mxu0 0
        %1385 = vmatprep.subr.bf16.mxu0 0
        %1386 = vmatpush2.bf16.msra.mxu0 0
        %1387 = vmatprep.subr.bf16.mxu0 0
        %1388 = vmatpush2.bf16.msra.mxu0 0
        %1389 = vmatprep.subr.bf16.mxu0 0
        %1390 = vmatpush2.bf16.msra.mxu0 0
        %1391 = vmatprep.mubr.bf16.mxu0 0
        %1392 = vmatmul.mubr.bf16.gmra.mxu0 %v1354
        %v1393 = vpop.f32.mrf.mxu0
        %v1394 = vadd.f32 0.0, %v1393
        %v1395 = vpop.f32.mrf.mxu0
        %v1396 = vpop.f32.mrf.mxu0
        %v1397 = vpop.f32.mrf.mxu0
        %1398 = vdwg.mxu0
        %v1400 = vsel %vm871, %v1301, 0
        %v1403 = vsel %vm878, %v1305, 0
        %1405 = vmatprep.subr.bf16.mxu0 0
        %1406 = vmatpush1.bf16.msra.mxu0 0
        %1407 = vmatprep.subr.bf16.mxu0 0
        %1408 = vmatpush1.bf16.msra.mxu0 0
        %1409 = vmatprep.subr.bf16.mxu0 0
        %1410 = vmatpush1.bf16.msra.mxu0 0
        %1411 = vmatprep.subr.bf16.mxu0 0
        %1412 = vmatpush1.bf16.msra.mxu0 0
        %1413 = vmatprep.subr.bf16.mxu0 0
        %1414 = vmatpush1.bf16.msra.mxu0 0
        %1415 = vmatprep.subr.bf16.mxu0 0
        %1416 = vmatpush1.bf16.msra.mxu0 0
        %1417 = vmatprep.subr.bf16.mxu0 0
        %1418 = vmatpush1.bf16.msra.mxu0 0
        %1419 = vmatprep.subr.bf16.mxu0 0
        %1420 = vmatpush1.bf16.msra.mxu0 %v1403
        %1421 = vmatprep.subr.bf16.mxu0 0
        %1422 = vmatpush2.bf16.msra.mxu0 0
        %1423 = vmatprep.subr.bf16.mxu0 0
        %1424 = vmatpush2.bf16.msra.mxu0 0
        %1425 = vmatprep.subr.bf16.mxu0 0
        %1426 = vmatpush2.bf16.msra.mxu0 0
        %1427 = vmatprep.subr.bf16.mxu0 0
        %1428 = vmatpush2.bf16.msra.mxu0 0
        %1429 = vmatprep.subr.bf16.mxu0 0
        %1430 = vmatpush2.bf16.msra.mxu0 0
        %1431 = vmatprep.subr.bf16.mxu0 0
        %1432 = vmatpush2.bf16.msra.mxu0 0
        %1433 = vmatprep.subr.bf16.mxu0 0
        %1434 = vmatpush2.bf16.msra.mxu0 0
        %1435 = vmatprep.subr.bf16.mxu0 0
        %1436 = vmatpush2.bf16.msra.mxu0 0
        %1437 = vmatprep.mubr.bf16.mxu0 0
        %1438 = vmatmul.mubr.bf16.gmra.mxu0 %v1400
        %v1439 = vpop.f32.mrf.mxu0
        %v1440 = vadd.f32 0.0, %v1439
        %v1441 = vpop.f32.mrf.mxu0
        %v1442 = vpop.f32.mrf.mxu0
        %v1443 = vpop.f32.mrf.mxu0
        %1444 = vdwg.mxu0
        %v1446 = vsel %vm871, %v1302, 0
        %v1449 = vsel %vm878, %v1306, 0
        %1451 = vmatprep.subr.bf16.mxu0 0
        %1452 = vmatpush1.bf16.msra.mxu0 0
        %1453 = vmatprep.subr.bf16.mxu0 0
        %1454 = vmatpush1.bf16.msra.mxu0 0
        %1455 = vmatprep.subr.bf16.mxu0 0
        %1456 = vmatpush1.bf16.msra.mxu0 0
        %1457 = vmatprep.subr.bf16.mxu0 0
        %1458 = vmatpush1.bf16.msra.mxu0 0
        %1459 = vmatprep.subr.bf16.mxu0 0
        %1460 = vmatpush1.bf16.msra.mxu0 0
        %1461 = vmatprep.subr.bf16.mxu0 0
        %1462 = vmatpush1.bf16.msra.mxu0 0
        %1463 = vmatprep.subr.bf16.mxu0 0
        %1464 = vmatpush1.bf16.msra.mxu0 0
        %1465 = vmatprep.subr.bf16.mxu0 0
        %1466 = vmatpush1.bf16.msra.mxu0 %v1449
        %1467 = vmatprep.subr.bf16.mxu0 0
        %1468 = vmatpush2.bf16.msra.mxu0 0
        %1469 = vmatprep.subr.bf16.mxu0 0
        %1470 = vmatpush2.bf16.msra.mxu0 0
        %1471 = vmatprep.subr.bf16.mxu0 0
        %1472 = vmatpush2.bf16.msra.mxu0 0
        %1473 = vmatprep.subr.bf16.mxu0 0
        %1474 = vmatpush2.bf16.msra.mxu0 0
        %1475 = vmatprep.subr.bf16.mxu0 0
        %1476 = vmatpush2.bf16.msra.mxu0 0
        %1477 = vmatprep.subr.bf16.mxu0 0
        %1478 = vmatpush2.bf16.msra.mxu0 0
        %1479 = vmatprep.subr.bf16.mxu0 0
        %1480 = vmatpush2.bf16.msra.mxu0 0
        %1481 = vmatprep.subr.bf16.mxu0 0
        %1482 = vmatpush2.bf16.msra.mxu0 0
        %1483 = vmatprep.mubr.bf16.mxu0 0
        %1484 = vmatmul.mubr.bf16.gmra.mxu0 %v1446
        %v1485 = vpop.f32.mrf.mxu0
        %v1486 = vadd.f32 0.0, %v1485
        %v1487 = vpop.f32.mrf.mxu0
        %v1488 = vpop.f32.mrf.mxu0
        %v1489 = vpop.f32.mrf.mxu0
        %1490 = vdwg.mxu0
        %v1491 = vpack.c.bf16 %v1348, %v1348
        %v1492 = vld [vmem:[#allocation7] sm:$0xf]
        %v1493 = vpack.c.bf16 %v1394, %v1394
        %s1494 = scalar_lea.vmem [#allocation7], 4
        %v1495 = vld [vmem:[%s1494] sm:$0xf]
        %v1497 = vsel %vm871, %v1493, 0
        %v1500 = vsel %vm878, %v1495, 0
        %1502 = vmatprep.subr.bf16.mxu0 0
        %1503 = vmatpush1.bf16.msra.mxu0 0
        %1504 = vmatprep.subr.bf16.mxu0 0
        %1505 = vmatpush1.bf16.msra.mxu0 0
        %1506 = vmatprep.subr.bf16.mxu0 0
        %1507 = vmatpush1.bf16.msra.mxu0 0
        %1508 = vmatprep.subr.bf16.mxu0 0
        %1509 = vmatpush1.bf16.msra.mxu0 0
        %1510 = vmatprep.subr.bf16.mxu0 0
        %1511 = vmatpush1.bf16.msra.mxu0 0
        %1512 = vmatprep.subr.bf16.mxu0 0
        %1513 = vmatpush1.bf16.msra.mxu0 0
        %1514 = vmatprep.subr.bf16.mxu0 0
        %1515 = vmatpush1.bf16.msra.mxu0 0
        %1516 = vmatprep.subr.bf16.mxu0 0
        %1517 = vmatpush1.bf16.msra.mxu0 %v1500
        %1518 = vmatprep.subr.bf16.mxu0 0
        %1519 = vmatpush2.bf16.msra.mxu0 0
        %1520 = vmatprep.subr.bf16.mxu0 0
        %1521 = vmatpush2.bf16.msra.mxu0 0
        %1522 = vmatprep.subr.bf16.mxu0 0
        %1523 = vmatpush2.bf16.msra.mxu0 0
        %1524 = vmatprep.subr.bf16.mxu0 0
        %1525 = vmatpush2.bf16.msra.mxu0 0
        %1526 = vmatprep.subr.bf16.mxu0 0
        %1527 = vmatpush2.bf16.msra.mxu0 0
        %1528 = vmatprep.subr.bf16.mxu0 0
        %1529 = vmatpush2.bf16.msra.mxu0 0
        %1530 = vmatprep.subr.bf16.mxu0 0
        %1531 = vmatpush2.bf16.msra.mxu0 0
        %1532 = vmatprep.subr.bf16.mxu0 0
        %1533 = vmatpush2.bf16.msra.mxu0 0
        %1534 = vmatprep.mubr.bf16.mxu0 0
        %1535 = vmatmul.mubr.bf16.gmra.mxu0 %v1497
        %v1536 = vpop.f32.mrf.mxu0
        %v1537 = vadd.f32 0.0, %v1536
        %v1538 = vpop.f32.mrf.mxu0
        %v1539 = vpop.f32.mrf.mxu0
        %v1540 = vpop.f32.mrf.mxu0
        %1541 = vdwg.mxu0
        %v1543 = vsel %vm871, %v1491, 0
        %v1546 = vsel %vm878, %v1492, 0
        %1548 = vmatprep.subr.bf16.mxu0 0
        %1549 = vmatpush1.bf16.msra.mxu0 0
        %1550 = vmatprep.subr.bf16.mxu0 0
        %1551 = vmatpush1.bf16.msra.mxu0 0
        %1552 = vmatprep.subr.bf16.mxu0 0
        %1553 = vmatpush1.bf16.msra.mxu0 0
        %1554 = vmatprep.subr.bf16.mxu0 0
        %1555 = vmatpush1.bf16.msra.mxu0 0
        %1556 = vmatprep.subr.bf16.mxu0 0
        %1557 = vmatpush1.bf16.msra.mxu0 0
        %1558 = vmatprep.subr.bf16.mxu0 0
        %1559 = vmatpush1.bf16.msra.mxu0 0
        %1560 = vmatprep.subr.bf16.mxu0 0
        %1561 = vmatpush1.bf16.msra.mxu0 0
        %1562 = vmatprep.subr.bf16.mxu0 0
        %1563 = vmatpush1.bf16.msra.mxu0 %v1546
        %1564 = vmatprep.subr.bf16.mxu0 0
        %1565 = vmatpush2.bf16.msra.mxu0 0
        %1566 = vmatprep.subr.bf16.mxu0 0
        %1567 = vmatpush2.bf16.msra.mxu0 0
        %1568 = vmatprep.subr.bf16.mxu0 0
        %1569 = vmatpush2.bf16.msra.mxu0 0
        %1570 = vmatprep.subr.bf16.mxu0 0
        %1571 = vmatpush2.bf16.msra.mxu0 0
        %1572 = vmatprep.subr.bf16.mxu0 0
        %1573 = vmatpush2.bf16.msra.mxu0 0
        %1574 = vmatprep.subr.bf16.mxu0 0
        %1575 = vmatpush2.bf16.msra.mxu0 0
        %1576 = vmatprep.subr.bf16.mxu0 0
        %1577 = vmatpush2.bf16.msra.mxu0 0
        %1578 = vmatprep.subr.bf16.mxu0 0
        %1579 = vmatpush2.bf16.msra.mxu0 0
        %1580 = vmatprep.mubr.bf16.mxu0 0
        %1581 = vmatmul.mubr.bf16.gmra.mxu0 %v1543
        %v1582 = vpop.f32.mrf.mxu0
        %v1583 = vadd.f32 %v1537, %v1582
        %v1584 = vpop.f32.mrf.mxu0
        %v1585 = vpop.f32.mrf.mxu0
        %v1586 = vpop.f32.mrf.mxu0
        %1587 = vdwg.mxu0
        %v1588 = vpack.c.bf16 %v1440, %v1440
        %s1589 = scalar_lea.vmem [#allocation7], 8
        %v1590 = vld [vmem:[%s1589] sm:$0xf]
        %v1592 = vsel %vm871, %v1588, 0
        %v1595 = vsel %vm878, %v1590, 0
        %1597 = vmatprep.subr.bf16.mxu0 0
        %1598 = vmatpush1.bf16.msra.mxu0 0
        %1599 = vmatprep.subr.bf16.mxu0 0
        %1600 = vmatpush1.bf16.msra.mxu0 0
        %1601 = vmatprep.subr.bf16.mxu0 0
        %1602 = vmatpush1.bf16.msra.mxu0 0
        %1603 = vmatprep.subr.bf16.mxu0 0
        %1604 = vmatpush1.bf16.msra.mxu0 0
        %1605 = vmatprep.subr.bf16.mxu0 0
        %1606 = vmatpush1.bf16.msra.mxu0 0
        %1607 = vmatprep.subr.bf16.mxu0 0
        %1608 = vmatpush1.bf16.msra.mxu0 0
        %1609 = vmatprep.subr.bf16.mxu0 0
        %1610 = vmatpush1.bf16.msra.mxu0 0
        %1611 = vmatprep.subr.bf16.mxu0 0
        %1612 = vmatpush1.bf16.msra.mxu0 %v1595
        %1613 = vmatprep.subr.bf16.mxu0 0
        %1614 = vmatpush2.bf16.msra.mxu0 0
        %1615 = vmatprep.subr.bf16.mxu0 0
        %1616 = vmatpush2.bf16.msra.mxu0 0
        %1617 = vmatprep.subr.bf16.mxu0 0
        %1618 = vmatpush2.bf16.msra.mxu0 0
        %1619 = vmatprep.subr.bf16.mxu0 0
        %1620 = vmatpush2.bf16.msra.mxu0 0
        %1621 = vmatprep.subr.bf16.mxu0 0
        %1622 = vmatpush2.bf16.msra.mxu0 0
        %1623 = vmatprep.subr.bf16.mxu0 0
        %1624 = vmatpush2.bf16.msra.mxu0 0
        %1625 = vmatprep.subr.bf16.mxu0 0
        %1626 = vmatpush2.bf16.msra.mxu0 0
        %1627 = vmatprep.subr.bf16.mxu0 0
        %1628 = vmatpush2.bf16.msra.mxu0 0
        %1629 = vmatprep.mubr.bf16.mxu0 0
        %1630 = vmatmul.mubr.bf16.gmra.mxu0 %v1592
        %v1631 = vpop.f32.mrf.mxu0
        %v1632 = vadd.f32 0.0, %v1631
        %v1633 = vpop.f32.mrf.mxu0
        %v1634 = vpop.f32.mrf.mxu0
        %v1635 = vpop.f32.mrf.mxu0
        %1636 = vdwg.mxu0
        %v1637 = vadd.f32 %v1583, %v1632
        %v1638 = vpack.c.bf16 %v1486, %v1486
        %s1639 = scalar_lea.vmem [#allocation7], 12
        %v1640 = vld [vmem:[%s1639] sm:$0xf]
        %v1642 = vsel %vm871, %v1638, 0
        %v1645 = vsel %vm878, %v1640, 0
        %1647 = vmatprep.subr.bf16.mxu0 0
        %1648 = vmatpush1.bf16.msra.mxu0 0
        %1649 = vmatprep.subr.bf16.mxu0 0
        %1650 = vmatpush1.bf16.msra.mxu0 0
        %1651 = vmatprep.subr.bf16.mxu0 0
        %1652 = vmatpush1.bf16.msra.mxu0 0
        %1653 = vmatprep.subr.bf16.mxu0 0
        %1654 = vmatpush1.bf16.msra.mxu0 0
        %1655 = vmatprep.subr.bf16.mxu0 0
        %1656 = vmatpush1.bf16.msra.mxu0 0
        %1657 = vmatprep.subr.bf16.mxu0 0
        %1658 = vmatpush1.bf16.msra.mxu0 0
        %1659 = vmatprep.subr.bf16.mxu0 0
        %1660 = vmatpush1.bf16.msra.mxu0 0
        %1661 = vmatprep.subr.bf16.mxu0 0
        %1662 = vmatpush1.bf16.msra.mxu0 %v1645
        %1663 = vmatprep.subr.bf16.mxu0 0
        %1664 = vmatpush2.bf16.msra.mxu0 0
        %1665 = vmatprep.subr.bf16.mxu0 0
        %1666 = vmatpush2.bf16.msra.mxu0 0
        %1667 = vmatprep.subr.bf16.mxu0 0
        %1668 = vmatpush2.bf16.msra.mxu0 0
        %1669 = vmatprep.subr.bf16.mxu0 0
        %1670 = vmatpush2.bf16.msra.mxu0 0
        %1671 = vmatprep.subr.bf16.mxu0 0
        %1672 = vmatpush2.bf16.msra.mxu0 0
        %1673 = vmatprep.subr.bf16.mxu0 0
        %1674 = vmatpush2.bf16.msra.mxu0 0
        %1675 = vmatprep.subr.bf16.mxu0 0
        %1676 = vmatpush2.bf16.msra.mxu0 0
        %1677 = vmatprep.subr.bf16.mxu0 0
        %1678 = vmatpush2.bf16.msra.mxu0 0
        %1679 = vmatprep.mubr.bf16.mxu0 0
        %1680 = vmatmul.mubr.bf16.gmra.mxu0 %v1642
        %v1681 = vpop.f32.mrf.mxu0
        %v1682 = vadd.f32 0.0, %v1681
        %v1683 = vpop.f32.mrf.mxu0
        %v1684 = vpop.f32.mrf.mxu0
        %v1685 = vpop.f32.mrf.mxu0
        %1686 = vdwg.mxu0
        %v1687 = vadd.f32 %v1637, %v1682
        %v1688 = vld [vmem:[#allocation8] sm:$0x1]
        %v1690 = vlaneseq
        %v1691 = vshrl.u32 %v1690, 7
        %v1692 = vsub.s32 0, %v1691
        %v1693 = vrot.slane %v1688, %v1692
        %v1695 = vadd.f32 %v1687, %v1693
        %v1696 = vadd.f32 %v1695, %v852
        %v1697 = vld [vmem:[#allocation10] sm:$0x1]
        %v1698 = vld [vmem:[#allocation11] sm:$0x1]
        %vm1699 = vcmask 261120
        %v1700 = vsel %vm1699, %v1696, 0.0
        %1701 = vadd.xlane.f32.xlu0 %v1700
        %v1702 = vpop.xlane.xlu0 %1701
        %v1703 = vrcp.pop 32.0
        %v1704 = vmul.f32 %v1702, %v1703
        %v1705 = vsub.f32 %v1696, %v1704
        %v1706 = vmul.f32 %v1705, %v1705
        %v1707 = vsel %vm1699, %v1706, 0.0
        %1708 = vadd.xlane.f32.xlu0 %v1707
        %v1709 = vpop.xlane.xlu0 %1708
        %v1710 = vmul.f32 %v1709, %v1703
        %v1711 = vadd.f32 %v1710, 1e-05
        %v1712 = vrsqrt.pop %v1711
        %v1713 = vmul.f32 %v1705, %v1712
        %v1715 = vlaneseq
        %v1716 = vshrl.u32 %v1715, 7
        %v1717 = vsub.s32 0, %v1716
        %v1718 = vrot.slane %v1697, %v1717
        %v1720 = vmul.f32 %v1713, %v1718
        %v1722 = vlaneseq
        %v1723 = vshrl.u32 %v1722, 7
        %v1724 = vsub.s32 0, %v1723
        %v1725 = vrot.slane %v1698, %v1724
        %v1727 = vadd.f32 %v1720, %v1725
        %v1728 = vpack.c.bf16 %v1727, %v1727
        %v1729 = vld [vmem:[#allocation13] sm:$0xf]
        %v1730 = vld [vmem:[#allocation13 + $0x4] sm:$0xf]
        %v1731 = vld [vmem:[#allocation13 + $0x8] sm:$0xf]
        %v1732 = vld [vmem:[#allocation13 + $0xc] sm:$0xf]
        %v1733 = vld [vmem:[#allocation14] sm:$0x1]
        %v1735 = vlaneseq
        %v1736 = vshrl.u32 %v1735, 7
        %v1737 = vsub.s32 0, %v1736
        %v1738 = vrot.slane %v1733, %v1737
        %v1744 = vunpack.c.l.b16 %v1729
        %v1745 = vunpack.c.l.b16 %v1730
        %v1746 = vunpack.c.l.b16 %v1731
        %v1747 = vunpack.c.l.b16 %v1732
        %v1748 = vpack.c.b16 %v1745, %v1744
        %v1749 = vpack.c.b16 %v1747, %v1746
        %v1753 = vsel %vm1699, %v1728, 0
        %1755 = vmatprep.subr.bf16.mxu0 0
        %1756 = vmatpush1.bf16.msra.mxu0 0
        %1757 = vmatprep.subr.bf16.mxu0 0
        %1758 = vmatpush1.bf16.msra.mxu0 0
        %1759 = vmatprep.subr.bf16.mxu0 0
        %1760 = vmatpush1.bf16.msra.mxu0 0
        %1761 = vmatprep.subr.bf16.mxu0 0
        %1762 = vmatpush1.bf16.msra.mxu0 0
        %1763 = vmatprep.subr.bf16.mxu0 0
        %1764 = vmatpush1.bf16.msra.mxu0 0
        %1765 = vmatprep.subr.bf16.mxu0 0
        %1766 = vmatpush1.bf16.msra.mxu0 0
        %1767 = vmatprep.subr.bf16.mxu0 0
        %1768 = vmatpush1.bf16.msra.mxu0 %v1749
        %1769 = vmatprep.subr.bf16.mxu0 0
        %1770 = vmatpush1.bf16.msra.mxu0 %v1748
        %1771 = vmatprep.subr.bf16.mxu0 0
        %1772 = vmatpush2.bf16.msra.mxu0 0
        %1773 = vmatprep.subr.bf16.mxu0 0
        %1774 = vmatpush2.bf16.msra.mxu0 0
        %1775 = vmatprep.subr.bf16.mxu0 0
        %1776 = vmatpush2.bf16.msra.mxu0 0
        %1777 = vmatprep.subr.bf16.mxu0 0
        %1778 = vmatpush2.bf16.msra.mxu0 0
        %1779 = vmatprep.subr.bf16.mxu0 0
        %1780 = vmatpush2.bf16.msra.mxu0 0
        %1781 = vmatprep.subr.bf16.mxu0 0
        %1782 = vmatpush2.bf16.msra.mxu0 0
        %1783 = vmatprep.subr.bf16.mxu0 0
        %1784 = vmatpush2.bf16.msra.mxu0 0
        %1785 = vmatprep.subr.bf16.mxu0 0
        %1786 = vmatpush2.bf16.msra.mxu0 0
        %1787 = vmatprep.mubr.bf16.mxu0 0
        %1788 = vmatmul.mubr.bf16.gmra.mxu0 %v1753
        %v1789 = vpop.f32.mrf.mxu0
        %v1790 = vadd.f32 %v1738, %v1789
        %v1791 = vpop.f32.mrf.mxu0
        %v1792 = vpop.f32.mrf.mxu0
        %v1793 = vpop.f32.mrf.mxu0
        %1794 = vdwg.mxu0
        %v1795 = vmax.f32 %v1790, 0.0
        %v1796 = vpack.c.bf16 %v1795, %v1795
        %v1797 = vld [vmem:[%s15] sm:$0xf]
        %v1798 = vld [vmem:[%s15 + $0x4] sm:$0xf]
        %v1799 = vld [vmem:[%s15 + $0x8] sm:$0xf]
        %v1800 = vld [vmem:[%s15 + $0xc] sm:$0xf]
        %v1801 = vld [vmem:[%s15 + $0x10] sm:$0xf]
        %v1802 = vld [vmem:[%s15 + $0x14] sm:$0xf]
        %v1803 = vld [vmem:[%s15 + $0x18] sm:$0xf]
        %v1804 = vld [vmem:[%s15 + $0x1c] sm:$0xf]
        %v1805 = vld [vmem:[#allocation16] sm:$0x1]
        %v1807 = vlaneseq
        %v1808 = vshrl.u32 %v1807, 7
        %v1809 = vsub.s32 0, %v1808
        %v1810 = vrot.slane %v1805, %v1809
        %v1820 = vunpack.c.l.b16 %v1797
        %v1821 = vunpack.c.l.b16 %v1798
        %v1822 = vunpack.c.l.b16 %v1799
        %v1823 = vunpack.c.l.b16 %v1800
        %v1824 = vunpack.c.l.b16 %v1801
        %v1825 = vunpack.c.l.b16 %v1802
        %v1826 = vunpack.c.l.b16 %v1803
        %v1827 = vunpack.c.l.b16 %v1804
        %v1828 = vpack.c.b16 %v1821, %v1820
        %v1829 = vpack.c.b16 %v1823, %v1822
        %v1830 = vpack.c.b16 %v1825, %v1824
        %v1831 = vpack.c.b16 %v1827, %v1826
        %vm1836 = vcmask 523264
        %v1838 = vsel %vm1836, %v1796, 0
        %1840 = vmatprep.subr.bf16.mxu0 0
        %1841 = vmatpush1.bf16.msra.mxu0 0
        %1842 = vmatprep.subr.bf16.mxu0 0
        %1843 = vmatpush1.bf16.msra.mxu0 0
        %1844 = vmatprep.subr.bf16.mxu0 0
        %1845 = vmatpush1.bf16.msra.mxu0 0
        %1846 = vmatprep.subr.bf16.mxu0 0
        %1847 = vmatpush1.bf16.msra.mxu0 0
        %1848 = vmatprep.subr.bf16.mxu0 0
        %1849 = vmatpush1.bf16.msra.mxu0 %v1831
        %1850 = vmatprep.subr.bf16.mxu0 0
        %1851 = vmatpush1.bf16.msra.mxu0 %v1830
        %1852 = vmatprep.subr.bf16.mxu0 0
        %1853 = vmatpush1.bf16.msra.mxu0 %v1829
        %1854 = vmatprep.subr.bf16.mxu0 0
        %1855 = vmatpush1.bf16.msra.mxu0 %v1828
        %1856 = vmatprep.subr.bf16.mxu0 0
        %1857 = vmatpush2.bf16.msra.mxu0 0
        %1858 = vmatprep.subr.bf16.mxu0 0
        %1859 = vmatpush2.bf16.msra.mxu0 0
        %1860 = vmatprep.subr.bf16.mxu0 0
        %1861 = vmatpush2.bf16.msra.mxu0 0
        %1862 = vmatprep.subr.bf16.mxu0 0
        %1863 = vmatpush2.bf16.msra.mxu0 0
        %1864 = vmatprep.subr.bf16.mxu0 0
        %1865 = vmatpush2.bf16.msra.mxu0 0
        %1866 = vmatprep.subr.bf16.mxu0 0
        %1867 = vmatpush2.bf16.msra.mxu0 0
        %1868 = vmatprep.subr.bf16.mxu0 0
        %1869 = vmatpush2.bf16.msra.mxu0 0
        %1870 = vmatprep.subr.bf16.mxu0 0
        %1871 = vmatpush2.bf16.msra.mxu0 0
        %1872 = vmatprep.mubr.bf16.mxu0 0
        %1873 = vmatmul.mubr.bf16.gmra.mxu0 %v1838
        %v1874 = vpop.f32.mrf.mxu0
        %v1875 = vadd.f32 %v1810, %v1874
        %v1876 = vpop.f32.mrf.mxu0
        %v1877 = vpop.f32.mrf.mxu0
        %v1878 = vpop.f32.mrf.mxu0
        %1879 = vdwg.mxu0
        %v1880 = vmax.f32 %v1875, 0.0
        %v1881 = vpack.c.bf16 %v1880, %v1880
        %v1882 = vld [vmem:[%s17] sm:$0xf]
        %v1883 = vld [vmem:[%s17 + $0x4] sm:$0xf]
        %v1884 = vld [vmem:[%s17 + $0x8] sm:$0xf]
        %v1885 = vld [vmem:[%s17 + $0xc] sm:$0xf]
        %v1886 = vld [vmem:[%s17 + $0x10] sm:$0xf]
        %v1887 = vld [vmem:[%s17 + $0x14] sm:$0xf]
        %v1888 = vld [vmem:[%s17 + $0x18] sm:$0xf]
        %v1889 = vld [vmem:[%s17 + $0x1c] sm:$0xf]
        %v1890 = vld [vmem:[%s18] sm:$0x1]
        %v1892 = vlaneseq
        %v1893 = vshrl.u32 %v1892, 7
        %v1894 = vsub.s32 0, %v1893
        %v1895 = vrot.slane %v1890, %v1894
        %v1905 = vunpack.c.l.b16 %v1882
        %v1906 = vunpack.c.l.b16 %v1883
        %v1907 = vunpack.c.l.b16 %v1884
        %v1908 = vunpack.c.l.b16 %v1885
        %v1909 = vunpack.c.l.b16 %v1886
        %v1910 = vunpack.c.l.b16 %v1887
        %v1911 = vunpack.c.l.b16 %v1888
        %v1912 = vunpack.c.l.b16 %v1889
        %v1913 = vpack.c.b16 %v1906, %v1905
        %v1914 = vpack.c.b16 %v1908, %v1907
        %v1915 = vpack.c.b16 %v1910, %v1909
        %v1916 = vpack.c.b16 %v1912, %v1911
        %v1922 = vsel %vm1836, %v1881, 0
        %1924 = vmatprep.subr.bf16.mxu0 0
        %1925 = vmatpush1.bf16.msra.mxu0 0
        %1926 = vmatprep.subr.bf16.mxu0 0
        %1927 = vmatpush1.bf16.msra.mxu0 0
        %1928 = vmatprep.subr.bf16.mxu0 0
        %1929 = vmatpush1.bf16.msra.mxu0 0
        %1930 = vmatprep.subr.bf16.mxu0 0
        %1931 = vmatpush1.bf16.msra.mxu0 0
        %1932 = vmatprep.subr.bf16.mxu0 0
        %1933 = vmatpush1.bf16.msra.mxu0 %v1916
        %1934 = vmatprep.subr.bf16.mxu0 0
        %1935 = vmatpush1.bf16.msra.mxu0 %v1915
        %1936 = vmatprep.subr.bf16.mxu0 0
        %1937 = vmatpush1.bf16.msra.mxu0 %v1914
        %1938 = vmatprep.subr.bf16.mxu0 0
        %1939 = vmatpush1.bf16.msra.mxu0 %v1913
        %1940 = vmatprep.subr.bf16.mxu0 0
        %1941 = vmatpush2.bf16.msra.mxu0 0
        %1942 = vmatprep.subr.bf16.mxu0 0
        %1943 = vmatpush2.bf16.msra.mxu0 0
        %1944 = vmatprep.subr.bf16.mxu0 0
        %1945 = vmatpush2.bf16.msra.mxu0 0
        %1946 = vmatprep.subr.bf16.mxu0 0
        %1947 = vmatpush2.bf16.msra.mxu0 0
        %1948 = vmatprep.subr.bf16.mxu0 0
        %1949 = vmatpush2.bf16.msra.mxu0 0
        %1950 = vmatprep.subr.bf16.mxu0 0
        %1951 = vmatpush2.bf16.msra.mxu0 0
        %1952 = vmatprep.subr.bf16.mxu0 0
        %1953 = vmatpush2.bf16.msra.mxu0 0
        %1954 = vmatprep.subr.bf16.mxu0 0
        %1955 = vmatpush2.bf16.msra.mxu0 0
        %1956 = vmatprep.mubr.bf16.mxu0 0
        %1957 = vmatmul.mubr.bf16.gmra.mxu0 %v1922
        %v1958 = vpop.f32.mrf.mxu0
        %v1959 = vadd.f32 %v1895, %v1958
        %v1960 = vpop.f32.mrf.mxu0
        %v1961 = vpop.f32.mrf.mxu0
        %v1962 = vpop.f32.mrf.mxu0
        %1963 = vdwg.mxu0
        %v1964 = vadd.f32 %v1959, %v1727
        %v1965 = vld [vmem:[%s19] sm:$0x1]
        %v1966 = vld [vmem:[%s20] sm:$0x1]
        %v1967 = vsel %vm1699, %v1964, 0.0
        %1968 = vadd.xlane.f32.xlu0 %v1967
        %v1969 = vpop.xlane.xlu0 %1968
        %v1970 = vmul.f32 %v1969, %v1703
        %v1971 = vsub.f32 %v1964, %v1970
        %v1972 = vmul.f32 %v1971, %v1971
        %v1973 = vsel %vm1699, %v1972, 0.0
        %1974 = vadd.xlane.f32.xlu0 %v1973
        %v1975 = vpop.xlane.xlu0 %1974
        %v1976 = vmul.f32 %v1975, %v1703
        %v1977 = vadd.f32 %v1976, 1e-05
        %v1978 = vrsqrt.pop %v1977
        %v1979 = vmul.f32 %v1971, %v1978
        %v1981 = vlaneseq
        %v1982 = vshrl.u32 %v1981, 7
        %v1983 = vsub.s32 0, %v1982
        %v1984 = vrot.slane %v1965, %v1983
        %v1986 = vmul.f32 %v1979, %v1984
        %v1988 = vlaneseq
        %v1989 = vshrl.u32 %v1988, 7
        %v1990 = vsub.s32 0, %v1989
        %v1991 = vrot.slane %v1966, %v1990
        %v1993 = vadd.f32 %v1986, %v1991
        %1994 = vst.msk [vmem:[%s843] sm:$0xff] %vm1699, %v1993
        %s1995 = sand.u32 %s526, 1
        %s1996 = scalar_lea.sflag [#allocation4], %s1995
        %s1997 = sand.u32 %s526, 1
        %s1998 = smul.addr %s1997, 8
        %s1999 = scalar_lea.vmem [#allocation17], %s1998
        // Predicated region
        $region141: #{tpu_custom_call.1} parent=103 // pred_check
          %p2000 = pneg %p536
        $region142: #{tpu_custom_call.1} parent=103 // pred_check_branch
          %2002 = sbr.rel (%p2000) target = $region144
        $region143: #{tpu_custom_call.1} parent=103 // pred_region
          %s2004 = ssub.s32 128, 128
          %2005 = vsyncadd %s1996, %s2004
          %s2006 = sadd.s32 %s49, %s48
          %s2007 = smul.addr %s2006, 128
          %s2008 = scalar_lea.hbm %s21, %s2007
          %s2010 = sshll.u32 %s1999, 4
          %s2011 = int_to_ptr.vmem [resolvable:$true] %s2010
          %2013 = dma.vmem_to_hbm [thread:$0]  %s2011, 128, %s2008, %s1996
        $region144: #{tpu_custom_call.1} parent=103 // pred_fallthru
          _
      $region104: #{tpu_custom_call.1} parent=5 // pred_fallthru
        _
      %p2014 = scmp.le.s32.totalorder 2, %s39
      // Predicated region
      $region145: #{tpu_custom_call.1} parent=5 // pred_check
        %p2015 = pneg %p2014
      $region146: #{tpu_custom_call.1} parent=5 // pred_check_branch
        %2017 = sbr.rel (%p2015) target = $region148
      $region147: #{tpu_custom_call.1} parent=5 // pred_region
        %s2018 = ssub.s32 %s39, 2
        // Predicated region
        $region149: #{tpu_custom_call.1} parent=147 // pred_check
          %p2019 = pneg %p542
        $region150: #{tpu_custom_call.1} parent=147 // pred_check_branch
          %2021 = sbr.rel (%p2019) target = $region152
        $region151: #{tpu_custom_call.1} parent=147 // pred_region
          %s2022 = sand.u32 %s527, 1
          %s2023 = scalar_lea.sflag [#allocation4], %s2022
          %s2024 = sand.u32 %s527, 1
          %s2025 = smul.addr %s2024, 8
          %s2026 = scalar_lea.vmem [#allocation17], %s2025
          %2027 = dma.done %s2023, 128
        $region152: #{tpu_custom_call.1} parent=147 // pred_fallthru
          _
      $region148: #{tpu_custom_call.1} parent=5 // pred_fallthru
        _
    $region6: #{tpu_custom_call.1} parent=1 // loop_footer
      %s43 = sadd.s32 1, %s39
    $region7: #{tpu_custom_call.1} parent=1 // loop_footer_branch
      %38 = sbr.rel target = $region3
    $region8: #{tpu_custom_call.1} parent=1 // loop_exit
      _
    %2028 = vsyncpa [#allocation3], 1
    %s2029 = scalar_lea.sflag [#allocation3], 1
    %2030 = vsyncpa %s2029, 1
    %2031 = vsyncpa [#allocation6], 1
    %s2032 = scalar_lea.sflag [#allocation6], 1
    %2033 = vsyncpa %s2032, 1
    %2034 = vsyncpa [#allocation9], 1
    %2035 = vsyncpa [#allocation12], 1
    %2036 = vsyncpa [#allocation15], 1
    %2037 = vsyncpa [#allocation4], 1
    %s2038 = scalar_lea.sflag [#allocation4], 1
    %2039 = vsyncpa %s2038, 1

// kernel: tpu_custom_call.1
$region0: #{tpu_custom_call.1}
  #allocation0 [shape = 'u32[]', space=smem, size = 0x4, offset = 0x4, fixed_abs, tag = 'smem constant byte address 0x4 - core index']
  #allocation1 [shape = 'u32[144,128]{1,0:T(1,128)}', space=vmem, size = 0x12000, scoped, tag = 'internal scratch']
  %s0 = inlined_call_operand.vmem [shape: f32[2,8,32], index: 0, kind: input, shape index: {}]
  %s1 = inlined_call_operand.hbm [shape: f32[2,4,8,8], index: 1, kind: input, shape index: {}]
  %s2 = inlined_call_operand.hbm [shape: f32[2,4,8,8], index: 2, kind: input, shape index: {}]
  %s3 = inlined_call_operand.vmem [shape: bf16[8,8], index: 3, kind: input, shape index: {}]
  %s4 = inlined_call_operand.vmem [shape: f32[1,8], index: 4, kind: input, shape index: {}]
  %s5 = inlined_call_operand.vmem [shape: bf16[8,8], index: 5, kind: input, shape index: {}]
  %s6 = inlined_call_operand.vmem [shape: f32[1,8], index: 6, kind: input, shape index: {}]
  %s7 = inlined_call_operand.vmem [shape: bf16[8,8], index: 7, kind: input, shape index: {}]
  %s8 = inlined_call_operand.vmem [shape: f32[1,8], index: 8, kind: input, shape index: {}]
  %s9 = inlined_call_operand.hbm [shape: bf16[4,8,32], index: 9, kind: input, shape index: {}]
  %s10 = inlined_call_operand.hbm [shape: f32[1,32], index: 10, kind: input, shape index: {}]
  %s11 = inlined_call_operand.hbm [shape: f32[1,32], index: 11, kind: input, shape index: {}]
  %s12 = inlined_call_operand.hbm [shape: f32[1,32], index: 12, kind: input, shape index: {}]
  %s13 = inlined_call_operand.hbm [shape: bf16[32,64], index: 13, kind: input, shape index: {}]
  %s14 = inlined_call_operand.hbm [shape: f32[1,64], index: 14, kind: input, shape index: {}]
  %s15 = inlined_call_operand.vmem [shape: bf16[64,64], index: 15, kind: input, shape index: {}]
  %s16 = inlined_call_operand.hbm [shape: f32[1,64], index: 16, kind: input, shape index: {}]
  %s17 = inlined_call_operand.vmem [shape: bf16[64,32], index: 17, kind: input, shape index: {}]
  %s18 = inlined_call_operand.vmem [shape: f32[1,32], index: 18, kind: input, shape index: {}]
  %s19 = inlined_call_operand.vmem [shape: f32[1,32], index: 19, kind: input, shape index: {}]
  %s20 = inlined_call_operand.vmem [shape: f32[1,32], index: 20, kind: input, shape index: {}]
  %s21 = inlined_call_operand.hbm [shape: f32[2,8,32], index: 21, kind: output, shape index: {}]
  %s22 = sld [smem:[#allocation0]]
  $region153: #{tpu_custom_call.1} parent=0
    _
  %s24 = ssub.s32 1, %s22
  %s25 = scalar_select 0, %s24, %s22
  $region1: #{tpu_custom_call.1} parent=0
    #allocation2 [shape = 'u8[32768]{0}', space=vmem, size = 0x8000, scoped, tag = 'input window, operand 1']
    #allocation3 [shape = 's32[2]{0}', space=sflag, size = 0x8, scoped, tag = 'scoped memory for tpu_custom_call.1']
    #allocation4 [shape = 's32[2]{0}', space=sflag, size = 0x8, scoped, tag = 'scoped memory for tpu_custom_call.1']
    #allocation5 [shape = 'u8[32768]{0}', space=vmem, size = 0x8000, scoped, tag = 'input window, operand 2']
    #allocation6 [shape = 's32[2]{0}', space=sflag, size = 0x8, scoped, tag = 'scoped memory for tpu_custom_call.1']
    #allocation7 [shape = 'u8[8192]{0}', space=vmem, size = 0x2000, scoped, tag = 'input window, operand 9, single buffered']
    #allocation8 [shape = 'u8[512]{0}', space=vmem, size = 0x400, scoped, tag = 'input window, operand 10, single buffered']
    #allocation9 [shape = 's32[1]{0}', space=sflag, size = 0x4, scoped, tag = 'scoped memory for tpu_custom_call.1']
    #allocation10 [shape = 'u8[512]{0}', space=vmem, size = 0x400, scoped, tag = 'input window, operand 11, single buffered']
    #allocation11 [shape = 'u8[512]{0}', space=vmem, size = 0x400, scoped, tag = 'input window, operand 12, single buffered']
    #allocation12 [shape = 's32[1]{0}', space=sflag, size = 0x4, scoped, tag = 'scoped memory for tpu_custom_call.1']
    #allocation13 [shape = 'u8[8192]{0}', space=vmem, size = 0x2000, scoped, tag = 'input window, operand 13, single buffered']
    #allocation14 [shape = 'u8[512]{0}', space=vmem, size = 0x400, scoped, tag = 'input window, operand 14, single buffered']
    #allocation15 [shape = 's32[1]{0}', space=sflag, size = 0x4, scoped, tag = 'scoped memory for tpu_custom_call.1']
    #allocation16 [shape = 'u8[512]{0}', space=vmem, size = 0x400, scoped, tag = 'input window, operand 16, single buffered']
    #allocation17 [shape = 'u8[8192]{0}', space=vmem, size = 0x2000, scoped, tag = 'output window, operand 0']
    %26 = vsyncpa [#allocation3], 0
    %s27 = scalar_lea.sflag [#allocation3], 1
    %28 = vsyncpa %s27, 0
    %29 = vsyncpa [#allocation6], 0
    %s30 = scalar_lea.sflag [#allocation6], 1
    %31 = vsyncpa %s30, 0
    %32 = vsyncpa [#allocation9], 0
    %33 = vsyncpa [#allocation12], 0
    %34 = vsyncpa [#allocation15], 0
    %35 = vsyncpa [#allocation4], 0
    %s36 = scalar_lea.sflag [#allocation4], 1
    %37 = vsyncpa %s36, 0
    loop: start=0, step=1, limit=4
    $region2: #{tpu_custom_call.1} parent=1 // loop_pre_header
      _
    $region3: #{tpu_custom_call.1} parent=1 // loop_header
      %s39 = sphi 0, %s43
      %p40 = scmp.ge.s32.totalorder %s39, 4
      %s46 = sphi 0, %s58
      %s47 = sphi 0, %s54
      %s48 = sphi 0, %s46
      %s49 = sphi 0, %s47
      %s50 = sphi 0, %s48
      %s51 = sphi 0, %s49
      %s63 = sphi 0, %s65
      %s66 = sphi 0, %s63
      %s67 = sphi 0, %s66
      %s83 = sphi 0, %s67
      %s91 = sphi 0, %s93
      %s94 = sphi 0, %s91
      %s95 = sphi 0, %s94
      %s111 = sphi 0, %s95
      %s117 = sphi 0, %s119
      %s120 = sphi 0, %s117
      %s121 = sphi 0, %s120
      %s137 = sphi 0, %s121
      %s141 = sphi 0, %s141
      %s143 = sphi 0, %s141
      %s144 = sphi 0, %s143
      %s158 = sphi 0, %s144
      %s162 = sphi 0, %s162
      %s164 = sphi 0, %s162
      %s165 = sphi 0, %s164
      %s179 = sphi 0, %s165
      %s183 = sphi 0, %s183
      %s185 = sphi 0, %s183
      %s186 = sphi 0, %s185
      %s200 = sphi 0, %s186
      %s204 = sphi 0, %s204
      %s206 = sphi 0, %s204
      %s207 = sphi 0, %s206
      %s221 = sphi 0, %s207
      %s225 = sphi 0, %s225
      %s227 = sphi 0, %s225
      %s228 = sphi 0, %s227
      %s242 = sphi 0, %s228
      %s246 = sphi 0, %s246
      %s248 = sphi 0, %s246
      %s249 = sphi 0, %s248
      %s263 = sphi 0, %s249
      %s267 = sphi 0, %s267
      %s269 = sphi 0, %s267
      %s270 = sphi 0, %s269
      %s284 = sphi 0, %s270
      %s288 = sphi 0, %s288
      %s290 = sphi 0, %s288
      %s291 = sphi 0, %s290
      %s305 = sphi 0, %s291
      %s309 = sphi 0, %s309
      %s311 = sphi 0, %s309
      %s312 = sphi 0, %s311
      %s326 = sphi 0, %s312
      %s330 = sphi 0, %s330
      %s332 = sphi 0, %s330
      %s333 = sphi 0, %s332
      %s347 = sphi 0, %s333
      %s351 = sphi 0, %s351
      %s353 = sphi 0, %s351
      %s354 = sphi 0, %s353
      %s368 = sphi 0, %s354
      %s372 = sphi 0, %s372
      %s374 = sphi 0, %s372
      %s375 = sphi 0, %s374
      %s389 = sphi 0, %s375
      %s393 = sphi 0, %s393
      %s395 = sphi 0, %s393
      %s396 = sphi 0, %s395
      %s410 = sphi 0, %s396
      %s414 = sphi 0, %s414
      %s416 = sphi 0, %s414
      %s417 = sphi 0, %s416
      %s431 = sphi 0, %s417
      %s435 = sphi 0, %s435
      %s437 = sphi 0, %s435
      %s438 = sphi 0, %s437
      %s452 = sphi 0, %s438
      %s456 = sphi 0, %s456
      %s458 = sphi 0, %s456
      %s459 = sphi 0, %s458
      %s473 = sphi 0, %s459
      %s477 = sphi 0, %s477
      %s479 = sphi 0, %s477
      %s480 = sphi 0, %s479
      %s494 = sphi 0, %s480
      %s498 = sphi 0, %s498
      %s500 = sphi 0, %s498
      %s501 = sphi 0, %s500
      %s515 = sphi 0, %s501
      %s523 = sphi 0, %s525
      %s526 = sphi 0, %s523
      %s527 = sphi 0, %s526
      %s543 = sphi 0, %s527
    $region4: #{tpu_custom_call.1} parent=1 // loop_header_branch
      %42 = sbr.rel (%p40) target = $region8
    $region5: #{tpu_custom_call.1} parent=1 // loop_body
      %s44 = ssub.s32 %s39, 1
      %s45 = ssub.s32 %s39, 2
      %s52 = sadd.s32 1, %s47
      %p53 = scmp.ge.s32.totalorder %s52, 1
      %s54 = scalar_select %p53, 0, %s52
      %s55 = sadd.s32 1, %s46
      %s56 = scalar_select %p53, %s55, %s46
      %p57 = scmp.ge.s32.totalorder %s56, 2
      %s58 = scalar_select %p57, 0, %s56
      %s59 = ssub.s32 %s46, %s58
      %s60 = ssub.s32 %s47, %s54
      %s61 = sor.u32 %s59, %s60
      %p62 = scmp.eq.s32.totalorder %s61, 0
      %s64 = sadd.s32 %s63, 1
      %s65 = scalar_select %p62, %s63, %s64
      %p68 = pneg %p62
      %p69 = scmp.eq.s32.totalorder %s39, 1
      %p70 = por %p68, %p69
      %p71 = scmp.ne.s32.totalorder %s63, %s66
      %p72 = scmp.eq.s32.totalorder %s39, 0
      %p73 = por %p71, %p72
      %p74 = scmp.ne.s32.totalorder %s63, %s66
      %p75 = scmp.eq.s32.totalorder %s44, 1
      %p76 = por %p74, %p75
      %p77 = scmp.ne.s32.totalorder %s66, %s67
      %p78 = scmp.eq.s32.totalorder %s44, 0
      %p79 = por %p77, %p78
      %p80 = scmp.ne.s32.totalorder %s66, %s67
      %p81 = scmp.eq.s32.totalorder %s45, 1
      %p82 = por %p80, %p81
      %p84 = scmp.ne.s32.totalorder %s67, %s83
      %p85 = scmp.eq.s32.totalorder %s45, 0
      %p86 = por %p84, %p85
      %s87 = ssub.s32 %s46, %s58
      %s88 = ssub.s32 %s47, %s54
      %s89 = sor.u32 %s87, %s88
      %p90 = scmp.eq.s32.totalorder %s89, 0
      %s92 = sadd.s32 %s91, 1
      %s93 = scalar_select %p90, %s91, %s92
      %p96 = pneg %p90
      %p97 = scmp.eq.s32.totalorder %s39, 1
      %p98 = por %p96, %p97
      %p99 = scmp.ne.s32.totalorder %s91, %s94
      %p100 = scmp.eq.s32.totalorder %s39, 0
      %p101 = por %p99, %p100
      %p102 = scmp.ne.s32.totalorder %s91, %s94
      %p103 = scmp.eq.s32.totalorder %s44, 1
      %p104 = por %p102, %p103
      %p105 = scmp.ne.s32.totalorder %s94, %s95
      %p106 = scmp.eq.s32.totalorder %s44, 0
      %p107 = por %p105, %p106
      %p108 = scmp.ne.s32.totalorder %s94, %s95
      %p109 = scmp.eq.s32.totalorder %s45, 1
      %p110 = por %p108, %p109
      %p112 = scmp.ne.s32.totalorder %s95, %s111
      %p113 = scmp.eq.s32.totalorder %s45, 0
      %p114 = por %p112, %p113
      %s115 = ssub.s32 %s46, %s58
      %p116 = scmp.eq.s32.totalorder %s115, 0
      %s118 = sadd.s32 %s117, 1
      %s119 = scalar_select %p116, %s117, %s118
      %p122 = pneg %p116
      %p123 = scmp.eq.s32.totalorder %s39, 1
      %p124 = por %p122, %p123
      %p125 = scmp.ne.s32.totalorder %s117, %s120
      %p126 = scmp.eq.s32.totalorder %s39, 0
      %p127 = por %p125, %p126
      %p128 = scmp.ne.s32.totalorder %s117, %s120
      %p129 = scmp.eq.s32.totalorder %s44, 1
      %p130 = por %p128, %p129
      %p131 = scmp.ne.s32.totalorder %s120, %s121
      %p132 = scmp.eq.s32.totalorder %s44, 0
      %p133 = por %p131, %p132
      %p134 = scmp.ne.s32.totalorder %s120, %s121
      %p135 = scmp.eq.s32.totalorder %s45, 1
      %p136 = por %p134, %p135
      %p138 = scmp.ne.s32.totalorder %s121, %s137
      %p139 = scmp.eq.s32.totalorder %s45, 0
      %p140 = por %p138, %p139
      %s142 = sadd.s32 %s141, 1
      %p145 = scmp.eq.s32.totalorder %s39, 1
      %p146 = scmp.ne.s32.totalorder %s141, %s143
      %p147 = scmp.eq.s32.totalorder %s39, 0
      %p148 = por %p146, %p147
      %p149 = scmp.ne.s32.totalorder %s141, %s143
      %p150 = scmp.eq.s32.totalorder %s44, 1
      %p151 = por %p149, %p150
      %p152 = scmp.ne.s32.totalorder %s143, %s144
      %p153 = scmp.eq.s32.totalorder %s44, 0
      %p154 = por %p152, %p153
      %p155 = scmp.ne.s32.totalorder %s143, %s144
      %p156 = scmp.eq.s32.totalorder %s45, 1
      %p157 = por %p155, %p156
      %p159 = scmp.ne.s32.totalorder %s144, %s158
      %p160 = scmp.eq.s32.totalorder %s45, 0
      %p161 = por %p159, %p160
      %s163 = sadd.s32 %s162, 1
      %p166 = scmp.eq.s32.totalorder %s39, 1
      %p167 = scmp.ne.s32.totalorder %s162, %s164
      %p168 = scmp.eq.s32.totalorder %s39, 0
      %p169 = por %p167, %p168
      %p170 = scmp.ne.s32.totalorder %s162, %s164
      %p171 = scmp.eq.s32.totalorder %s44, 1
      %p172 = por %p170, %p171
      %p173 = scmp.ne.s32.totalorder %s164, %s165
      %p174 = scmp.eq.s32.totalorder %s44, 0
      %p175 = por %p173, %p174
      %p176 = scmp.ne.s32.totalorder %s164, %s165
      %p177 = scmp.eq.s32.totalorder %s45, 1
      %p178 = por %p176, %p177
      %p180 = scmp.ne.s32.totalorder %s165, %s179
      %p181 = scmp.eq.s32.totalorder %s45, 0
      %p182 = por %p180, %p181
      %s184 = sadd.s32 %s183, 1
      %p187 = scmp.eq.s32.totalorder %s39, 1
      %p188 = scmp.ne.s32.totalorder %s183, %s185
      %p189 = scmp.eq.s32.totalorder %s39, 0
      %p190 = por %p188, %p189
      %p191 = scmp.ne.s32.totalorder %s183, %s185
      %p192 = scmp.eq.s32.totalorder %s44, 1
      %p193 = por %p191, %p192
      %p194 = scmp.ne.s32.totalorder %s185, %s186
      %p195 = scmp.eq.s32.totalorder %s44, 0
      %p196 = por %p194, %p195
      %p197 = scmp.ne.s32.totalorder %s185, %s186
      %p198 = scmp.eq.s32.totalorder %s45, 1
      %p199 = por %p197, %p198
      %p201 = scmp.ne.s32.totalorder %s186, %s200
      %p202 = scmp.eq.s32.totalorder %s45, 0
      %p203 = por %p201, %p202
      %s205 = sadd.s32 %s204, 1
      %p208 = scmp.eq.s32.totalorder %s39, 1
      %p209 = scmp.ne.s32.totalorder %s204, %s206
      %p210 = scmp.eq.s32.totalorder %s39, 0
      %p211 = por %p209, %p210
      %p212 = scmp.ne.s32.totalorder %s204, %s206
      %p213 = scmp.eq.s32.totalorder %s44, 1
      %p214 = por %p212, %p213
      %p215 = scmp.ne.s32.totalorder %s206, %s207
      %p216 = scmp.eq.s32.totalorder %s44, 0
      %p217 = por %p215, %p216
      %p218 = scmp.ne.s32.totalorder %s206, %s207
      %p219 = scmp.eq.s32.totalorder %s45, 1
      %p220 = por %p218, %p219
      %p222 = scmp.ne.s32.totalorder %s207, %s221
      %p223 = scmp.eq.s32.totalorder %s45, 0
      %p224 = por %p222, %p223
      %s226 = sadd.s32 %s225, 1
      %p229 = scmp.eq.s32.totalorder %s39, 1
      %p230 = scmp.ne.s32.totalorder %s225, %s227
      %p231 = scmp.eq.s32.totalorder %s39, 0
      %p232 = por %p230, %p231
      %p233 = scmp.ne.s32.totalorder %s225, %s227
      %p234 = scmp.eq.s32.totalorder %s44, 1
      %p235 = por %p233, %p234
      %p236 = scmp.ne.s32.totalorder %s227, %s228
      %p237 = scmp.eq.s32.totalorder %s44, 0
      %p238 = por %p236, %p237
      %p239 = scmp.ne.s32.totalorder %s227, %s228
      %p240 = scmp.eq.s32.totalorder %s45, 1
      %p241 = por %p239, %p240
      %p243 = scmp.ne.s32.totalorder %s228, %s242
      %p244 = scmp.eq.s32.totalorder %s45, 0
      %p245 = por %p243, %p244
      %s247 = sadd.s32 %s246, 1
      %p250 = scmp.eq.s32.totalorder %s39, 1
      %p251 = scmp.ne.s32.totalorder %s246, %s248
      %p252 = scmp.eq.s32.totalorder %s39, 0
      %p253 = por %p251, %p252
      %p254 = scmp.ne.s32.totalorder %s246, %s248
      %p255 = scmp.eq.s32.totalorder %s44, 1
      %p256 = por %p254, %p255
      %p257 = scmp.ne.s32.totalorder %s248, %s249
      %p258 = scmp.eq.s32.totalorder %s44, 0
      %p259 = por %p257, %p258
      %p260 = scmp.ne.s32.totalorder %s248, %s249
      %p261 = scmp.eq.s32.totalorder %s45, 1
      %p262 = por %p260, %p261
      %p264 = scmp.ne.s32.totalorder %s249, %s263
      %p265 = scmp.eq.s32.totalorder %s45, 0
      %p266 = por %p264, %p265
      %s268 = sadd.s32 %s267, 1
      %p271 = scmp.eq.s32.totalorder %s39, 1
      %p272 = scmp.ne.s32.totalorder %s267, %s269
      %p273 = scmp.eq.s32.totalorder %s39, 0
      %p274 = por %p272, %p273
      %p275 = scmp.ne.s32.totalorder %s267, %s269
      %p276 = scmp.eq.s32.totalorder %s44, 1
      %p277 = por %p275, %p276
      %p278 = scmp.ne.s32.totalorder %s269, %s270
      %p279 = scmp.eq.s32.totalorder %s44, 0
      %p280 = por %p278, %p279
      %p281 = scmp.ne.s32.totalorder %s269, %s270
      %p282 = scmp.eq.s32.totalorder %s45, 1
      %p283 = por %p281, %p282
      %p285 = scmp.ne.s32.totalorder %s270, %s284
      %p286 = scmp.eq.s32.totalorder %s45, 0
      %p287 = por %p285, %p286
      %s289 = sadd.s32 %s288, 1
      %p292 = scmp.eq.s32.totalorder %s39, 1
      %p293 = scmp.ne.s32.totalorder %s288, %s290
      %p294 = scmp.eq.s32.totalorder %s39, 0
      %p295 = por %p293, %p294
      %p296 = scmp.ne.s32.totalorder %s288, %s290
      %p297 = scmp.eq.s32.totalorder %s44, 1
      %p298 = por %p296, %p297
      %p299 = scmp.ne.s32.totalorder %s290, %s291
      %p300 = scmp.eq.s32.totalorder %s44, 0
      %p301 = por %p299, %p300
      %p302 = scmp.ne.s32.totalorder %s290, %s291
      %p303 = scmp.eq.s32.totalorder %s45, 1
      %p304 = por %p302, %p303
      %p306 = scmp.ne.s32.totalorder %s291, %s305
      %p307 = scmp.eq.s32.totalorder %s45, 0
      %p308 = por %p306, %p307
      %s310 = sadd.s32 %s309, 1
      %p313 = scmp.eq.s32.totalorder %s39, 1
      %p314 = scmp.ne.s32.totalorder %s309, %s311
      %p315 = scmp.eq.s32.totalorder %s39, 0
      %p316 = por %p314, %p315
      %p317 = scmp.ne.s32.totalorder %s309, %s311
      %p318 = scmp.eq.s32.totalorder %s44, 1
      %p319 = por %p317, %p318
      %p320 = scmp.ne.s32.totalorder %s311, %s312
      %p321 = scmp.eq.s32.totalorder %s44, 0
      %p322 = por %p320, %p321
      %p323 = scmp.ne.s32.totalorder %s311, %s312
      %p324 = scmp.eq.s32.totalorder %s45, 1
      %p325 = por %p323, %p324
      %p327 = scmp.ne.s32.totalorder %s312, %s326
      %p328 = scmp.eq.s32.totalorder %s45, 0
      %p329 = por %p327, %p328
      %s331 = sadd.s32 %s330, 1
      %p334 = scmp.eq.s32.totalorder %s39, 1
      %p335 = scmp.ne.s32.totalorder %s330, %s332
      %p336 = scmp.eq.s32.totalorder %s39, 0
      %p337 = por %p335, %p336
      %p338 = scmp.ne.s32.totalorder %s330, %s332
      %p339 = scmp.eq.s32.totalorder %s44, 1
      %p340 = por %p338, %p339
      %p341 = scmp.ne.s32.totalorder %s332, %s333
      %p342 = scmp.eq.s32.totalorder %s44, 0
      %p343 = por %p341, %p342
      %p344 = scmp.ne.s32.totalorder %s332, %s333
      %p345 = scmp.eq.s32.totalorder %s45, 1
      %p346 = por %p344, %p345
      %p348 = scmp.ne.s32.totalorder %s333, %s347
      %p349 = scmp.eq.s32.totalorder %s45, 0
      %p350 = por %p348, %p349
      %s352 = sadd.s32 %s351, 1
      %p355 = scmp.eq.s32.totalorder %s39, 1
      %p356 = scmp.ne.s32.totalorder %s351, %s353
      %p357 = scmp.eq.s32.totalorder %s39, 0
      %p358 = por %p356, %p357
      %p359 = scmp.ne.s32.totalorder %s351, %s353
      %p360 = scmp.eq.s32.totalorder %s44, 1
      %p361 = por %p359, %p360
      %p362 = scmp.ne.s32.totalorder %s353, %s354
      %p363 = scmp.eq.s32.totalorder %s44, 0
      %p364 = por %p362, %p363
      %p365 = scmp.ne.s32.totalorder %s353, %s354
      %p366 = scmp.eq.s32.totalorder %s45, 1
      %p367 = por %p365, %p366
      %p369 = scmp.ne.s32.totalorder %s354, %s368
      %p370 = scmp.eq.s32.totalorder %s45, 0
      %p371 = por %p369, %p370
      %s373 = sadd.s32 %s372, 1
      %p376 = scmp.eq.s32.totalorder %s39, 1
      %p377 = scmp.ne.s32.totalorder %s372, %s374
      %p378 = scmp.eq.s32.totalorder %s39, 0
      %p379 = por %p377, %p378
      %p380 = scmp.ne.s32.totalorder %s372, %s374
      %p381 = scmp.eq.s32.totalorder %s44, 1
      %p382 = por %p380, %p381
      %p383 = scmp.ne.s32.totalorder %s374, %s375
      %p384 = scmp.eq.s32.totalorder %s44, 0
      %p385 = por %p383, %p384
      %p386 = scmp.ne.s32.totalorder %s374, %s375
      %p387 = scmp.eq.s32.totalorder %s45, 1
      %p388 = por %p386, %p387
      %p390 = scmp.ne.s32.totalorder %s375, %s389
      %p391 = scmp.eq.s32.totalorder %s45, 0
      %p392 = por %p390, %p391
      %s394 = sadd.s32 %s393, 1
      %p397 = scmp.eq.s32.totalorder %s39, 1
      %p398 = scmp.ne.s32.totalorder %s393, %s395
      %p399 = scmp.eq.s32.totalorder %s39, 0
      %p400 = por %p398, %p399
      %p401 = scmp.ne.s32.totalorder %s393, %s395
      %p402 = scmp.eq.s32.totalorder %s44, 1
      %p403 = por %p401, %p402
      %p404 = scmp.ne.s32.totalorder %s395, %s396
      %p405 = scmp.eq.s32.totalorder %s44, 0
      %p406 = por %p404, %p405
      %p407 = scmp.ne.s32.totalorder %s395, %s396
      %p408 = scmp.eq.s32.totalorder %s45, 1
      %p409 = por %p407, %p408
      %p411 = scmp.ne.s32.totalorder %s396, %s410
      %p412 = scmp.eq.s32.totalorder %s45, 0
      %p413 = por %p411, %p412
      %s415 = sadd.s32 %s414, 1
      %p418 = scmp.eq.s32.totalorder %s39, 1
      %p419 = scmp.ne.s32.totalorder %s414, %s416
      %p420 = scmp.eq.s32.totalorder %s39, 0
      %p421 = por %p419, %p420
      %p422 = scmp.ne.s32.totalorder %s414, %s416
      %p423 = scmp.eq.s32.totalorder %s44, 1
      %p424 = por %p422, %p423
      %p425 = scmp.ne.s32.totalorder %s416, %s417
      %p426 = scmp.eq.s32.totalorder %s44, 0
      %p427 = por %p425, %p426
      %p428 = scmp.ne.s32.totalorder %s416, %s417
      %p429 = scmp.eq.s32.totalorder %s45, 1
      %p430 = por %p428, %p429
      %p432 = scmp.ne.s32.totalorder %s417, %s431
      %p433 = scmp.eq.s32.totalorder %s45, 0
      %p434 = por %p432, %p433
      %s436 = sadd.s32 %s435, 1
      %p439 = scmp.eq.s32.totalorder %s39, 1
      %p440 = scmp.ne.s32.totalorder %s435, %s437
      %p441 = scmp.eq.s32.totalorder %s39, 0
      %p442 = por %p440, %p441
      %p443 = scmp.ne.s32.totalorder %s435, %s437
      %p444 = scmp.eq.s32.totalorder %s44, 1
      %p445 = por %p443, %p444
      %p446 = scmp.ne.s32.totalorder %s437, %s438
      %p447 = scmp.eq.s32.totalorder %s44, 0
      %p448 = por %p446, %p447
      %p449 = scmp.ne.s32.totalorder %s437, %s438
      %p450 = scmp.eq.s32.totalorder %s45, 1
      %p451 = por %p449, %p450
      %p453 = scmp.ne.s32.totalorder %s438, %s452
      %p454 = scmp.eq.s32.totalorder %s45, 0
      %p455 = por %p453, %p454
      %s457 = sadd.s32 %s456, 1
      %p460 = scmp.eq.s32.totalorder %s39, 1
      %p461 = scmp.ne.s32.totalorder %s456, %s458
      %p462 = scmp.eq.s32.totalorder %s39, 0
      %p463 = por %p461, %p462
      %p464 = scmp.ne.s32.totalorder %s456, %s458
      %p465 = scmp.eq.s32.totalorder %s44, 1
      %p466 = por %p464, %p465
      %p467 = scmp.ne.s32.totalorder %s458, %s459
      %p468 = scmp.eq.s32.totalorder %s44, 0
      %p469 = por %p467, %p468
      %p470 = scmp.ne.s32.totalorder %s458, %s459
      %p471 = scmp.eq.s32.totalorder %s45, 1
      %p472 = por %p470, %p471
      %p474 = scmp.ne.s32.totalorder %s459, %s473
      %p475 = scmp.eq.s32.totalorder %s45, 0
      %p476 = por %p474, %p475
      %s478 = sadd.s32 %s477, 1
      %p481 = scmp.eq.s32.totalorder %s39, 1
      %p482 = scmp.ne.s32.totalorder %s477, %s479
      %p483 = scmp.eq.s32.totalorder %s39, 0
      %p484 = por %p482, %p483
      %p485 = scmp.ne.s32.totalorder %s477, %s479
      %p486 = scmp.eq.s32.totalorder %s44, 1
      %p487 = por %p485, %p486
      %p488 = scmp.ne.s32.totalorder %s479, %s480
      %p489 = scmp.eq.s32.totalorder %s44, 0
      %p490 = por %p488, %p489
      %p491 = scmp.ne.s32.totalorder %s479, %s480
      %p492 = scmp.eq.s32.totalorder %s45, 1
      %p493 = por %p491, %p492
      %p495 = scmp.ne.s32.totalorder %s480, %s494
      %p496 = scmp.eq.s32.totalorder %s45, 0
      %p497 = por %p495, %p496
      %s499 = sadd.s32 %s498, 1
      %p502 = scmp.eq.s32.totalorder %s39, 1
      %p503 = scmp.ne.s32.totalorder %s498, %s500
      %p504 = scmp.eq.s32.totalorder %s39, 0
      %p505 = por %p503, %p504
      %p506 = scmp.ne.s32.totalorder %s498, %s500
      %p507 = scmp.eq.s32.totalorder %s44, 1
      %p508 = por %p506, %p507
      %p509 = scmp.ne.s32.totalorder %s500, %s501
      %p510 = scmp.eq.s32.totalorder %s44, 0
      %p511 = por %p509, %p510
      %p512 = scmp.ne.s32.totalorder %s500, %s501
      %p513 = scmp.eq.s32.totalorder %s45, 1
      %p514 = por %p512, %p513
      %p516 = scmp.ne.s32.totalorder %s501, %s515
      %p517 = scmp.eq.s32.totalorder %s45, 0
      %p518 = por %p516, %p517
      %s519 = ssub.s32 %s46, %s58
      %s520 = ssub.s32 %s47, %s54
      %s521 = sor.u32 %s519, %s520
      %p522 = scmp.eq.s32.totalorder %s521, 0
      %s524 = sadd.s32 %s523, 1
      %s525 = scalar_select %p522, %s523, %s524
      %p528 = pneg %p522
      %p529 = scmp.eq.s32.totalorder %s39, 1
      %p530 = por %p528, %p529
      %p531 = scmp.ne.s32.totalorder %s523, %s526
      %p532 = scmp.eq.s32.totalorder %s39, 0
      %p533 = por %p531, %p532
      %p534 = scmp.ne.s32.totalorder %s523, %s526
      %p535 = scmp.eq.s32.totalorder %s44, 1
      %p536 = por %p534, %p535
      %p537 = scmp.ne.s32.totalorder %s526, %s527
      %p538 = scmp.eq.s32.totalorder %s44, 0
      %p539 = por %p537, %p538
      %p540 = scmp.ne.s32.totalorder %s526, %s527
      %p541 = scmp.eq.s32.totalorder %s45, 1
      %p542 = por %p540, %p541
      %p544 = scmp.ne.s32.totalorder %s527, %s543
      %p545 = scmp.eq.s32.totalorder %s45, 0
      %p546 = por %p544, %p545
      %p547 = scmp.le.s32.totalorder 1, %s39
      %p548 = scmp.lt.s32.totalorder %s39, 3
      %p549 = pnand %p547, %p548
      %p550 = pneg %p549
      // Predicated region
      $region9: #{tpu_custom_call.1} parent=5 // pred_check
        _
      $region10: #{tpu_custom_call.1} parent=5 // pred_check_branch
        %552 = sbr.rel (%p549) target = $region12
      $region11: #{tpu_custom_call.1} parent=5 // pred_region
        %s553 = ssub.s32 %s39, 1
        // Predicated region
        $region13: #{tpu_custom_call.1} parent=11 // pred_check
          %p554 = pneg %p154
        $region14: #{tpu_custom_call.1} parent=11 // pred_check_branch
          %556 = sbr.rel (%p554) target = $region16
        $region15: #{tpu_custom_call.1} parent=11 // pred_region
          _
        $region16: #{tpu_custom_call.1} parent=11 // pred_fallthru
          _
        // Predicated region
        $region17: #{tpu_custom_call.1} parent=11 // pred_check
          %p557 = pneg %p175
        $region18: #{tpu_custom_call.1} parent=11 // pred_check_branch
          %559 = sbr.rel (%p557) target = $region20
        $region19: #{tpu_custom_call.1} parent=11 // pred_region
          _
        $region20: #{tpu_custom_call.1} parent=11 // pred_fallthru
          _
        // Predicated region
        $region21: #{tpu_custom_call.1} parent=11 // pred_check
          %p560 = pneg %p196
        $region22: #{tpu_custom_call.1} parent=11 // pred_check_branch
          %562 = sbr.rel (%p560) target = $region24
        $region23: #{tpu_custom_call.1} parent=11 // pred_region
          _
        $region24: #{tpu_custom_call.1} parent=11 // pred_fallthru
          _
        // Predicated region
        $region25: #{tpu_custom_call.1} parent=11 // pred_check
          %p563 = pneg %p217
        $region26: #{tpu_custom_call.1} parent=11 // pred_check_branch
          %565 = sbr.rel (%p563) target = $region28
        $region27: #{tpu_custom_call.1} parent=11 // pred_region
          _
        $region28: #{tpu_custom_call.1} parent=11 // pred_fallthru
          _
        // Predicated region
        $region29: #{tpu_custom_call.1} parent=11 // pred_check
          %p566 = pneg %p238
        $region30: #{tpu_custom_call.1} parent=11 // pred_check_branch
          %568 = sbr.rel (%p566) target = $region32
        $region31: #{tpu_custom_call.1} parent=11 // pred_region
          _
        $region32: #{tpu_custom_call.1} parent=11 // pred_fallthru
          _
        // Predicated region
        $region33: #{tpu_custom_call.1} parent=11 // pred_check
          %p569 = pneg %p259
        $region34: #{tpu_custom_call.1} parent=11 // pred_check_branch
          %571 = sbr.rel (%p569) target = $region36
        $region35: #{tpu_custom_call.1} parent=11 // pred_region
          _
        $region36: #{tpu_custom_call.1} parent=11 // pred_fallthru
          _
        // Predicated region
        $region37: #{tpu_custom_call.1} parent=11 // pred_check
          %p572 = pneg %p280
        $region38: #{tpu_custom_call.1} parent=11 // pred_check_branch
          %574 = sbr.rel (%p572) target = $region40
        $region39: #{tpu_custom_call.1} parent=11 // pred_region
          %s576 = ssub.s32 256, 256
          %577 = vsyncadd [#allocation6], %s576
          %s578 = sshll.u32 [#allocation7], 4
          %s579 = int_to_ptr.vmem [resolvable:$true] %s578
          %584 = dma.hbm_to_vmem [thread:$0]  %s9, 256, %s579, [#allocation6], 64, 64, 4
        $region40: #{tpu_custom_call.1} parent=11 // pred_fallthru
          _
        // Predicated region
        $region41: #{tpu_custom_call.1} parent=11 // pred_check
          %p585 = pneg %p301
        $region42: #{tpu_custom_call.1} parent=11 // pred_check_branch
          %587 = sbr.rel (%p585) target = $region44
        $region43: #{tpu_custom_call.1} parent=11 // pred_region
          %s589 = ssub.s32 16, 16
          %590 = vsyncadd [#allocation9], %s589
          %s592 = sshll.u32 [#allocation8], 4
          %s593 = int_to_ptr.vmem [resolvable:$true] %s592
          %595 = dma.hbm_to_vmem [thread:$0]  %s10, 16, %s593, [#allocation9]
        $region44: #{tpu_custom_call.1} parent=11 // pred_fallthru
          _
        // Predicated region
        $region45: #{tpu_custom_call.1} parent=11 // pred_check
          %p596 = pneg %p322
        $region46: #{tpu_custom_call.1} parent=11 // pred_check_branch
          %598 = sbr.rel (%p596) target = $region48
        $region47: #{tpu_custom_call.1} parent=11 // pred_region
          %s600 = ssub.s32 16, 16
          %601 = vsyncadd [#allocation9], %s600
          %s603 = sshll.u32 [#allocation10], 4
          %s604 = int_to_ptr.vmem [resolvable:$true] %s603
          %606 = dma.hbm_to_vmem [thread:$0]  %s11, 16, %s604, [#allocation9]
        $region48: #{tpu_custom_call.1} parent=11 // pred_fallthru
          _
        // Predicated region
        $region49: #{tpu_custom_call.1} parent=11 // pred_check
          %p607 = pneg %p343
        $region50: #{tpu_custom_call.1} parent=11 // pred_check_branch
          %609 = sbr.rel (%p607) target = $region52
        $region51: #{tpu_custom_call.1} parent=11 // pred_region
          %s611 = ssub.s32 16, 16
          %612 = vsyncadd [#allocation12], %s611
          %s614 = sshll.u32 [#allocation11], 4
          %s615 = int_to_ptr.vmem [resolvable:$true] %s614
          %617 = dma.hbm_to_vmem [thread:$0]  %s12, 16, %s615, [#allocation12]
        $region52: #{tpu_custom_call.1} parent=11 // pred_fallthru
          _
        // Predicated region
        $region53: #{tpu_custom_call.1} parent=11 // pred_check
          %p618 = pneg %p364
        $region54: #{tpu_custom_call.1} parent=11 // pred_check_branch
          %620 = sbr.rel (%p618) target = $region56
        $region55: #{tpu_custom_call.1} parent=11 // pred_region
          %s622 = ssub.s32 256, 256
          %623 = vsyncadd [#allocation12], %s622
          %s624 = sshll.u32 [#allocation13], 4
          %s625 = int_to_ptr.vmem [resolvable:$true] %s624
          %630 = dma.hbm_to_vmem [thread:$0]  %s13, 256, %s625, [#allocation12], 64, 64, 4
        $region56: #{tpu_custom_call.1} parent=11 // pred_fallthru
          _
        // Predicated region
        $region57: #{tpu_custom_call.1} parent=11 // pred_check
          %p631 = pneg %p385
        $region58: #{tpu_custom_call.1} parent=11 // pred_check_branch
          %633 = sbr.rel (%p631) target = $region60
        $region59: #{tpu_custom_call.1} parent=11 // pred_region
          %s635 = ssub.s32 16, 16
          %636 = vsyncadd [#allocation15], %s635
          %s638 = sshll.u32 [#allocation14], 4
          %s639 = int_to_ptr.vmem [resolvable:$true] %s638
          %641 = dma.hbm_to_vmem [thread:$0]  %s14, 16, %s639, [#allocation15]
        $region60: #{tpu_custom_call.1} parent=11 // pred_fallthru
          _
        // Predicated region
        $region61: #{tpu_custom_call.1} parent=11 // pred_check
          %p642 = pneg %p406
        $region62: #{tpu_custom_call.1} parent=11 // pred_check_branch
          %644 = sbr.rel (%p642) target = $region64
        $region63: #{tpu_custom_call.1} parent=11 // pred_region
          _
        $region64: #{tpu_custom_call.1} parent=11 // pred_fallthru
          _
        // Predicated region
        $region65: #{tpu_custom_call.1} parent=11 // pred_check
          %p645 = pneg %p427
        $region66: #{tpu_custom_call.1} parent=11 // pred_check_branch
          %647 = sbr.rel (%p645) target = $region68
        $region67: #{tpu_custom_call.1} parent=11 // pred_region
          %s649 = ssub.s32 16, 16
          %650 = vsyncadd [#allocation15], %s649
          %s652 = sshll.u32 [#allocation16], 4
          %s653 = int_to_ptr.vmem [resolvable:$true] %s652
          %655 = dma.hbm_to_vmem [thread:$0]  %s16, 16, %s653, [#allocation15]
        $region68: #{tpu_custom_call.1} parent=11 // pred_fallthru
          _
        // Predicated region
        $region69: #{tpu_custom_call.1} parent=11 // pred_check
          %p656 = pneg %p448
        $region70: #{tpu_custom_call.1} parent=11 // pred_check_branch
          %658 = sbr.rel (%p656) target = $region72
        $region71: #{tpu_custom_call.1} parent=11 // pred_region
          _
        $region72: #{tpu_custom_call.1} parent=11 // pred_fallthru
          _
        // Predicated region
        $region73: #{tpu_custom_call.1} parent=11 // pred_check
          %p659 = pneg %p469
        $region74: #{tpu_custom_call.1} parent=11 // pred_check_branch
          %661 = sbr.rel (%p659) target = $region76
        $region75: #{tpu_custom_call.1} parent=11 // pred_region
          _
        $region76: #{tpu_custom_call.1} parent=11 // pred_fallthru
          _
        // Predicated region
        $region77: #{tpu_custom_call.1} parent=11 // pred_check
          %p662 = pneg %p490
        $region78: #{tpu_custom_call.1} parent=11 // pred_check_branch
          %664 = sbr.rel (%p662) target = $region80
        $region79: #{tpu_custom_call.1} parent=11 // pred_region
          _
        $region80: #{tpu_custom_call.1} parent=11 // pred_fallthru
          _
        // Predicated region
        $region81: #{tpu_custom_call.1} parent=11 // pred_check
          %p665 = pneg %p511
        $region82: #{tpu_custom_call.1} parent=11 // pred_check_branch
          %667 = sbr.rel (%p665) target = $region84
        $region83: #{tpu_custom_call.1} parent=11 // pred_region
          _
        $region84: #{tpu_custom_call.1} parent=11 // pred_fallthru
          _
      $region12: #{tpu_custom_call.1} parent=5 // pred_fallthru
        _
      %p668 = scmp.lt.s32.totalorder %s39, 2
      // Predicated region
      $region85: #{tpu_custom_call.1} parent=5 // pred_check
        %p669 = pneg %p668
      $region86: #{tpu_custom_call.1} parent=5 // pred_check_branch
        %671 = sbr.rel (%p669) target = $region88
      $region87: #{tpu_custom_call.1} parent=5 // pred_region
        // Predicated region
        $region89: #{tpu_custom_call.1} parent=87 // pred_check
          %p672 = pneg %p73
        $region90: #{tpu_custom_call.1} parent=87 // pred_check_branch
          %674 = sbr.rel (%p672) target = $region92
        $region91: #{tpu_custom_call.1} parent=87 // pred_region
          %p675 = scmp.lt.s32.totalorder %s46, 1
          %s676 = scalar_select %p675, %s46, 1
          %p677 = scmp.lt.s32.totalorder %s47, 0
          %s678 = scalar_select %p677, %s47, 0
          %s679 = sadd.s32 %s678, %s676
          %s680 = smul.addr %s679, 8
          %s681 = scalar_lea.vmem %s0, %s680
        $region92: #{tpu_custom_call.1} parent=87 // pred_fallthru
          _
        // Predicated region
        $region93: #{tpu_custom_call.1} parent=87 // pred_check
          %p682 = pneg %p101
        $region94: #{tpu_custom_call.1} parent=87 // pred_check_branch
          %684 = sbr.rel (%p682) target = $region96
        $region95: #{tpu_custom_call.1} parent=87 // pred_region
          %s685 = sand.u32 %s91, 1
          %s686 = scalar_lea.sflag [#allocation3], %s685
          %s687 = sand.u32 %s91, 1
          %s688 = smul.addr %s687, 32
          %s689 = scalar_lea.vmem [#allocation2], %s688
          %s691 = ssub.s32 512, 512
          %692 = vsyncadd %s686, %s691
          %s693 = smul.addr %s46, 4
          %s694 = sadd.s32 %s47, %s693
          %s695 = smul.addr %s694, 128
          %s696 = scalar_lea.hbm %s1, %s695
          %s697 = sshll.u32 %s689, 4
          %s698 = int_to_ptr.vmem [resolvable:$true] %s697
          %703 = dma.hbm_to_vmem [thread:$0]  %s696, 512, %s698, %s686, 128, 128, 8
        $region96: #{tpu_custom_call.1} parent=87 // pred_fallthru
          _
        // Predicated region
        $region97: #{tpu_custom_call.1} parent=87 // pred_check
          %p704 = pneg %p127
        $region98: #{tpu_custom_call.1} parent=87 // pred_check_branch
          %706 = sbr.rel (%p704) target = $region100
        $region99: #{tpu_custom_call.1} parent=87 // pred_region
          %s707 = sand.u32 %s39, 1
          %s708 = scalar_lea.sflag [#allocation6], %s707
          %s709 = sand.u32 %s117, 1
          %s710 = smul.addr %s709, 32
          %s711 = scalar_lea.vmem [#allocation5], %s710
          %s713 = ssub.s32 512, 512
          %714 = vsyncadd %s708, %s713
          %s715 = smul.addr %s46, 4
          %s716 = smul.addr %s715, 128
          %s717 = scalar_lea.hbm %s2, %s716
          %s718 = sshll.u32 %s711, 4
          %s719 = int_to_ptr.vmem [resolvable:$true] %s718
          %724 = dma.hbm_to_vmem [thread:$0]  %s717, 512, %s719, %s708, 128, 128, 8
        $region100: #{tpu_custom_call.1} parent=87 // pred_fallthru
          _
      $region88: #{tpu_custom_call.1} parent=5 // pred_fallthru
        _
      %p725 = scmp.le.s32.totalorder 1, %s39
      %p726 = scmp.lt.s32.totalorder %s39, 3
      %p727 = pnand %p725, %p726
      %p728 = pneg %p727
      // Predicated region
      $region101: #{tpu_custom_call.1} parent=5 // pred_check
        _
      $region102: #{tpu_custom_call.1} parent=5 // pred_check_branch
        %730 = sbr.rel (%p727) target = $region104
      $region103: #{tpu_custom_call.1} parent=5 // pred_region
        %s731 = ssub.s32 %s39, 1
        %s732 = sand.u32 %s94, 1
        %s733 = scalar_lea.sflag [#allocation3], %s732
        %s734 = sand.u32 %s94, 1
        %s735 = smul.addr %s734, 32
        %s736 = scalar_lea.vmem [#allocation2], %s735
        // Predicated region
        $region105: #{tpu_custom_call.1} parent=103 // pred_check
          %p737 = pneg %p107
        $region106: #{tpu_custom_call.1} parent=103 // pred_check_branch
          %739 = sbr.rel (%p737) target = $region108
        $region107: #{tpu_custom_call.1} parent=103 // pred_region
          %740 = dma.done %s733, 512
        $region108: #{tpu_custom_call.1} parent=103 // pred_fallthru
          _
        %s741 = sand.u32 %s44, 1
        %s742 = scalar_lea.sflag [#allocation6], %s741
        %s743 = sand.u32 %s120, 1
        %s744 = smul.addr %s743, 32
        %s745 = scalar_lea.vmem [#allocation5], %s744
        // Predicated region
        $region109: #{tpu_custom_call.1} parent=103 // pred_check
          %p746 = pneg %p133
        $region110: #{tpu_custom_call.1} parent=103 // pred_check_branch
          %748 = sbr.rel (%p746) target = $region112
        $region111: #{tpu_custom_call.1} parent=103 // pred_region
          %749 = dma.done %s742, 512
        $region112: #{tpu_custom_call.1} parent=103 // pred_fallthru
          _
        // Predicated region
        $region113: #{tpu_custom_call.1} parent=103 // pred_check
          %p750 = pneg %p280
        $region114: #{tpu_custom_call.1} parent=103 // pred_check_branch
          %752 = sbr.rel (%p750) target = $region116
        $region115: #{tpu_custom_call.1} parent=103 // pred_region
          %753 = dma.done [#allocation6], 256
        $region116: #{tpu_custom_call.1} parent=103 // pred_fallthru
          _
        // Predicated region
        $region117: #{tpu_custom_call.1} parent=103 // pred_check
          %p754 = pneg %p301
        $region118: #{tpu_custom_call.1} parent=103 // pred_check_branch
          %756 = sbr.rel (%p754) target = $region120
        $region119: #{tpu_custom_call.1} parent=103 // pred_region
          %757 = dma.done [#allocation9], 16
        $region120: #{tpu_custom_call.1} parent=103 // pred_fallthru
          _
        // Predicated region
        $region121: #{tpu_custom_call.1} parent=103 // pred_check
          %p758 = pneg %p322
        $region122: #{tpu_custom_call.1} parent=103 // pred_check_branch
          %760 = sbr.rel (%p758) target = $region124
        $region123: #{tpu_custom_call.1} parent=103 // pred_region
          %761 = dma.done [#allocation9], 16
        $region124: #{tpu_custom_call.1} parent=103 // pred_fallthru
          _
        // Predicated region
        $region125: #{tpu_custom_call.1} parent=103 // pred_check
          %p762 = pneg %p343
        $region126: #{tpu_custom_call.1} parent=103 // pred_check_branch
          %764 = sbr.rel (%p762) target = $region128
        $region127: #{tpu_custom_call.1} parent=103 // pred_region
          %765 = dma.done [#allocation12], 16
        $region128: #{tpu_custom_call.1} parent=103 // pred_fallthru
          _
        // Predicated region
        $region129: #{tpu_custom_call.1} parent=103 // pred_check
          %p766 = pneg %p364
        $region130: #{tpu_custom_call.1} parent=103 // pred_check_branch
          %768 = sbr.rel (%p766) target = $region132
        $region131: #{tpu_custom_call.1} parent=103 // pred_region
          %769 = dma.done [#allocation12], 256
        $region132: #{tpu_custom_call.1} parent=103 // pred_fallthru
          _
        // Predicated region
        $region133: #{tpu_custom_call.1} parent=103 // pred_check
          %p770 = pneg %p385
        $region134: #{tpu_custom_call.1} parent=103 // pred_check_branch
          %772 = sbr.rel (%p770) target = $region136
        $region135: #{tpu_custom_call.1} parent=103 // pred_region
          %773 = dma.done [#allocation15], 16
        $region136: #{tpu_custom_call.1} parent=103 // pred_fallthru
          _
        // Predicated region
        $region137: #{tpu_custom_call.1} parent=103 // pred_check
          %p774 = pneg %p427
        $region138: #{tpu_custom_call.1} parent=103 // pred_check_branch
          %776 = sbr.rel (%p774) target = $region140
        $region139: #{tpu_custom_call.1} parent=103 // pred_region
          %777 = dma.done [#allocation15], 16
        $region140: #{tpu_custom_call.1} parent=103 // pred_fallthru
          _
        %p778 = scmp.lt.s32.totalorder %s48, 1
        %s779 = scalar_select %p778, %s48, 1
        %p780 = scmp.lt.s32.totalorder %s49, 0
        %s781 = scalar_select %p780, %s49, 0
        %s782 = sadd.s32 %s781, %s779
        %s783 = smul.addr %s782, 8
        %s784 = scalar_lea.vmem %s0, %s783
        %p785 = pneg %p79
        %p786 = pneg %p76
        %s787 = sand.u32 %s94, 1
        %s788 = scalar_lea.sflag [#allocation3], %s787
        %s789 = sand.u32 %s94, 1
        %s790 = smul.addr %s789, 32
        %s791 = scalar_lea.vmem [#allocation2], %s790
        %p792 = pneg %p107
        %p793 = pneg %p104
        %s794 = sand.u32 %s44, 1
        %s795 = scalar_lea.sflag [#allocation6], %s794
        %s796 = sand.u32 %s120, 1
        %s797 = smul.addr %s796, 32
        %s798 = scalar_lea.vmem [#allocation5], %s797
        %p799 = pneg %p133
        %p800 = pneg %p130
        %p801 = pneg %p154
        %p802 = pneg %p151
        %p803 = pneg %p175
        %p804 = pneg %p172
        %p805 = pneg %p196
        %p806 = pneg %p193
        %p807 = pneg %p217
        %p808 = pneg %p214
        %p809 = pneg %p238
        %p810 = pneg %p235
        %p811 = pneg %p259
        %p812 = pneg %p256
        %p813 = pneg %p280
        %p814 = pneg %p277
        %p815 = pneg %p301
        %p816 = pneg %p298
        %p817 = pneg %p322
        %p818 = pneg %p319
        %p819 = pneg %p343
        %p820 = pneg %p340
        %p821 = pneg %p364
        %p822 = pneg %p361
        %p823 = pneg %p385
        %p824 = pneg %p382
        %p825 = pneg %p406
        %p826 = pneg %p403
        %p827 = pneg %p427
        %p828 = pneg %p424
        %p829 = pneg %p448
        %p830 = pneg %p445
        %p831 = pneg %p469
        %p832 = pneg %p466
        %p833 = pneg %p490
        %p834 = pneg %p487
        %p835 = pneg %p511
        %p836 = pneg %p508
        %p837 = pneg %p539
        %p838 = pneg %p536
        %s839 = sand.u32 %s526, 1
        %s840 = scalar_lea.sflag [#allocation4], %s839
        %s841 = sand.u32 %s526, 1
        %s842 = smul.addr %s841, 8
        %s843 = scalar_lea.vmem [#allocation17], %s842
        %p844 = scmp.lt.s32.totalorder %s48, 1
        %s845 = scalar_select %p844, %s48, 1
        %p846 = scmp.lt.s32.totalorder %s49, 0
        %s847 = scalar_select %p846, %s49, 0
        %s848 = sadd.s32 %s847, %s845
        %s849 = smul.addr %s848, 8
        %s850 = scalar_lea.vmem %s0, %s849
        %v852 = vld [vmem:[%s850] sm:$0xff]
        %v853 = vld [vmem:[%s736] sm:$0xff]
        %v854 = vld [vmem:[%s736 + $0x8] sm:$0xff]
        %v855 = vld [vmem:[%s736 + $0x10] sm:$0xff]
        %v856 = vld [vmem:[%s736 + $0x18] sm:$0xff]
        %v857 = vld [vmem:[%s745] sm:$0xff]
        %v858 = vld [vmem:[%s745 + $0x8] sm:$0xff]
        %v859 = vld [vmem:[%s745 + $0x10] sm:$0xff]
        %v860 = vld [vmem:[%s745 + $0x18] sm:$0xff]
        %v861 = vpack.c.bf16 %v854, %v853
        %v862 = vpack.c.bf16 %v856, %v855
        %v863 = vld [vmem:[%s3] sm:$0xf]
        %v864 = vld [vmem:[%s4] sm:$0x1]
        %v866 = vlaneseq
        %v867 = vshrl.u32 %v866, 7
        %v868 = vsub.s32 0, %v867
        %v869 = vrot.slane %v864, %v868
        %vm871 = vcmask 64512
        %v873 = vsel %vm871, %v861, 0
        %v876 = vsel %vm871, %v862, 0
        %vm878 = vcmask 1043456
        %v880 = vsel %vm878, %v863, 0
        %882 = vmatprep.subr.bf16.mxu0 0
        %883 = vmatpush1.bf16.msra.mxu0 0
        %884 = vmatprep.subr.bf16.mxu0 0
        %885 = vmatpush1.bf16.msra.mxu0 0
        %886 = vmatprep.subr.bf16.mxu0 0
        %887 = vmatpush1.bf16.msra.mxu0 0
        %888 = vmatprep.subr.bf16.mxu0 0
        %889 = vmatpush1.bf16.msra.mxu0 0
        %890 = vmatprep.subr.bf16.mxu0 0
        %891 = vmatpush1.bf16.msra.mxu0 0
        %892 = vmatprep.subr.bf16.mxu0 0
        %893 = vmatpush1.bf16.msra.mxu0 0
        %894 = vmatprep.subr.bf16.mxu0 0
        %895 = vmatpush1.bf16.msra.mxu0 0
        %896 = vmatprep.subr.bf16.mxu0 0
        %897 = vmatpush1.bf16.msra.mxu0 %v880
        %898 = vmatprep.subr.bf16.mxu0 0
        %899 = vmatpush2.bf16.msra.mxu0 0
        %900 = vmatprep.subr.bf16.mxu0 0
        %901 = vmatpush2.bf16.msra.mxu0 0
        %902 = vmatprep.subr.bf16.mxu0 0
        %903 = vmatpush2.bf16.msra.mxu0 0
        %904 = vmatprep.subr.bf16.mxu0 0
        %905 = vmatpush2.bf16.msra.mxu0 0
        %906 = vmatprep.subr.bf16.mxu0 0
        %907 = vmatpush2.bf16.msra.mxu0 0
        %908 = vmatprep.subr.bf16.mxu0 0
        %909 = vmatpush2.bf16.msra.mxu0 0
        %910 = vmatprep.subr.bf16.mxu0 0
        %911 = vmatpush2.bf16.msra.mxu0 0
        %912 = vmatprep.subr.bf16.mxu0 0
        %913 = vmatpush2.bf16.msra.mxu0 0
        %914 = vmatprep.mubr.bf16.mxu0 0
        %915 = vmatmul.mubr.bf16.gmra.mxu0 %v873
        %v916 = vpop.f32.mrf.mxu0
        %v917 = vadd.f32 %v869, %v916
        %v918 = vpop.f32.mrf.mxu0
        %v919 = vpop.f32.mrf.mxu0
        %v920 = vadd.f32 %v869, %v919
        %v921 = vpop.f32.mrf.mxu0
        %922 = vmatprep.mubr.bf16.mxu0 0
        %923 = vmatmul.mubr.bf16.gmra.mxu0 %v876
        %v924 = vpop.f32.mrf.mxu0
        %v925 = vadd.f32 %v869, %v924
        %v926 = vpop.f32.mrf.mxu0
        %v927 = vpop.f32.mrf.mxu0
        %v928 = vadd.f32 %v869, %v927
        %v929 = vpop.f32.mrf.mxu0
        %930 = vdwg.mxu0
        %v931 = vpack.c.bf16 %v858, %v857
        %v932 = vpack.c.bf16 %v860, %v859
        %v933 = vld [vmem:[%s5] sm:$0xf]
        %v934 = vld [vmem:[%s6] sm:$0x1]
        %v936 = vlaneseq
        %v937 = vshrl.u32 %v936, 7
        %v938 = vsub.s32 0, %v937
        %v939 = vrot.slane %v934, %v938
        %v942 = vsel %vm871, %v931, 0
        %v945 = vsel %vm871, %v932, 0
        %v948 = vsel %vm878, %v933, 0
        %950 = vmatprep.subr.bf16.mxu0 0
        %951 = vmatpush1.bf16.msra.mxu0 0
        %952 = vmatprep.subr.bf16.mxu0 0
        %953 = vmatpush1.bf16.msra.mxu0 0
        %954 = vmatprep.subr.bf16.mxu0 0
        %955 = vmatpush1.bf16.msra.mxu0 0
        %956 = vmatprep.subr.bf16.mxu0 0
        %957 = vmatpush1.bf16.msra.mxu0 0
        %958 = vmatprep.subr.bf16.mxu0 0
        %959 = vmatpush1.bf16.msra.mxu0 0
        %960 = vmatprep.subr.bf16.mxu0 0
        %961 = vmatpush1.bf16.msra.mxu0 0
        %962 = vmatprep.subr.bf16.mxu0 0
        %963 = vmatpush1.bf16.msra.mxu0 0
        %964 = vmatprep.subr.bf16.mxu0 0
        %965 = vmatpush1.bf16.msra.mxu0 %v948
        %966 = vmatprep.subr.bf16.mxu0 0
        %967 = vmatpush2.bf16.msra.mxu0 0
        %968 = vmatprep.subr.bf16.mxu0 0
        %969 = vmatpush2.bf16.msra.mxu0 0
        %970 = vmatprep.subr.bf16.mxu0 0
        %971 = vmatpush2.bf16.msra.mxu0 0
        %972 = vmatprep.subr.bf16.mxu0 0
        %973 = vmatpush2.bf16.msra.mxu0 0
        %974 = vmatprep.subr.bf16.mxu0 0
        %975 = vmatpush2.bf16.msra.mxu0 0
        %976 = vmatprep.subr.bf16.mxu0 0
        %977 = vmatpush2.bf16.msra.mxu0 0
        %978 = vmatprep.subr.bf16.mxu0 0
        %979 = vmatpush2.bf16.msra.mxu0 0
        %980 = vmatprep.subr.bf16.mxu0 0
        %981 = vmatpush2.bf16.msra.mxu0 0
        %982 = vmatprep.mubr.bf16.mxu0 0
        %983 = vmatmul.mubr.bf16.gmra.mxu0 %v942
        %v984 = vpop.f32.mrf.mxu0
        %v985 = vadd.f32 %v939, %v984
        %v986 = vpop.f32.mrf.mxu0
        %v987 = vpop.f32.mrf.mxu0
        %v988 = vadd.f32 %v939, %v987
        %v989 = vpop.f32.mrf.mxu0
        %990 = vmatprep.mubr.bf16.mxu0 0
        %991 = vmatmul.mubr.bf16.gmra.mxu0 %v945
        %v992 = vpop.f32.mrf.mxu0
        %v993 = vadd.f32 %v939, %v992
        %v994 = vpop.f32.mrf.mxu0
        %v995 = vpop.f32.mrf.mxu0
        %v996 = vadd.f32 %v939, %v995
        %v997 = vpop.f32.mrf.mxu0
        %998 = vdwg.mxu0
        %v999 = vld [vmem:[%s7] sm:$0xf]
        %v1000 = vld [vmem:[%s8] sm:$0x1]
        %v1002 = vlaneseq
        %v1003 = vshrl.u32 %v1002, 7
        %v1004 = vsub.s32 0, %v1003
        %v1005 = vrot.slane %v1000, %v1004
        %v1008 = vsel %vm878, %v999, 0
        %1010 = vmatprep.subr.bf16.mxu0 0
        %1011 = vmatpush1.bf16.msra.mxu0 0
        %1012 = vmatprep.subr.bf16.mxu0 0
        %1013 = vmatpush1.bf16.msra.mxu0 0
        %1014 = vmatprep.subr.bf16.mxu0 0
        %1015 = vmatpush1.bf16.msra.mxu0 0
        %1016 = vmatprep.subr.bf16.mxu0 0
        %1017 = vmatpush1.bf16.msra.mxu0 0
        %1018 = vmatprep.subr.bf16.mxu0 0
        %1019 = vmatpush1.bf16.msra.mxu0 0
        %1020 = vmatprep.subr.bf16.mxu0 0
        %1021 = vmatpush1.bf16.msra.mxu0 0
        %1022 = vmatprep.subr.bf16.mxu0 0
        %1023 = vmatpush1.bf16.msra.mxu0 0
        %1024 = vmatprep.subr.bf16.mxu0 0
        %1025 = vmatpush1.bf16.msra.mxu0 %v1008
        %1026 = vmatprep.subr.bf16.mxu0 0
        %1027 = vmatpush2.bf16.msra.mxu0 0
        %1028 = vmatprep.subr.bf16.mxu0 0
        %1029 = vmatpush2.bf16.msra.mxu0 0
        %1030 = vmatprep.subr.bf16.mxu0 0
        %1031 = vmatpush2.bf16.msra.mxu0 0
        %1032 = vmatprep.subr.bf16.mxu0 0
        %1033 = vmatpush2.bf16.msra.mxu0 0
        %1034 = vmatprep.subr.bf16.mxu0 0
        %1035 = vmatpush2.bf16.msra.mxu0 0
        %1036 = vmatprep.subr.bf16.mxu0 0
        %1037 = vmatpush2.bf16.msra.mxu0 0
        %1038 = vmatprep.subr.bf16.mxu0 0
        %1039 = vmatpush2.bf16.msra.mxu0 0
        %1040 = vmatprep.subr.bf16.mxu0 0
        %1041 = vmatpush2.bf16.msra.mxu0 0
        %1042 = vmatprep.mubr.bf16.mxu0 0
        %1043 = vmatmul.mubr.bf16.gmra.mxu0 %v942
        %v1044 = vpop.f32.mrf.mxu0
        %v1045 = vadd.f32 %v1005, %v1044
        %v1046 = vpop.f32.mrf.mxu0
        %v1047 = vpop.f32.mrf.mxu0
        %v1048 = vadd.f32 %v1005, %v1047
        %v1049 = vpop.f32.mrf.mxu0
        %1050 = vmatprep.mubr.bf16.mxu0 0
        %1051 = vmatmul.mubr.bf16.gmra.mxu0 %v945
        %v1052 = vpop.f32.mrf.mxu0
        %v1053 = vadd.f32 %v1005, %v1052
        %v1054 = vpop.f32.mrf.mxu0
        %v1055 = vpop.f32.mrf.mxu0
        %v1056 = vadd.f32 %v1005, %v1055
        %v1057 = vpop.f32.mrf.mxu0
        %1058 = vdwg.mxu0
        %v1059 = vpack.c.bf16 %v917, %v917
        %v1060 = vpack.c.bf16 %v920, %v920
        %v1061 = vpack.c.bf16 %v925, %v925
        %v1062 = vpack.c.bf16 %v928, %v928
        %v1063 = vpack.c.bf16 %v985, %v985
        %v1064 = vpack.c.bf16 %v988, %v988
        %v1065 = vpack.c.bf16 %v993, %v993
        %v1066 = vpack.c.bf16 %v996, %v996
        %v1068 = vsel %vm871, %v1059, 0
        %v1071 = vsel %vm871, %v1063, 0
        %1073 = vmatprep.subr.bf16.mxu0 0
        %1074 = vmatpush1.bf16.xpose.msra.mxu0 0
        %1075 = vmatprep.subr.bf16.mxu0 0
        %1076 = vmatpush1.bf16.xpose.msra.mxu0 0
        %1077 = vmatprep.subr.bf16.mxu0 0
        %1078 = vmatpush1.bf16.xpose.msra.mxu0 0
        %1079 = vmatprep.subr.bf16.mxu0 0
        %1080 = vmatpush1.bf16.xpose.msra.mxu0 0
        %1081 = vmatprep.subr.bf16.mxu0 0
        %1082 = vmatpush1.bf16.xpose.msra.mxu0 0
        %1083 = vmatprep.subr.bf16.mxu0 0
        %1084 = vmatpush1.bf16.xpose.msra.mxu0 0
        %1085 = vmatprep.subr.bf16.mxu0 0
        %1086 = vmatpush1.bf16.xpose.msra.mxu0 0
        %1087 = vmatprep.subr.bf16.mxu0 0
        %1088 = vmatpush1.bf16.xpose.msra.mxu0 %v1071
        %1089 = vmatprep.subr.bf16.mxu0 0
        %1090 = vmatpush2.bf16.xpose.msra.mxu0 0
        %1091 = vmatprep.subr.bf16.mxu0 0
        %1092 = vmatpush2.bf16.xpose.msra.mxu0 0
        %1093 = vmatprep.subr.bf16.mxu0 0
        %1094 = vmatpush2.bf16.xpose.msra.mxu0 0
        %1095 = vmatprep.subr.bf16.mxu0 0
        %1096 = vmatpush2.bf16.xpose.msra.mxu0 0
        %1097 = vmatprep.subr.bf16.mxu0 0
        %1098 = vmatpush2.bf16.xpose.msra.mxu0 0
        %1099 = vmatprep.subr.bf16.mxu0 0
        %1100 = vmatpush2.bf16.xpose.msra.mxu0 0
        %1101 = vmatprep.subr.bf16.mxu0 0
        %1102 = vmatpush2.bf16.xpose.msra.mxu0 0
        %1103 = vmatprep.subr.bf16.mxu0 0
        %1104 = vmatpush2.bf16.xpose.msra.mxu0 0
        %1105 = vmatprep.mubr.bf16.mxu0 0
        %1106 = vmatmul.mubr.bf16.gmra.mxu0 %v1068
        %v1107 = vpop.f32.mrf.mxu0
        %v1108 = vadd.f32 0.0, %v1107
        %v1109 = vpop.f32.mrf.mxu0
        %v1110 = vpop.f32.mrf.mxu0
        %v1111 = vpop.f32.mrf.mxu0
        %1112 = vdwg.mxu0
        %v1114 = vsel %vm871, %v1060, 0
        %v1117 = vsel %vm871, %v1064, 0
        %1119 = vmatprep.subr.bf16.mxu0 0
        %1120 = vmatpush1.bf16.xpose.msra.mxu0 0
        %1121 = vmatprep.subr.bf16.mxu0 0
        %1122 = vmatpush1.bf16.xpose.msra.mxu0 0
        %1123 = vmatprep.subr.bf16.mxu0 0
        %1124 = vmatpush1.bf16.xpose.msra.mxu0 0
        %1125 = vmatprep.subr.bf16.mxu0 0
        %1126 = vmatpush1.bf16.xpose.msra.mxu0 0
        %1127 = vmatprep.subr.bf16.mxu0 0
        %1128 = vmatpush1.bf16.xpose.msra.mxu0 0
        %1129 = vmatprep.subr.bf16.mxu0 0
        %1130 = vmatpush1.bf16.xpose.msra.mxu0 0
        %1131 = vmatprep.subr.bf16.mxu0 0
        %1132 = vmatpush1.bf16.xpose.msra.mxu0 0
        %1133 = vmatprep.subr.bf16.mxu0 0
        %1134 = vmatpush1.bf16.xpose.msra.mxu0 %v1117
        %1135 = vmatprep.subr.bf16.mxu0 0
        %1136 = vmatpush2.bf16.xpose.msra.mxu0 0
        %1137 = vmatprep.subr.bf16.mxu0 0
        %1138 = vmatpush2.bf16.xpose.msra.mxu0 0
        %1139 = vmatprep.subr.bf16.mxu0 0
        %1140 = vmatpush2.bf16.xpose.msra.mxu0 0
        %1141 = vmatprep.subr.bf16.mxu0 0
        %1142 = vmatpush2.bf16.xpose.msra.mxu0 0
        %1143 = vmatprep.subr.bf16.mxu0 0
        %1144 = vmatpush2.bf16.xpose.msra.mxu0 0
        %1145 = vmatprep.subr.bf16.mxu0 0
        %1146 = vmatpush2.bf16.xpose.msra.mxu0 0
        %1147 = vmatprep.subr.bf16.mxu0 0
        %1148 = vmatpush2.bf16.xpose.msra.mxu0 0
        %1149 = vmatprep.subr.bf16.mxu0 0
        %1150 = vmatpush2.bf16.xpose.msra.mxu0 0
        %1151 = vmatprep.mubr.bf16.mxu0 0
        %1152 = vmatmul.mubr.bf16.gmra.mxu0 %v1114
        %v1153 = vpop.f32.mrf.mxu0
        %v1154 = vadd.f32 0.0, %v1153
        %v1155 = vpop.f32.mrf.mxu0
        %v1156 = vpop.f32.mrf.mxu0
        %v1157 = vpop.f32.mrf.mxu0
        %1158 = vdwg.mxu0
        %v1160 = vsel %vm871, %v1061, 0
        %v1163 = vsel %vm871, %v1065, 0
        %1165 = vmatprep.subr.bf16.mxu0 0
        %1166 = vmatpush1.bf16.xpose.msra.mxu0 0
        %1167 = vmatprep.subr.bf16.mxu0 0
        %1168 = vmatpush1.bf16.xpose.msra.mxu0 0
        %1169 = vmatprep.subr.bf16.mxu0 0
        %1170 = vmatpush1.bf16.xpose.msra.mxu0 0
        %1171 = vmatprep.subr.bf16.mxu0 0
        %1172 = vmatpush1.bf16.xpose.msra.mxu0 0
        %1173 = vmatprep.subr.bf16.mxu0 0
        %1174 = vmatpush1.bf16.xpose.msra.mxu0 0
        %1175 = vmatprep.subr.bf16.mxu0 0
        %1176 = vmatpush1.bf16.xpose.msra.mxu0 0
        %1177 = vmatprep.subr.bf16.mxu0 0
        %1178 = vmatpush1.bf16.xpose.msra.mxu0 0
        %1179 = vmatprep.subr.bf16.mxu0 0
        %1180 = vmatpush1.bf16.xpose.msra.mxu0 %v1163
        %1181 = vmatprep.subr.bf16.mxu0 0
        %1182 = vmatpush2.bf16.xpose.msra.mxu0 0
        %1183 = vmatprep.subr.bf16.mxu0 0
        %1184 = vmatpush2.bf16.xpose.msra.mxu0 0
        %1185 = vmatprep.subr.bf16.mxu0 0
        %1186 = vmatpush2.bf16.xpose.msra.mxu0 0
        %1187 = vmatprep.subr.bf16.mxu0 0
        %1188 = vmatpush2.bf16.xpose.msra.mxu0 0
        %1189 = vmatprep.subr.bf16.mxu0 0
        %1190 = vmatpush2.bf16.xpose.msra.mxu0 0
        %1191 = vmatprep.subr.bf16.mxu0 0
        %1192 = vmatpush2.bf16.xpose.msra.mxu0 0
        %1193 = vmatprep.subr.bf16.mxu0 0
        %1194 = vmatpush2.bf16.xpose.msra.mxu0 0
        %1195 = vmatprep.subr.bf16.mxu0 0
        %1196 = vmatpush2.bf16.xpose.msra.mxu0 0
        %1197 = vmatprep.mubr.bf16.mxu0 0
        %1198 = vmatmul.mubr.bf16.gmra.mxu0 %v1160
        %v1199 = vpop.f32.mrf.mxu0
        %v1200 = vadd.f32 0.0, %v1199
        %v1201 = vpop.f32.mrf.mxu0
        %v1202 = vpop.f32.mrf.mxu0
        %v1203 = vpop.f32.mrf.mxu0
        %1204 = vdwg.mxu0
        %v1206 = vsel %vm871, %v1062, 0
        %v1209 = vsel %vm871, %v1066, 0
        %1211 = vmatprep.subr.bf16.mxu0 0
        %1212 = vmatpush1.bf16.xpose.msra.mxu0 0
        %1213 = vmatprep.subr.bf16.mxu0 0
        %1214 = vmatpush1.bf16.xpose.msra.mxu0 0
        %1215 = vmatprep.subr.bf16.mxu0 0
        %1216 = vmatpush1.bf16.xpose.msra.mxu0 0
        %1217 = vmatprep.subr.bf16.mxu0 0
        %1218 = vmatpush1.bf16.xpose.msra.mxu0 0
        %1219 = vmatprep.subr.bf16.mxu0 0
        %1220 = vmatpush1.bf16.xpose.msra.mxu0 0
        %1221 = vmatprep.subr.bf16.mxu0 0
        %1222 = vmatpush1.bf16.xpose.msra.mxu0 0
        %1223 = vmatprep.subr.bf16.mxu0 0
        %1224 = vmatpush1.bf16.xpose.msra.mxu0 0
        %1225 = vmatprep.subr.bf16.mxu0 0
        %1226 = vmatpush1.bf16.xpose.msra.mxu0 %v1209
        %1227 = vmatprep.subr.bf16.mxu0 0
        %1228 = vmatpush2.bf16.xpose.msra.mxu0 0
        %1229 = vmatprep.subr.bf16.mxu0 0
        %1230 = vmatpush2.bf16.xpose.msra.mxu0 0
        %1231 = vmatprep.subr.bf16.mxu0 0
        %1232 = vmatpush2.bf16.xpose.msra.mxu0 0
        %1233 = vmatprep.subr.bf16.mxu0 0
        %1234 = vmatpush2.bf16.xpose.msra.mxu0 0
        %1235 = vmatprep.subr.bf16.mxu0 0
        %1236 = vmatpush2.bf16.xpose.msra.mxu0 0
        %1237 = vmatprep.subr.bf16.mxu0 0
        %1238 = vmatpush2.bf16.xpose.msra.mxu0 0
        %1239 = vmatprep.subr.bf16.mxu0 0
        %1240 = vmatpush2.bf16.xpose.msra.mxu0 0
        %1241 = vmatprep.subr.bf16.mxu0 0
        %1242 = vmatpush2.bf16.xpose.msra.mxu0 0
        %1243 = vmatprep.mubr.bf16.mxu0 0
        %1244 = vmatmul.mubr.bf16.gmra.mxu0 %v1206
        %v1245 = vpop.f32.mrf.mxu0
        %v1246 = vadd.f32 0.0, %v1245
        %v1247 = vpop.f32.mrf.mxu0
        %v1248 = vpop.f32.mrf.mxu0
        %v1249 = vpop.f32.mrf.mxu0
        %1250 = vdwg.mxu0
        %v1251 = vmul.f32 %v1108, 0.35355338
        %v1252 = vmul.f32 %v1154, 0.35355338
        %v1253 = vmul.f32 %v1200, 0.35355338
        %v1254 = vmul.f32 %v1246, 0.35355338
        %v1255 = vsel %vm871, %v1251, -inf
        %1256 = vmax.xlane.f32.xlu0 %v1255
        %v1257 = vpop.xlane.xlu0 %1256
        %v1258 = vsel %vm871, %v1252, -inf
        %1259 = vmax.xlane.f32.xlu0 %v1258
        %v1260 = vpop.xlane.xlu0 %1259
        %v1261 = vsel %vm871, %v1253, -inf
        %1262 = vmax.xlane.f32.xlu0 %v1261
        %v1263 = vpop.xlane.xlu0 %1262
        %v1264 = vsel %vm871, %v1254, -inf
        %1265 = vmax.xlane.f32.xlu0 %v1264
        %v1266 = vpop.xlane.xlu0 %1265
        %v1267 = vsub.f32 %v1251, %v1257
        %v1268 = vsub.f32 %v1252, %v1260
        %v1269 = vsub.f32 %v1253, %v1263
        %v1270 = vsub.f32 %v1254, %v1266
        %v1271 = vmul.f32 %v1267, 1.442695
        %v1272 = vpow.pop %v1271
        %v1273 = vmul.f32 %v1268, 1.442695
        %v1274 = vpow.pop %v1273
        %v1275 = vmul.f32 %v1269, 1.442695
        %v1276 = vpow.pop %v1275
        %v1277 = vmul.f32 %v1270, 1.442695
        %v1278 = vpow.pop %v1277
        %v1279 = vsel %vm871, %v1272, 0.0
        %1280 = vadd.xlane.f32.xlu0 %v1279
        %v1281 = vpop.xlane.xlu0 %1280
        %v1282 = vsel %vm871, %v1274, 0.0
        %1283 = vadd.xlane.f32.xlu0 %v1282
        %v1284 = vpop.xlane.xlu0 %1283
        %v1285 = vsel %vm871, %v1276, 0.0
        %1286 = vadd.xlane.f32.xlu0 %v1285
        %v1287 = vpop.xlane.xlu0 %1286
        %v1288 = vsel %vm871, %v1278, 0.0
        %1289 = vadd.xlane.f32.xlu0 %v1288
        %v1290 = vpop.xlane.xlu0 %1289
        %v1291 = vrcp.pop %v1281
        %v1292 = vrcp.pop %v1284
        %v1293 = vrcp.pop %v1287
        %v1294 = vrcp.pop %v1290
        %v1295 = vmul.f32 %v1272, %v1291
        %v1296 = vmul.f32 %v1274, %v1292
        %v1297 = vmul.f32 %v1276, %v1293
        %v1298 = vmul.f32 %v1278, %v1294
        %v1299 = vpack.c.bf16 %v1295, %v1295
        %v1300 = vpack.c.bf16 %v1296, %v1296
        %v1301 = vpack.c.bf16 %v1297, %v1297
        %v1302 = vpack.c.bf16 %v1298, %v1298
        %v1303 = vpack.c.bf16 %v1045, %v1045
        %v1304 = vpack.c.bf16 %v1048, %v1048
        %v1305 = vpack.c.bf16 %v1053, %v1053
        %v1306 = vpack.c.bf16 %v1056, %v1056
        %v1308 = vsel %vm871, %v1299, 0
        %v1311 = vsel %vm878, %v1303, 0
        %1313 = vmatprep.subr.bf16.mxu0 0
        %1314 = vmatpush1.bf16.msra.mxu0 0
        %1315 = vmatprep.subr.bf16.mxu0 0
        %1316 = vmatpush1.bf16.msra.mxu0 0
        %1317 = vmatprep.subr.bf16.mxu0 0
        %1318 = vmatpush1.bf16.msra.mxu0 0
        %1319 = vmatprep.subr.bf16.mxu0 0
        %1320 = vmatpush1.bf16.msra.mxu0 0
        %1321 = vmatprep.subr.bf16.mxu0 0
        %1322 = vmatpush1.bf16.msra.mxu0 0
        %1323 = vmatprep.subr.bf16.mxu0 0
        %1324 = vmatpush1.bf16.msra.mxu0 0
        %1325 = vmatprep.subr.bf16.mxu0 0
        %1326 = vmatpush1.bf16.msra.mxu0 0
        %1327 = vmatprep.subr.bf16.mxu0 0
        %1328 = vmatpush1.bf16.msra.mxu0 %v1311
        %1329 = vmatprep.subr.bf16.mxu0 0
        %1330 = vmatpush2.bf16.msra.mxu0 0
        %1331 = vmatprep.subr.bf16.mxu0 0
        %1332 = vmatpush2.bf16.msra.mxu0 0
        %1333 = vmatprep.subr.bf16.mxu0 0
        %1334 = vmatpush2.bf16.msra.mxu0 0
        %1335 = vmatprep.subr.bf16.mxu0 0
        %1336 = vmatpush2.bf16.msra.mxu0 0
        %1337 = vmatprep.subr.bf16.mxu0 0
        %1338 = vmatpush2.bf16.msra.mxu0 0
        %1339 = vmatprep.subr.bf16.mxu0 0
        %1340 = vmatpush2.bf16.msra.mxu0 0
        %1341 = vmatprep.subr.bf16.mxu0 0
        %1342 = vmatpush2.bf16.msra.mxu0 0
        %1343 = vmatprep.subr.bf16.mxu0 0
        %1344 = vmatpush2.bf16.msra.mxu0 0
        %1345 = vmatprep.mubr.bf16.mxu0 0
        %1346 = vmatmul.mubr.bf16.gmra.mxu0 %v1308
        %v1347 = vpop.f32.mrf.mxu0
        %v1348 = vadd.f32 0.0, %v1347
        %v1349 = vpop.f32.mrf.mxu0
        %v1350 = vpop.f32.mrf.mxu0
        %v1351 = vpop.f32.mrf.mxu0
        %1352 = vdwg.mxu0
        %v1354 = vsel %vm871, %v1300, 0
        %v1357 = vsel %vm878, %v1304, 0
        %1359 = vmatprep.subr.bf16.mxu0 0
        %1360 = vmatpush1.bf16.msra.mxu0 0
        %1361 = vmatprep.subr.bf16.mxu0 0
        %1362 = vmatpush1.bf16.msra.mxu0 0
        %1363 = vmatprep.subr.bf16.mxu0 0
        %1364 = vmatpush1.bf16.msra.mxu0 0
        %1365 = vmatprep.subr.bf16.mxu0 0
        %1366 = vmatpush1.bf16.msra.mxu0 0
        %1367 = vmatprep.subr.bf16.mxu0 0
        %1368 = vmatpush1.bf16.msra.mxu0 0
        %1369 = vmatprep.subr.bf16.mxu0 0
        %1370 = vmatpush1.bf16.msra.mxu0 0
        %1371 = vmatprep.subr.bf16.mxu0 0
        %1372 = vmatpush1.bf16.msra.mxu0 0
        %1373 = vmatprep.subr.bf16.mxu0 0
        %1374 = vmatpush1.bf16.msra.mxu0 %v1357
        %1375 = vmatprep.subr.bf16.mxu0 0
        %1376 = vmatpush2.bf16.msra.mxu0 0
        %1377 = vmatprep.subr.bf16.mxu0 0
        %1378 = vmatpush2.bf16.msra.mxu0 0
        %1379 = vmatprep.subr.bf16.mxu0 0
        %1380 = vmatpush2.bf16.msra.mxu0 0
        %1381 = vmatprep.subr.bf16.mxu0 0
        %1382 = vmatpush2.bf16.msra.mxu0 0
        %1383 = vmatprep.subr.bf16.mxu0 0
        %1384 = vmatpush2.bf16.msra.mxu0 0
        %1385 = vmatprep.subr.bf16.mxu0 0
        %1386 = vmatpush2.bf16.msra.mxu0 0
        %1387 = vmatprep.subr.bf16.mxu0 0
        %1388 = vmatpush2.bf16.msra.mxu0 0
        %1389 = vmatprep.subr.bf16.mxu0 0
        %1390 = vmatpush2.bf16.msra.mxu0 0
        %1391 = vmatprep.mubr.bf16.mxu0 0
        %1392 = vmatmul.mubr.bf16.gmra.mxu0 %v1354
        %v1393 = vpop.f32.mrf.mxu0
        %v1394 = vadd.f32 0.0, %v1393
        %v1395 = vpop.f32.mrf.mxu0
        %v1396 = vpop.f32.mrf.mxu0
        %v1397 = vpop.f32.mrf.mxu0
        %1398 = vdwg.mxu0
        %v1400 = vsel %vm871, %v1301, 0
        %v1403 = vsel %vm878, %v1305, 0
        %1405 = vmatprep.subr.bf16.mxu0 0
        %1406 = vmatpush1.bf16.msra.mxu0 0
        %1407 = vmatprep.subr.bf16.mxu0 0
        %1408 = vmatpush1.bf16.msra.mxu0 0
        %1409 = vmatprep.subr.bf16.mxu0 0
        %1410 = vmatpush1.bf16.msra.mxu0 0
        %1411 = vmatprep.subr.bf16.mxu0 0
        %1412 = vmatpush1.bf16.msra.mxu0 0
        %1413 = vmatprep.subr.bf16.mxu0 0
        %1414 = vmatpush1.bf16.msra.mxu0 0
        %1415 = vmatprep.subr.bf16.mxu0 0
        %1416 = vmatpush1.bf16.msra.mxu0 0
        %1417 = vmatprep.subr.bf16.mxu0 0
        %1418 = vmatpush1.bf16.msra.mxu0 0
        %1419 = vmatprep.subr.bf16.mxu0 0
        %1420 = vmatpush1.bf16.msra.mxu0 %v1403
        %1421 = vmatprep.subr.bf16.mxu0 0
        %1422 = vmatpush2.bf16.msra.mxu0 0
        %1423 = vmatprep.subr.bf16.mxu0 0
        %1424 = vmatpush2.bf16.msra.mxu0 0
        %1425 = vmatprep.subr.bf16.mxu0 0
        %1426 = vmatpush2.bf16.msra.mxu0 0
        %1427 = vmatprep.subr.bf16.mxu0 0
        %1428 = vmatpush2.bf16.msra.mxu0 0
        %1429 = vmatprep.subr.bf16.mxu0 0
        %1430 = vmatpush2.bf16.msra.mxu0 0
        %1431 = vmatprep.subr.bf16.mxu0 0
        %1432 = vmatpush2.bf16.msra.mxu0 0
        %1433 = vmatprep.subr.bf16.mxu0 0
        %1434 = vmatpush2.bf16.msra.mxu0 0
        %1435 = vmatprep.subr.bf16.mxu0 0
        %1436 = vmatpush2.bf16.msra.mxu0 0
        %1437 = vmatprep.mubr.bf16.mxu0 0
        %1438 = vmatmul.mubr.bf16.gmra.mxu0 %v1400
        %v1439 = vpop.f32.mrf.mxu0
        %v1440 = vadd.f32 0.0, %v1439
        %v1441 = vpop.f32.mrf.mxu0
        %v1442 = vpop.f32.mrf.mxu0
        %v1443 = vpop.f32.mrf.mxu0
        %1444 = vdwg.mxu0
        %v1446 = vsel %vm871, %v1302, 0
        %v1449 = vsel %vm878, %v1306, 0
        %1451 = vmatprep.subr.bf16.mxu0 0
        %1452 = vmatpush1.bf16.msra.mxu0 0
        %1453 = vmatprep.subr.bf16.mxu0 0
        %1454 = vmatpush1.bf16.msra.mxu0 0
        %1455 = vmatprep.subr.bf16.mxu0 0
        %1456 = vmatpush1.bf16.msra.mxu0 0
        %1457 = vmatprep.subr.bf16.mxu0 0
        %1458 = vmatpush1.bf16.msra.mxu0 0
        %1459 = vmatprep.subr.bf16.mxu0 0
        %1460 = vmatpush1.bf16.msra.mxu0 0
        %1461 = vmatprep.subr.bf16.mxu0 0
        %1462 = vmatpush1.bf16.msra.mxu0 0
        %1463 = vmatprep.subr.bf16.mxu0 0
        %1464 = vmatpush1.bf16.msra.mxu0 0
        %1465 = vmatprep.subr.bf16.mxu0 0
        %1466 = vmatpush1.bf16.msra.mxu0 %v1449
        %1467 = vmatprep.subr.bf16.mxu0 0
        %1468 = vmatpush2.bf16.msra.mxu0 0
        %1469 = vmatprep.subr.bf16.mxu0 0
        %1470 = vmatpush2.bf16.msra.mxu0 0
        %1471 = vmatprep.subr.bf16.mxu0 0
        %1472 = vmatpush2.bf16.msra.mxu0 0
        %1473 = vmatprep.subr.bf16.mxu0 0
        %1474 = vmatpush2.bf16.msra.mxu0 0
        %1475 = vmatprep.subr.bf16.mxu0 0
        %1476 = vmatpush2.bf16.msra.mxu0 0
        %1477 = vmatprep.subr.bf16.mxu0 0
        %1478 = vmatpush2.bf16.msra.mxu0 0
        %1479 = vmatprep.subr.bf16.mxu0 0
        %1480 = vmatpush2.bf16.msra.mxu0 0
        %1481 = vmatprep.subr.bf16.mxu0 0
        %1482 = vmatpush2.bf16.msra.mxu0 0
        %1483 = vmatprep.mubr.bf16.mxu0 0
        %1484 = vmatmul.mubr.bf16.gmra.mxu0 %v1446
        %v1485 = vpop.f32.mrf.mxu0
        %v1486 = vadd.f32 0.0, %v1485
        %v1487 = vpop.f32.mrf.mxu0
        %v1488 = vpop.f32.mrf.mxu0
        %v1489 = vpop.f32.mrf.mxu0
        %1490 = vdwg.mxu0
        %v1491 = vpack.c.bf16 %v1348, %v1348
        %v1492 = vld [vmem:[#allocation7] sm:$0xf]
        %v1493 = vpack.c.bf16 %v1394, %v1394
        %s1494 = scalar_lea.vmem [#allocation7], 4
        %v1495 = vld [vmem:[%s1494] sm:$0xf]
        %v1497 = vsel %vm871, %v1493, 0
        %v1500 = vsel %vm878, %v1495, 0
        %1502 = vmatprep.subr.bf16.mxu0 0
        %1503 = vmatpush1.bf16.msra.mxu0 0
        %1504 = vmatprep.subr.bf16.mxu0 0
        %1505 = vmatpush1.bf16.msra.mxu0 0
        %1506 = vmatprep.subr.bf16.mxu0 0
        %1507 = vmatpush1.bf16.msra.mxu0 0
        %1508 = vmatprep.subr.bf16.mxu0 0
        %1509 = vmatpush1.bf16.msra.mxu0 0
        %1510 = vmatprep.subr.bf16.mxu0 0
        %1511 = vmatpush1.bf16.msra.mxu0 0
        %1512 = vmatprep.subr.bf16.mxu0 0
        %1513 = vmatpush1.bf16.msra.mxu0 0
        %1514 = vmatprep.subr.bf16.mxu0 0
        %1515 = vmatpush1.bf16.msra.mxu0 0
        %1516 = vmatprep.subr.bf16.mxu0 0
        %1517 = vmatpush1.bf16.msra.mxu0 %v1500
        %1518 = vmatprep.subr.bf16.mxu0 0
        %1519 = vmatpush2.bf16.msra.mxu0 0
        %1520 = vmatprep.subr.bf16.mxu0 0
        %1521 = vmatpush2.bf16.msra.mxu0 0
        %1522 = vmatprep.subr.bf16.mxu0 0
        %1523 = vmatpush2.bf16.msra.mxu0 0
        %1524 = vmatprep.subr.bf16.mxu0 0
        %1525 = vmatpush2.bf16.msra.mxu0 0
        %1526 = vmatprep.subr.bf16.mxu0 0
        %1527 = vmatpush2.bf16.msra.mxu0 0
        %1528 = vmatprep.subr.bf16.mxu0 0
        %1529 = vmatpush2.bf16.msra.mxu0 0
        %1530 = vmatprep.subr.bf16.mxu0 0
        %1531 = vmatpush2.bf16.msra.mxu0 0
        %1532 = vmatprep.subr.bf16.mxu0 0
        %1533 = vmatpush2.bf16.msra.mxu0 0
        %1534 = vmatprep.mubr.bf16.mxu0 0
        %1535 = vmatmul.mubr.bf16.gmra.mxu0 %v1497
        %v1536 = vpop.f32.mrf.mxu0
        %v1537 = vadd.f32 0.0, %v1536
        %v1538 = vpop.f32.mrf.mxu0
        %v1539 = vpop.f32.mrf.mxu0
        %v1540 = vpop.f32.mrf.mxu0
        %1541 = vdwg.mxu0
        %v1543 = vsel %vm871, %v1491, 0
        %v1546 = vsel %vm878, %v1492, 0
        %1548 = vmatprep.subr.bf16.mxu0 0
        %1549 = vmatpush1.bf16.msra.mxu0 0
        %1550 = vmatprep.subr.bf16.mxu0 0
        %1551 = vmatpush1.bf16.msra.mxu0 0
        %1552 = vmatprep.subr.bf16.mxu0 0
        %1553 = vmatpush1.bf16.msra.mxu0 0
        %1554 = vmatprep.subr.bf16.mxu0 0
        %1555 = vmatpush1.bf16.msra.mxu0 0
        %1556 = vmatprep.subr.bf16.mxu0 0
        %1557 = vmatpush1.bf16.msra.mxu0 0
        %1558 = vmatprep.subr.bf16.mxu0 0
        %1559 = vmatpush1.bf16.msra.mxu0 0
        %1560 = vmatprep.subr.bf16.mxu0 0
        %1561 = vmatpush1.bf16.msra.mxu0 0
        %1562 = vmatprep.subr.bf16.mxu0 0
        %1563 = vmatpush1.bf16.msra.mxu0 %v1546
        %1564 = vmatprep.subr.bf16.mxu0 0
        %1565 = vmatpush2.bf16.msra.mxu0 0
        %1566 = vmatprep.subr.bf16.mxu0 0
        %1567 = vmatpush2.bf16.msra.mxu0 0
        %1568 = vmatprep.subr.bf16.mxu0 0
        %1569 = vmatpush2.bf16.msra.mxu0 0
        %1570 = vmatprep.subr.bf16.mxu0 0
        %1571 = vmatpush2.bf16.msra.mxu0 0
        %1572 = vmatprep.subr.bf16.mxu0 0
        %1573 = vmatpush2.bf16.msra.mxu0 0
        %1574 = vmatprep.subr.bf16.mxu0 0
        %1575 = vmatpush2.bf16.msra.mxu0 0
        %1576 = vmatprep.subr.bf16.mxu0 0
        %1577 = vmatpush2.bf16.msra.mxu0 0
        %1578 = vmatprep.subr.bf16.mxu0 0
        %1579 = vmatpush2.bf16.msra.mxu0 0
        %1580 = vmatprep.mubr.bf16.mxu0 0
        %1581 = vmatmul.mubr.bf16.gmra.mxu0 %v1543
        %v1582 = vpop.f32.mrf.mxu0
        %v1583 = vadd.f32 %v1537, %v1582
        %v1584 = vpop.f32.mrf.mxu0
        %v1585 = vpop.f32.mrf.mxu0
        %v1586 = vpop.f32.mrf.mxu0
        %1587 = vdwg.mxu0
        %v1588 = vpack.c.bf16 %v1440, %v1440
        %s1589 = scalar_lea.vmem [#allocation7], 8
        %v1590 = vld [vmem:[%s1589] sm:$0xf]
        %v1592 = vsel %vm871, %v1588, 0
        %v1595 = vsel %vm878, %v1590, 0
        %1597 = vmatprep.subr.bf16.mxu0 0
        %1598 = vmatpush1.bf16.msra.mxu0 0
        %1599 = vmatprep.subr.bf16.mxu0 0
        %1600 = vmatpush1.bf16.msra.mxu0 0
        %1601 = vmatprep.subr.bf16.mxu0 0
        %1602 = vmatpush1.bf16.msra.mxu0 0
        %1603 = vmatprep.subr.bf16.mxu0 0
        %1604 = vmatpush1.bf16.msra.mxu0 0
        %1605 = vmatprep.subr.bf16.mxu0 0
        %1606 = vmatpush1.bf16.msra.mxu0 0
        %1607 = vmatprep.subr.bf16.mxu0 0
        %1608 = vmatpush1.bf16.msra.mxu0 0
        %1609 = vmatprep.subr.bf16.mxu0 0
        %1610 = vmatpush1.bf16.msra.mxu0 0
        %1611 = vmatprep.subr.bf16.mxu0 0
        %1612 = vmatpush1.bf16.msra.mxu0 %v1595
        %1613 = vmatprep.subr.bf16.mxu0 0
        %1614 = vmatpush2.bf16.msra.mxu0 0
        %1615 = vmatprep.subr.bf16.mxu0 0
        %1616 = vmatpush2.bf16.msra.mxu0 0
        %1617 = vmatprep.subr.bf16.mxu0 0
        %1618 = vmatpush2.bf16.msra.mxu0 0
        %1619 = vmatprep.subr.bf16.mxu0 0
        %1620 = vmatpush2.bf16.msra.mxu0 0
        %1621 = vmatprep.subr.bf16.mxu0 0
        %1622 = vmatpush2.bf16.msra.mxu0 0
        %1623 = vmatprep.subr.bf16.mxu0 0
        %1624 = vmatpush2.bf16.msra.mxu0 0
        %1625 = vmatprep.subr.bf16.mxu0 0
        %1626 = vmatpush2.bf16.msra.mxu0 0
        %1627 = vmatprep.subr.bf16.mxu0 0
        %1628 = vmatpush2.bf16.msra.mxu0 0
        %1629 = vmatprep.mubr.bf16.mxu0 0
        %1630 = vmatmul.mubr.bf16.gmra.mxu0 %v1592
        %v1631 = vpop.f32.mrf.mxu0
        %v1632 = vadd.f32 0.0, %v1631
        %v1633 = vpop.f32.mrf.mxu0
        %v1634 = vpop.f32.mrf.mxu0
        %v1635 = vpop.f32.mrf.mxu0
        %1636 = vdwg.mxu0
        %v1637 = vadd.f32 %v1583, %v1632
        %v1638 = vpack.c.bf16 %v1486, %v1486
        %s1639 = scalar_lea.vmem [#allocation7], 12
        %v1640 = vld [vmem:[%s1639] sm:$0xf]
        %v1642 = vsel %vm871, %v1638, 0
        %v1645 = vsel %vm878, %v1640, 0
        %1647 = vmatprep.subr.bf16.mxu0 0
        %1648 = vmatpush1.bf16.msra.mxu0 0
        %1649 = vmatprep.subr.bf16.mxu0 0
        %1650 = vmatpush1.bf16.msra.mxu0 0
        %1651 = vmatprep.subr.bf16.mxu0 0
        %1652 = vmatpush1.bf16.msra.mxu0 0
        %1653 = vmatprep.subr.bf16.mxu0 0
        %1654 = vmatpush1.bf16.msra.mxu0 0
        %1655 = vmatprep.subr.bf16.mxu0 0
        %1656 = vmatpush1.bf16.msra.mxu0 0
        %1657 = vmatprep.subr.bf16.mxu0 0
        %1658 = vmatpush1.bf16.msra.mxu0 0
        %1659 = vmatprep.subr.bf16.mxu0 0
        %1660 = vmatpush1.bf16.msra.mxu0 0
        %1661 = vmatprep.subr.bf16.mxu0 0
        %1662 = vmatpush1.bf16.msra.mxu0 %v1645
        %1663 = vmatprep.subr.bf16.mxu0 0
        %1664 = vmatpush2.bf16.msra.mxu0 0
        %1665 = vmatprep.subr.bf16.mxu0 0
        %1666 = vmatpush2.bf16.msra.mxu0 0
        %1667 = vmatprep.subr.bf16.mxu0 0
        %1668 = vmatpush2.bf16.msra.mxu0 0
        %1669 = vmatprep.subr.bf16.mxu0 0
        %1670 = vmatpush2.bf16.msra.mxu0 0
        %1671 = vmatprep.subr.bf16.mxu0 0
        %1672 = vmatpush2.bf16.msra.mxu0 0
        %1673 = vmatprep.subr.bf16.mxu0 0
        %1674 = vmatpush2.bf16.msra.mxu0 0
        %1675 = vmatprep.subr.bf16.mxu0 0
        %1676 = vmatpush2.bf16.msra.mxu0 0
        %1677 = vmatprep.subr.bf16.mxu0 0
        %1678 = vmatpush2.bf16.msra.mxu0 0
        %1679 = vmatprep.mubr.bf16.mxu0 0
        %1680 = vmatmul.mubr.bf16.gmra.mxu0 %v1642
        %v1681 = vpop.f32.mrf.mxu0
        %v1682 = vadd.f32 0.0, %v1681
        %v1683 = vpop.f32.mrf.mxu0
        %v1684 = vpop.f32.mrf.mxu0
        %v1685 = vpop.f32.mrf.mxu0
        %1686 = vdwg.mxu0
        %v1687 = vadd.f32 %v1637, %v1682
        %v1688 = vld [vmem:[#allocation8] sm:$0x1]
        %v1690 = vlaneseq
        %v1691 = vshrl.u32 %v1690, 7
        %v1692 = vsub.s32 0, %v1691
        %v1693 = vrot.slane %v1688, %v1692
        %v1695 = vadd.f32 %v1687, %v1693
        %v1696 = vadd.f32 %v1695, %v852
        %v1697 = vld [vmem:[#allocation10] sm:$0x1]
        %v1698 = vld [vmem:[#allocation11] sm:$0x1]
        %vm1699 = vcmask 261120
        %v1700 = vsel %vm1699, %v1696, 0.0
        %1701 = vadd.xlane.f32.xlu0 %v1700
        %v1702 = vpop.xlane.xlu0 %1701
        %v1703 = vrcp.pop 32.0
        %v1704 = vmul.f32 %v1702, %v1703
        %v1705 = vsub.f32 %v1696, %v1704
        %v1706 = vmul.f32 %v1705, %v1705
        %v1707 = vsel %vm1699, %v1706, 0.0
        %1708 = vadd.xlane.f32.xlu0 %v1707
        %v1709 = vpop.xlane.xlu0 %1708
        %v1710 = vmul.f32 %v1709, %v1703
        %v1711 = vadd.f32 %v1710, 1e-05
        %v1712 = vrsqrt.pop %v1711
        %v1713 = vmul.f32 %v1705, %v1712
        %v1715 = vlaneseq
        %v1716 = vshrl.u32 %v1715, 7
        %v1717 = vsub.s32 0, %v1716
        %v1718 = vrot.slane %v1697, %v1717
        %v1720 = vmul.f32 %v1713, %v1718
        %v1722 = vlaneseq
        %v1723 = vshrl.u32 %v1722, 7
        %v1724 = vsub.s32 0, %v1723
        %v1725 = vrot.slane %v1698, %v1724
        %v1727 = vadd.f32 %v1720, %v1725
        %v1728 = vpack.c.bf16 %v1727, %v1727
        %v1729 = vld [vmem:[#allocation13] sm:$0xf]
        %v1730 = vld [vmem:[#allocation13 + $0x4] sm:$0xf]
        %v1731 = vld [vmem:[#allocation13 + $0x8] sm:$0xf]
        %v1732 = vld [vmem:[#allocation13 + $0xc] sm:$0xf]
        %v1733 = vld [vmem:[#allocation14] sm:$0x1]
        %v1735 = vlaneseq
        %v1736 = vshrl.u32 %v1735, 7
        %v1737 = vsub.s32 0, %v1736
        %v1738 = vrot.slane %v1733, %v1737
        %v1744 = vunpack.c.l.b16 %v1729
        %v1745 = vunpack.c.l.b16 %v1730
        %v1746 = vunpack.c.l.b16 %v1731
        %v1747 = vunpack.c.l.b16 %v1732
        %v1748 = vpack.c.b16 %v1745, %v1744
        %v1749 = vpack.c.b16 %v1747, %v1746
        %v1753 = vsel %vm1699, %v1728, 0
        %1755 = vmatprep.subr.bf16.mxu0 0
        %1756 = vmatpush1.bf16.msra.mxu0 0
        %1757 = vmatprep.subr.bf16.mxu0 0
        %1758 = vmatpush1.bf16.msra.mxu0 0
        %1759 = vmatprep.subr.bf16.mxu0 0
        %1760 = vmatpush1.bf16.msra.mxu0 0
        %1761 = vmatprep.subr.bf16.mxu0 0
        %1762 = vmatpush1.bf16.msra.mxu0 0
        %1763 = vmatprep.subr.bf16.mxu0 0
        %1764 = vmatpush1.bf16.msra.mxu0 0
        %1765 = vmatprep.subr.bf16.mxu0 0
        %1766 = vmatpush1.bf16.msra.mxu0 0
        %1767 = vmatprep.subr.bf16.mxu0 0
        %1768 = vmatpush1.bf16.msra.mxu0 %v1749
        %1769 = vmatprep.subr.bf16.mxu0 0
        %1770 = vmatpush1.bf16.msra.mxu0 %v1748
        %1771 = vmatprep.subr.bf16.mxu0 0
        %1772 = vmatpush2.bf16.msra.mxu0 0
        %1773 = vmatprep.subr.bf16.mxu0 0
        %1774 = vmatpush2.bf16.msra.mxu0 0
        %1775 = vmatprep.subr.bf16.mxu0 0
        %1776 = vmatpush2.bf16.msra.mxu0 0
        %1777 = vmatprep.subr.bf16.mxu0 0
        %1778 = vmatpush2.bf16.msra.mxu0 0
        %1779 = vmatprep.subr.bf16.mxu0 0
        %1780 = vmatpush2.bf16.msra.mxu0 0
        %1781 = vmatprep.subr.bf16.mxu0 0
        %1782 = vmatpush2.bf16.msra.mxu0 0
        %1783 = vmatprep.subr.bf16.mxu0 0
        %1784 = vmatpush2.bf16.msra.mxu0 0
        %1785 = vmatprep.subr.bf16.mxu0 0
        %1786 = vmatpush2.bf16.msra.mxu0 0
        %1787 = vmatprep.mubr.bf16.mxu0 0
        %1788 = vmatmul.mubr.bf16.gmra.mxu0 %v1753
        %v1789 = vpop.f32.mrf.mxu0
        %v1790 = vadd.f32 %v1738, %v1789
        %v1791 = vpop.f32.mrf.mxu0
        %v1792 = vpop.f32.mrf.mxu0
        %v1793 = vpop.f32.mrf.mxu0
        %1794 = vdwg.mxu0
        %v1795 = vmax.f32 %v1790, 0.0
        %v1796 = vpack.c.bf16 %v1795, %v1795
        %v1797 = vld [vmem:[%s15] sm:$0xf]
        %v1798 = vld [vmem:[%s15 + $0x4] sm:$0xf]
        %v1799 = vld [vmem:[%s15 + $0x8] sm:$0xf]
        %v1800 = vld [vmem:[%s15 + $0xc] sm:$0xf]
        %v1801 = vld [vmem:[%s15 + $0x10] sm:$0xf]
        %v1802 = vld [vmem:[%s15 + $0x14] sm:$0xf]
        %v1803 = vld [vmem:[%s15 + $0x18] sm:$0xf]
        %v1804 = vld [vmem:[%s15 + $0x1c] sm:$0xf]
        %v1805 = vld [vmem:[#allocation16] sm:$0x1]
        %v1807 = vlaneseq
        %v1808 = vshrl.u32 %v1807, 7
        %v1809 = vsub.s32 0, %v1808
        %v1810 = vrot.slane %v1805, %v1809
        %v1820 = vunpack.c.l.b16 %v1797
        %v1821 = vunpack.c.l.b16 %v1798
        %v1822 = vunpack.c.l.b16 %v1799
        %v1823 = vunpack.c.l.b16 %v1800
        %v1824 = vunpack.c.l.b16 %v1801
        %v1825 = vunpack.c.l.b16 %v1802
        %v1826 = vunpack.c.l.b16 %v1803
        %v1827 = vunpack.c.l.b16 %v1804
        %v1828 = vpack.c.b16 %v1821, %v1820
        %v1829 = vpack.c.b16 %v1823, %v1822
        %v1830 = vpack.c.b16 %v1825, %v1824
        %v1831 = vpack.c.b16 %v1827, %v1826
        %vm1836 = vcmask 523264
        %v1838 = vsel %vm1836, %v1796, 0
        %1840 = vmatprep.subr.bf16.mxu0 0
        %1841 = vmatpush1.bf16.msra.mxu0 0
        %1842 = vmatprep.subr.bf16.mxu0 0
        %1843 = vmatpush1.bf16.msra.mxu0 0
        %1844 = vmatprep.subr.bf16.mxu0 0
        %1845 = vmatpush1.bf16.msra.mxu0 0
        %1846 = vmatprep.subr.bf16.mxu0 0
        %1847 = vmatpush1.bf16.msra.mxu0 0
        %1848 = vmatprep.subr.bf16.mxu0 0
        %1849 = vmatpush1.bf16.msra.mxu0 %v1831
        %1850 = vmatprep.subr.bf16.mxu0 0
        %1851 = vmatpush1.bf16.msra.mxu0 %v1830
        %1852 = vmatprep.subr.bf16.mxu0 0
        %1853 = vmatpush1.bf16.msra.mxu0 %v1829
        %1854 = vmatprep.subr.bf16.mxu0 0
        %1855 = vmatpush1.bf16.msra.mxu0 %v1828
        %1856 = vmatprep.subr.bf16.mxu0 0
        %1857 = vmatpush2.bf16.msra.mxu0 0
        %1858 = vmatprep.subr.bf16.mxu0 0
        %1859 = vmatpush2.bf16.msra.mxu0 0
        %1860 = vmatprep.subr.bf16.mxu0 0
        %1861 = vmatpush2.bf16.msra.mxu0 0
        %1862 = vmatprep.subr.bf16.mxu0 0
        %1863 = vmatpush2.bf16.msra.mxu0 0
        %1864 = vmatprep.subr.bf16.mxu0 0
        %1865 = vmatpush2.bf16.msra.mxu0 0
        %1866 = vmatprep.subr.bf16.mxu0 0
        %1867 = vmatpush2.bf16.msra.mxu0 0
        %1868 = vmatprep.subr.bf16.mxu0 0
        %1869 = vmatpush2.bf16.msra.mxu0 0
        %1870 = vmatprep.subr.bf16.mxu0 0
        %1871 = vmatpush2.bf16.msra.mxu0 0
        %1872 = vmatprep.mubr.bf16.mxu0 0
        %1873 = vmatmul.mubr.bf16.gmra.mxu0 %v1838
        %v1874 = vpop.f32.mrf.mxu0
        %v1875 = vadd.f32 %v1810, %v1874
        %v1876 = vpop.f32.mrf.mxu0
        %v1877 = vpop.f32.mrf.mxu0
        %v1878 = vpop.f32.mrf.mxu0
        %1879 = vdwg.mxu0
        %v1880 = vmax.f32 %v1875, 0.0
        %v1881 = vpack.c.bf16 %v1880, %v1880
        %v1882 = vld [vmem:[%s17] sm:$0xf]
        %v1883 = vld [vmem:[%s17 + $0x4] sm:$0xf]
        %v1884 = vld [vmem:[%s17 + $0x8] sm:$0xf]
        %v1885 = vld [vmem:[%s17 + $0xc] sm:$0xf]
        %v1886 = vld [vmem:[%s17 + $0x10] sm:$0xf]
        %v1887 = vld [vmem:[%s17 + $0x14] sm:$0xf]
        %v1888 = vld [vmem:[%s17 + $0x18] sm:$0xf]
        %v1889 = vld [vmem:[%s17 + $0x1c] sm:$0xf]
        %v1890 = vld [vmem:[%s18] sm:$0x1]
        %v1892 = vlaneseq
        %v1893 = vshrl.u32 %v1892, 7
        %v1894 = vsub.s32 0, %v1893
        %v1895 = vrot.slane %v1890, %v1894
        %v1905 = vunpack.c.l.b16 %v1882
        %v1906 = vunpack.c.l.b16 %v1883
        %v1907 = vunpack.c.l.b16 %v1884
        %v1908 = vunpack.c.l.b16 %v1885
        %v1909 = vunpack.c.l.b16 %v1886
        %v1910 = vunpack.c.l.b16 %v1887
        %v1911 = vunpack.c.l.b16 %v1888
        %v1912 = vunpack.c.l.b16 %v1889
        %v1913 = vpack.c.b16 %v1906, %v1905
        %v1914 = vpack.c.b16 %v1908, %v1907
        %v1915 = vpack.c.b16 %v1910, %v1909
        %v1916 = vpack.c.b16 %v1912, %v1911
        %v1922 = vsel %vm1836, %v1881, 0
        %1924 = vmatprep.subr.bf16.mxu0 0
        %1925 = vmatpush1.bf16.msra.mxu0 0
        %1926 = vmatprep.subr.bf16.mxu0 0
        %1927 = vmatpush1.bf16.msra.mxu0 0
        %1928 = vmatprep.subr.bf16.mxu0 0
        %1929 = vmatpush1.bf16.msra.mxu0 0
        %1930 = vmatprep.subr.bf16.mxu0 0
        %1931 = vmatpush1.bf16.msra.mxu0 0
        %1932 = vmatprep.subr.bf16.mxu0 0
        %1933 = vmatpush1.bf16.msra.mxu0 %v1916
        %1934 = vmatprep.subr.bf16.mxu0 0
        %1935 = vmatpush1.bf16.msra.mxu0 %v1915
        %1936 = vmatprep.subr.bf16.mxu0 0
        %1937 = vmatpush1.bf16.msra.mxu0 %v1914
        %1938 = vmatprep.subr.bf16.mxu0 0
        %1939 = vmatpush1.bf16.msra.mxu0 %v1913
        %1940 = vmatprep.subr.bf16.mxu0 0
        %1941 = vmatpush2.bf16.msra.mxu0 0
        %1942 = vmatprep.subr.bf16.mxu0 0
        %1943 = vmatpush2.bf16.msra.mxu0 0
        %1944 = vmatprep.subr.bf16.mxu0 0
        %1945 = vmatpush2.bf16.msra.mxu0 0
        %1946 = vmatprep.subr.bf16.mxu0 0
        %1947 = vmatpush2.bf16.msra.mxu0 0
        %1948 = vmatprep.subr.bf16.mxu0 0
        %1949 = vmatpush2.bf16.msra.mxu0 0
        %1950 = vmatprep.subr.bf16.mxu0 0
        %1951 = vmatpush2.bf16.msra.mxu0 0
        %1952 = vmatprep.subr.bf16.mxu0 0
        %1953 = vmatpush2.bf16.msra.mxu0 0
        %1954 = vmatprep.subr.bf16.mxu0 0
        %1955 = vmatpush2.bf16.msra.mxu0 0
        %1956 = vmatprep.mubr.bf16.mxu0 0
        %1957 = vmatmul.mubr.bf16.gmra.mxu0 %v1922
        %v1958 = vpop.f32.mrf.mxu0
        %v1959 = vadd.f32 %v1895, %v1958
        %v1960 = vpop.f32.mrf.mxu0
        %v1961 = vpop.f32.mrf.mxu0
        %v1962 = vpop.f32.mrf.mxu0
        %1963 = vdwg.mxu0
        %v1964 = vadd.f32 %v1959, %v1727
        %v1965 = vld [vmem:[%s19] sm:$0x1]
        %v1966 = vld [vmem:[%s20] sm:$0x1]
        %v1967 = vsel %vm1699, %v1964, 0.0
        %1968 = vadd.xlane.f32.xlu0 %v1967
        %v1969 = vpop.xlane.xlu0 %1968
        %v1970 = vmul.f32 %v1969, %v1703
        %v1971 = vsub.f32 %v1964, %v1970
        %v1972 = vmul.f32 %v1971, %v1971
        %v1973 = vsel %vm1699, %v1972, 0.0
        %1974 = vadd.xlane.f32.xlu0 %v1973
        %v1975 = vpop.xlane.xlu0 %1974
        %v1976 = vmul.f32 %v1975, %v1703
        %v1977 = vadd.f32 %v1976, 1e-05
        %v1978 = vrsqrt.pop %v1977
        %v1979 = vmul.f32 %v1971, %v1978
        %v1981 = vlaneseq
        %v1982 = vshrl.u32 %v1981, 7
        %v1983 = vsub.s32 0, %v1982
        %v1984 = vrot.slane %v1965, %v1983
        %v1986 = vmul.f32 %v1979, %v1984
        %v1988 = vlaneseq
        %v1989 = vshrl.u32 %v1988, 7
        %v1990 = vsub.s32 0, %v1989
        %v1991 = vrot.slane %v1966, %v1990
        %v1993 = vadd.f32 %v1986, %v1991
        %1994 = vst.msk [vmem:[%s843] sm:$0xff] %vm1699, %v1993
        %s1995 = sand.u32 %s526, 1
        %s1996 = scalar_lea.sflag [#allocation4], %s1995
        %s1997 = sand.u32 %s526, 1
        %s1998 = smul.addr %s1997, 8
        %s1999 = scalar_lea.vmem [#allocation17], %s1998
        // Predicated region
        $region141: #{tpu_custom_call.1} parent=103 // pred_check
          %p2000 = pneg %p536
        $region142: #{tpu_custom_call.1} parent=103 // pred_check_branch
          %2002 = sbr.rel (%p2000) target = $region144
        $region143: #{tpu_custom_call.1} parent=103 // pred_region
          %s2004 = ssub.s32 128, 128
          %2005 = vsyncadd %s1996, %s2004
          %s2006 = sadd.s32 %s49, %s48
          %s2007 = smul.addr %s2006, 128
          %s2008 = scalar_lea.hbm %s21, %s2007
          %s2010 = sshll.u32 %s1999, 4
          %s2011 = int_to_ptr.vmem [resolvable:$true] %s2010
          %2013 = dma.vmem_to_hbm [thread:$0]  %s2011, 128, %s2008, %s1996
        $region144: #{tpu_custom_call.1} parent=103 // pred_fallthru
          _
      $region104: #{tpu_custom_call.1} parent=5 // pred_fallthru
        _
      %p2014 = scmp.le.s32.totalorder 2, %s39
      // Predicated region
      $region145: #{tpu_custom_call.1} parent=5 // pred_check
        %p2015 = pneg %p2014
      $region146: #{tpu_custom_call.1} parent=5 // pred_check_branch
        %2017 = sbr.rel (%p2015) target = $region148
      $region147: #{tpu_custom_call.1} parent=5 // pred_region
        %s2018 = ssub.s32 %s39, 2
        // Predicated region
        $region149: #{tpu_custom_call.1} parent=147 // pred_check
          %p2019 = pneg %p542
        $region150: #{tpu_custom_call.1} parent=147 // pred_check_branch
          %2021 = sbr.rel (%p2019) target = $region152
        $region151: #{tpu_custom_call.1} parent=147 // pred_region
          %s2022 = sand.u32 %s527, 1
          %s2023 = scalar_lea.sflag [#allocation4], %s2022
          %s2024 = sand.u32 %s527, 1
          %s2025 = smul.addr %s2024, 8
          %s2026 = scalar_lea.vmem [#allocation17], %s2025
          %2027 = dma.done %s2023, 128
        $region152: #{tpu_custom_call.1} parent=147 // pred_fallthru
          _
      $region148: #{tpu_custom_call.1} parent=5 // pred_fallthru
        _
    $region6: #{tpu_custom_call.1} parent=1 // loop_footer
      %s43 = sadd.s32 1, %s39
    $region7: #{tpu_custom_call.1} parent=1 // loop_footer_branch
      %38 = sbr.rel target = $region3
    $region8: #{tpu_custom_call.1} parent=1 // loop_exit
      _
    %2028 = vsyncpa [#allocation3], 1
    %s2029 = scalar_lea.sflag [#allocation3], 1
    %2030 = vsyncpa %s2029, 1
    %2031 = vsyncpa [#allocation6], 1
    %s2032 = scalar_lea.sflag [#allocation6], 1
    %2033 = vsyncpa %s2032, 1
    %2034 = vsyncpa [#allocation9], 1
    %2035 = vsyncpa [#allocation12], 1
    %2036 = vsyncpa [#allocation15], 1
    %2037 = vsyncpa [#allocation4], 1
    %s2038 = scalar_lea.sflag [#allocation4], 1
    %2039 = vsyncpa %s2038, 1

</llo_original>
